<compile_context>
chip_gen: v6e
topology: v6e:2x2x1
jax: 0.10.0
libtpu: 0.0.40
codegen_flags: <defaults>
</compile_context>

<pallas_src>
import math

import jax
import jax.numpy as jnp
from jax.experimental import pallas as pl
from jax.experimental.pallas import tpu as pltpu


def make_params(key, image_shape, depths=(8, 16), kernel_size=2, embed_size=100):
    """Deterministic synthetic parameters with PyTorch shapes (OIHW convs)."""
    cin, h, w = image_shape
    k = kernel_size
    ds = [cin] + list(depths)
    h_w = (h, w)
    keys = jax.random.split(key, 2 * len(depths) + 2)
    params = {}
    for i in range(len(ds) - 1):
        params[f"w{i+1}"] = 0.1 * jax.random.normal(
            keys[2 * i], (ds[i + 1], ds[i], k, k), jnp.float32)   # (O, I, Kh, Kw)
        params[f"b{i+1}"] = 0.1 * jax.random.normal(
            keys[2 * i + 1], (ds[i + 1],), jnp.float32)
        h_w = (h_w[0] - k + 1, h_w[1] - k + 1)
    flat = h_w[0] * h_w[1] * ds[-1]
    params["wl"] = 0.1 * jax.random.normal(keys[-2], (embed_size, flat), jnp.float32)
    params["bl"] = 0.1 * jax.random.normal(keys[-1], (embed_size,), jnp.float32)
    return params, h_w


def _round_up(n, m):
    return ((n + m - 1) // m) * m


def _fold_conv_weight(w_oihw, w_out):
    """(Cout, Cin, K, K) OIHW -> (K*K*w_out*Cin, w_out*Cout) block-diag matrix.

    Row index  = tap*(w_out*Cin) + ow*Cin + c   (tap = dy*K + dx)
    Col index  = ow*Cout + o
    so a lane-dense concat of the K*K shifted input-row slices times this
    matrix computes one full conv output row in a single 2-D MXU matmul.
    """
    c_out, _, k, _ = w_oihw.shape
    eye = jnp.eye(w_out, dtype=w_oihw.dtype)
    blocks = []
    for dy in range(k):
        for dx in range(k):
            w_tap = w_oihw[:, :, dy, dx].T          # (Cin, Cout)
            blocks.append(jnp.kron(eye, w_tap))     # (w_out*Cin, w_out*Cout)
    return jnp.concatenate(blocks, axis=0)


def image_encoder_pallas(image, params, *, image_shape, kernel_size=2,
                         from_flattened=False, normalize_pixel=False,
                         batch_tile=128, operand_dtype=jnp.bfloat16):
    K = kernel_size
    # ---- glue: reshape / normalize exactly like the torch forward ----
    if from_flattened:
        batch_dims = image.shape[:-1]
        image = image.reshape((math.prod(batch_dims),) + tuple(image_shape))
    else:
        batch_dims = (image.shape[0],)
    image = image.astype(jnp.float32)
    if normalize_pixel:
        image = image / 255.0

    B, Cin, H, W = image.shape
    w1, b1 = params["w1"], params["b1"]
    w2, b2 = params["w2"], params["b2"]
    wl, bl = params["wl"], params["bl"]
    C1, C2, E = w1.shape[0], w2.shape[0], wl.shape[0]
    H1, W1 = H - K + 1, W - K + 1
    H2, W2 = H1 - K + 1, W1 - K + 1
    F = H2 * W2 * C2                                 # flattened feature dim
    Epad = max(128, _round_up(E, 128))               # lane-dense output width

    # ---- batch tiling: default 128 rows to fill the MXU M dim ----
    # (use batch_tile=256 on v6e/v7x's 256-row MXU when B allows; on v7x pick
    #  batch_tile <= B//2 so the "parallel" grid spans both TensorCores.)
    Bt = min(batch_tile, max(8, _round_up(B, 8)))
    Bp = _round_up(B, Bt)                            # pad: no ragged tile
    grid = (Bp // Bt,)

    # ---- glue: parameter / layout prep (host-side, one-time) ----
    # Input as fully lane-dense (h,w,c)-major rows: (B, H*W*Cin)
    x_flat = jnp.transpose(image, (0, 2, 3, 1)).reshape(B, H * W * Cin)
    if Bp != B:
        x_flat = jnp.pad(x_flat, ((0, Bp - B), (0, 0)))
    x_flat = x_flat.astype(operand_dtype)

    w1f = _fold_conv_weight(w1, W1).astype(operand_dtype)   # (K*K*W1*Cin, W1*C1)
    w2f = _fold_conv_weight(w2, W2).astype(operand_dtype)   # (K*K*W2*C1, W2*C2)
    b1r = jnp.tile(b1, W1).reshape(1, W1 * C1).astype(jnp.float32)
    b2r = jnp.tile(b2, W2).reshape(1, W2 * C2).astype(jnp.float32)
    # PyTorch flattens the conv output (c, h, w)-major; the kernel emits
    # (h, w, c)-major rows, so permute the linear weight's input dim to match.
    wlt = jnp.transpose(wl.reshape(E, C2, H2, W2), (2, 3, 1, 0)).reshape(F, E)
    wlp = jnp.pad(wlt, ((0, 0), (0, Epad - E))).astype(operand_dtype)   # (F, Epad)
    blp = jnp.pad(bl.reshape(1, E), ((0, 0), (0, Epad - E))).astype(jnp.float32)

    WC = W * Cin
    ROW2 = W2 * C2

    # ---- fused kernel: conv1+ReLU -> conv2+ReLU -> linear (row-accumulated) ----
    def fused_kernel(x_ref, w1_ref, b1_ref, w2_ref, b2_ref, wl_ref, bl_ref,
                     o_ref):
        x = x_ref[...]                               # (Bt, H*W*Cin) lane-dense
        w1k, b1k = w1_ref[...], b1_ref[...]
        w2k, b2k = w2_ref[...], b2_ref[...]

        # conv1 + ReLU: one 2-D matmul per output row, taps are lane slices.
        h1_rows = []
        for oy in range(H1):
            taps = []
            for dy in range(K):
                base = (oy + dy) * WC
                for dx in range(K):
                    s = base + dx * Cin
                    taps.append(x[:, s:s + W1 * Cin])
            p = jnp.concatenate(taps, axis=-1)       # (Bt, K*K*W1*Cin)
            r = jnp.dot(p, w1k, preferred_element_type=jnp.float32) + b1k
            h1_rows.append(jnp.maximum(r, 0.0).astype(operand_dtype))  # (Bt, W1*C1)

        # conv2 + ReLU + linear: accumulate the embedding per conv2 output row,
        # so the (Bt, F) flatten / relayout never materializes.
        acc = jnp.zeros((Bt, Epad), jnp.float32)
        for oy in range(H2):
            taps = []
            for dy in range(K):
                row = h1_rows[oy + dy]
                for dx in range(K):
                    s = dx * C1
                    taps.append(row[:, s:s + W2 * C1])
            p = jnp.concatenate(taps, axis=-1)       # (Bt, K*K*W2*C1)
            r = jnp.dot(p, w2k, preferred_element_type=jnp.float32) + b2k
            h2_row = jnp.maximum(r, 0.0).astype(operand_dtype)          # (Bt, W2*C2)
            acc = acc + jnp.dot(h2_row, wl_ref[oy * ROW2:(oy + 1) * ROW2, :],
                                preferred_element_type=jnp.float32)
        o_ref[...] = acc + bl_ref[...]               # lane-dense (Bt, Epad)

    out_pad = pl.pallas_call(
        fused_kernel,
        out_shape=jax.ShapeDtypeStruct((Bp, Epad), jnp.float32),
        grid_spec=pltpu.PrefetchScalarGridSpec(
            num_scalar_prefetch=0,
            grid=grid,
            in_specs=[
                pl.BlockSpec((Bt, H * W * Cin), lambda b: (b, 0)),
                # Constant index maps -> weights stay VMEM-resident across
                # steps (~1 MB bf16 total; double-buffer cost is negligible).
                pl.BlockSpec((K * K * W1 * Cin, W1 * C1), lambda b: (0, 0)),
                pl.BlockSpec((1, W1 * C1), lambda b: (0, 0)),
                pl.BlockSpec((K * K * W2 * C1, W2 * C2), lambda b: (0, 0)),
                pl.BlockSpec((1, W2 * C2), lambda b: (0, 0)),
                pl.BlockSpec((F, Epad), lambda b: (0, 0)),
                pl.BlockSpec((1, Epad), lambda b: (0, 0)),
            ],
            out_specs=pl.BlockSpec((Bt, Epad), lambda b: (b, 0)),
        ),
        # Footprint (~2-4 MB) is far under the default scoped VMEM limit on
        # v5e/v6e/v7x, so no vmem_limit_bytes override (v7x has only 64 MiB).
        compiler_params=pltpu.CompilerParams(
            dimension_semantics=("parallel",),
        ),
    )(x_flat, w1f, b1r, w2f, b2r, wlp, blp)

    out = out_pad[:B, :E]                            # glue: drop padding
    return out.reshape(tuple(batch_dims) + (E,))


def image_encoder_reference(x_nchw, params):
    """Pure-JAX reference matching the PyTorch forward (NCHW, f32)."""
    dn = ("NCHW", "OIHW", "NCHW")
    y = jax.lax.conv_general_dilated(x_nchw, params["w1"], (1, 1), "VALID",
                                     dimension_numbers=dn)
    y = jnp.maximum(y + params["b1"][None, :, None, None], 0.0)
    y = jax.lax.conv_general_dilated(y, params["w2"], (1, 1), "VALID",
                                     dimension_numbers=dn)
    y = jnp.maximum(y + params["b2"][None, :, None, None], 0.0)
    y = y.reshape(y.shape[0], -1)                    # (c, h, w)-major like torch
    return y @ params["wl"].T + params["bl"]


if __name__ == "__main__":
    key = jax.random.PRNGKey(0)
    k_x, k_p = jax.random.split(key)

    image_shape = (4, 16, 16)                        # (C, H, W), PyTorch convention
    B = 2
    x = jax.random.normal(k_x, (B,) + image_shape, jnp.float32)
    params, _ = make_params(k_p, image_shape, depths=(8, 16), kernel_size=2,
                            embed_size=100)

    ref = image_encoder_reference(x, params)

    # f32-operand path: strict check against the f32 reference.
    out_f32 = image_encoder_pallas(x, params, image_shape=image_shape,
                                   kernel_size=2, from_flattened=False,
                                   normalize_pixel=False,
                                   operand_dtype=jnp.float32)
    out_f32 = jax.block_until_ready(out_f32)
    assert out_f32.shape == (B, 100), out_f32.shape
    assert jnp.allclose(out_f32, ref, atol=1e-3, rtol=1e-3), \
        float(jnp.max(jnp.abs(out_f32 - ref)))

    # Default bf16-operand path (f32 accumulation): tolerance loosened
    # explicitly for the 3136-deep bf16-operand reduction (per review).
    out_bf16 = image_encoder_pallas(x, params, image_shape=image_shape,
                                    kernel_size=2, from_flattened=False,
                                    normalize_pixel=False)
    out_bf16 = jax.block_until_ready(out_bf16)
    assert out_bf16.shape == (B, 100), out_bf16.shape
    assert jnp.allclose(out_bf16, ref, atol=8e-2, rtol=5e-2), \
        float(jnp.max(jnp.abs(out_bf16 - ref)))

    print("KERNEL_OK")
</pallas_src>

<mosaic_0001>
module attributes {stable_mosaic.version = 11 : i64} {
  func.func @fused_kernel(%arg0: i32, %arg1: memref<8x1024xf32, #tpu.memory_space<vmem>>, %arg2: memref<240x120xf32, #tpu.memory_space<vmem>>, %arg3: memref<1x120xf32, #tpu.memory_space<vmem>>, %arg4: memref<448x224xf32, #tpu.memory_space<vmem>>, %arg5: memref<1x224xf32, #tpu.memory_space<vmem>>, %arg6: memref<3136x128xf32, #tpu.memory_space<vmem>>, %arg7: memref<1x128xf32, #tpu.memory_space<vmem>>, %arg8: memref<8x128xf32, #tpu.memory_space<vmem>>) attributes {dimension_semantics = [#tpu.dimension_semantics<parallel>], iteration_bounds = array<i64: 1>, scalar_prefetch = 0 : i64, scratch_operands = 0 : i64, tpu.core_type = #tpu.core_type<tc>, window_params = [{transform_indices = @transform_0, window_bounds = array<i64: 8, 1024>}, {pipeline_mode = #tpu.pipeline_mode<synchronous>, transform_indices = @transform_1, window_bounds = array<i64: 240, 120>}, {pipeline_mode = #tpu.pipeline_mode<synchronous>, transform_indices = @transform_2, window_bounds = array<i64: 1, 120>}, {pipeline_mode = #tpu.pipeline_mode<synchronous>, transform_indices = @transform_3, window_bounds = array<i64: 448, 224>}, {pipeline_mode = #tpu.pipeline_mode<synchronous>, transform_indices = @transform_4, window_bounds = array<i64: 1, 224>}, {pipeline_mode = #tpu.pipeline_mode<synchronous>, transform_indices = @transform_5, window_bounds = array<i64: 3136, 128>}, {pipeline_mode = #tpu.pipeline_mode<synchronous>, transform_indices = @transform_6, window_bounds = array<i64: 1, 128>}, {transform_indices = @transform_7, window_bounds = array<i64: 8, 128>}]} {
    %c0 = arith.constant 0 : index
    %c0_0 = arith.constant 0 : index
    %0 = vector.load %arg1[%c0, %c0_0] : memref<8x1024xf32, #tpu.memory_space<vmem>>, vector<8x1024xf32>
    %c0_1 = arith.constant 0 : index
    %c0_2 = arith.constant 0 : index
    %1 = vector.load %arg2[%c0_1, %c0_2] : memref<240x120xf32, #tpu.memory_space<vmem>>, vector<240x120xf32>
    %c0_3 = arith.constant 0 : index
    %c0_4 = arith.constant 0 : index
    %2 = vector.load %arg3[%c0_3, %c0_4] : memref<1x120xf32, #tpu.memory_space<vmem>>, vector<1x120xf32>
    %c0_5 = arith.constant 0 : index
    %c0_6 = arith.constant 0 : index
    %3 = vector.load %arg4[%c0_5, %c0_6] : memref<448x224xf32, #tpu.memory_space<vmem>>, vector<448x224xf32>
    %c0_7 = arith.constant 0 : index
    %c0_8 = arith.constant 0 : index
    %4 = vector.load %arg5[%c0_7, %c0_8] : memref<1x224xf32, #tpu.memory_space<vmem>>, vector<1x224xf32>
    %5 = vector.extract_strided_slice %0 {offsets = [0, 0], sizes = [8, 60], strides = [1, 1]} : vector<8x1024xf32> to vector<8x60xf32>
    %6 = vector.extract_strided_slice %0 {offsets = [0, 4], sizes = [8, 60], strides = [1, 1]} : vector<8x1024xf32> to vector<8x60xf32>
    %7 = vector.extract_strided_slice %0 {offsets = [0, 64], sizes = [8, 60], strides = [1, 1]} : vector<8x1024xf32> to vector<8x60xf32>
    %8 = vector.extract_strided_slice %0 {offsets = [0, 68], sizes = [8, 60], strides = [1, 1]} : vector<8x1024xf32> to vector<8x60xf32>
    %9 = tpu.concatenate %5, %6, %7, %8 in 1 : vector<8x60xf32>, vector<8x60xf32>, vector<8x60xf32>, vector<8x60xf32> -> vector<8x240xf32>
    %cst = arith.constant dense<0.000000e+00> : vector<8x120xf32>
    %10 = tpu.matmul %9, %1, %cst {dimension_numbers = #tpu.dot_dimension_numbers<[1], [0], [0], [1], [0, 0, 1, 1], [], []>} : vector<8x240xf32>, vector<240x120xf32>, vector<8x120xf32> -> vector<8x120xf32>
    %11 = vector.broadcast %2 : vector<1x120xf32> to vector<8x120xf32>
    %12 = arith.addf %10, %11 : vector<8x120xf32>
    %cst_9 = arith.constant 0.000000e+00 : f32
    %13 = vector.broadcast %cst_9 : f32 to vector<8x120xf32>
    %14 = arith.maximumf %12, %13 : vector<8x120xf32>
    %15 = vector.extract_strided_slice %0 {offsets = [0, 64], sizes = [8, 60], strides = [1, 1]} : vector<8x1024xf32> to vector<8x60xf32>
    %16 = vector.extract_strided_slice %0 {offsets = [0, 68], sizes = [8, 60], strides = [1, 1]} : vector<8x1024xf32> to vector<8x60xf32>
    %17 = vector.extract_strided_slice %0 {offsets = [0, 128], sizes = [8, 60], strides = [1, 1]} : vector<8x1024xf32> to vector<8x60xf32>
    %18 = vector.extract_strided_slice %0 {offsets = [0, 132], sizes = [8, 60], strides = [1, 1]} : vector<8x1024xf32> to vector<8x60xf32>
    %19 = tpu.concatenate %15, %16, %17, %18 in 1 : vector<8x60xf32>, vector<8x60xf32>, vector<8x60xf32>, vector<8x60xf32> -> vector<8x240xf32>
    %cst_10 = arith.constant dense<0.000000e+00> : vector<8x120xf32>
    %20 = tpu.matmul %19, %1, %cst_10 {dimension_numbers = #tpu.dot_dimension_numbers<[1], [0], [0], [1], [0, 0, 1, 1], [], []>} : vector<8x240xf32>, vector<240x120xf32>, vector<8x120xf32> -> vector<8x120xf32>
    %21 = vector.broadcast %2 : vector<1x120xf32> to vector<8x120xf32>
    %22 = arith.addf %20, %21 : vector<8x120xf32>
    %cst_11 = arith.constant 0.000000e+00 : f32
    %23 = vector.broadcast %cst_11 : f32 to vector<8x120xf32>
    %24 = arith.maximumf %22, %23 : vector<8x120xf32>
    %25 = vector.extract_strided_slice %0 {offsets = [0, 128], sizes = [8, 60], strides = [1, 1]} : vector<8x1024xf32> to vector<8x60xf32>
    %26 = vector.extract_strided_slice %0 {offsets = [0, 132], sizes = [8, 60], strides = [1, 1]} : vector<8x1024xf32> to vector<8x60xf32>
    %27 = vector.extract_strided_slice %0 {offsets = [0, 192], sizes = [8, 60], strides = [1, 1]} : vector<8x1024xf32> to vector<8x60xf32>
    %28 = vector.extract_strided_slice %0 {offsets = [0, 196], sizes = [8, 60], strides = [1, 1]} : vector<8x1024xf32> to vector<8x60xf32>
    %29 = tpu.concatenate %25, %26, %27, %28 in 1 : vector<8x60xf32>, vector<8x60xf32>, vector<8x60xf32>, vector<8x60xf32> -> vector<8x240xf32>
    %cst_12 = arith.constant dense<0.000000e+00> : vector<8x120xf32>
    %30 = tpu.matmul %29, %1, %cst_12 {dimension_numbers = #tpu.dot_dimension_numbers<[1], [0], [0], [1], [0, 0, 1, 1], [], []>} : vector<8x240xf32>, vector<240x120xf32>, vector<8x120xf32> -> vector<8x120xf32>
    %31 = vector.broadcast %2 : vector<1x120xf32> to vector<8x120xf32>
    %32 = arith.addf %30, %31 : vector<8x120xf32>
    %cst_13 = arith.constant 0.000000e+00 : f32
    %33 = vector.broadcast %cst_13 : f32 to vector<8x120xf32>
    %34 = arith.maximumf %32, %33 : vector<8x120xf32>
    %35 = vector.extract_strided_slice %0 {offsets = [0, 192], sizes = [8, 60], strides = [1, 1]} : vector<8x1024xf32> to vector<8x60xf32>
    %36 = vector.extract_strided_slice %0 {offsets = [0, 196], sizes = [8, 60], strides = [1, 1]} : vector<8x1024xf32> to vector<8x60xf32>
    %37 = vector.extract_strided_slice %0 {offsets = [0, 256], sizes = [8, 60], strides = [1, 1]} : vector<8x1024xf32> to vector<8x60xf32>
    %38 = vector.extract_strided_slice %0 {offsets = [0, 260], sizes = [8, 60], strides = [1, 1]} : vector<8x1024xf32> to vector<8x60xf32>
    %39 = tpu.concatenate %35, %36, %37, %38 in 1 : vector<8x60xf32>, vector<8x60xf32>, vector<8x60xf32>, vector<8x60xf32> -> vector<8x240xf32>
    %cst_14 = arith.constant dense<0.000000e+00> : vector<8x120xf32>
    %40 = tpu.matmul %39, %1, %cst_14 {dimension_numbers = #tpu.dot_dimension_numbers<[1], [0], [0], [1], [0, 0, 1, 1], [], []>} : vector<8x240xf32>, vector<240x120xf32>, vector<8x120xf32> -> vector<8x120xf32>
    %41 = vector.broadcast %2 : vector<1x120xf32> to vector<8x120xf32>
    %42 = arith.addf %40, %41 : vector<8x120xf32>
    %cst_15 = arith.constant 0.000000e+00 : f32
    %43 = vector.broadcast %cst_15 : f32 to vector<8x120xf32>
    %44 = arith.maximumf %42, %43 : vector<8x120xf32>
    %45 = vector.extract_strided_slice %0 {offsets = [0, 256], sizes = [8, 60], strides = [1, 1]} : vector<8x1024xf32> to vector<8x60xf32>
    %46 = vector.extract_strided_slice %0 {offsets = [0, 260], sizes = [8, 60], strides = [1, 1]} : vector<8x1024xf32> to vector<8x60xf32>
    %47 = vector.extract_strided_slice %0 {offsets = [0, 320], sizes = [8, 60], strides = [1, 1]} : vector<8x1024xf32> to vector<8x60xf32>
    %48 = vector.extract_strided_slice %0 {offsets = [0, 324], sizes = [8, 60], strides = [1, 1]} : vector<8x1024xf32> to vector<8x60xf32>
    %49 = tpu.concatenate %45, %46, %47, %48 in 1 : vector<8x60xf32>, vector<8x60xf32>, vector<8x60xf32>, vector<8x60xf32> -> vector<8x240xf32>
    %cst_16 = arith.constant dense<0.000000e+00> : vector<8x120xf32>
    %50 = tpu.matmul %49, %1, %cst_16 {dimension_numbers = #tpu.dot_dimension_numbers<[1], [0], [0], [1], [0, 0, 1, 1], [], []>} : vector<8x240xf32>, vector<240x120xf32>, vector<8x120xf32> -> vector<8x120xf32>
    %51 = vector.broadcast %2 : vector<1x120xf32> to vector<8x120xf32>
    %52 = arith.addf %50, %51 : vector<8x120xf32>
    %cst_17 = arith.constant 0.000000e+00 : f32
    %53 = vector.broadcast %cst_17 : f32 to vector<8x120xf32>
    %54 = arith.maximumf %52, %53 : vector<8x120xf32>
    %55 = vector.extract_strided_slice %0 {offsets = [0, 320], sizes = [8, 60], strides = [1, 1]} : vector<8x1024xf32> to vector<8x60xf32>
    %56 = vector.extract_strided_slice %0 {offsets = [0, 324], sizes = [8, 60], strides = [1, 1]} : vector<8x1024xf32> to vector<8x60xf32>
    %57 = vector.extract_strided_slice %0 {offsets = [0, 384], sizes = [8, 60], strides = [1, 1]} : vector<8x1024xf32> to vector<8x60xf32>
    %58 = vector.extract_strided_slice %0 {offsets = [0, 388], sizes = [8, 60], strides = [1, 1]} : vector<8x1024xf32> to vector<8x60xf32>
    %59 = tpu.concatenate %55, %56, %57, %58 in 1 : vector<8x60xf32>, vector<8x60xf32>, vector<8x60xf32>, vector<8x60xf32> -> vector<8x240xf32>
    %cst_18 = arith.constant dense<0.000000e+00> : vector<8x120xf32>
    %60 = tpu.matmul %59, %1, %cst_18 {dimension_numbers = #tpu.dot_dimension_numbers<[1], [0], [0], [1], [0, 0, 1, 1], [], []>} : vector<8x240xf32>, vector<240x120xf32>, vector<8x120xf32> -> vector<8x120xf32>
    %61 = vector.broadcast %2 : vector<1x120xf32> to vector<8x120xf32>
    %62 = arith.addf %60, %61 : vector<8x120xf32>
    %cst_19 = arith.constant 0.000000e+00 : f32
    %63 = vector.broadcast %cst_19 : f32 to vector<8x120xf32>
    %64 = arith.maximumf %62, %63 : vector<8x120xf32>
    %65 = vector.extract_strided_slice %0 {offsets = [0, 384], sizes = [8, 60], strides = [1, 1]} : vector<8x1024xf32> to vector<8x60xf32>
    %66 = vector.extract_strided_slice %0 {offsets = [0, 388], sizes = [8, 60], strides = [1, 1]} : vector<8x1024xf32> to vector<8x60xf32>
    %67 = vector.extract_strided_slice %0 {offsets = [0, 448], sizes = [8, 60], strides = [1, 1]} : vector<8x1024xf32> to vector<8x60xf32>
    %68 = vector.extract_strided_slice %0 {offsets = [0, 452], sizes = [8, 60], strides = [1, 1]} : vector<8x1024xf32> to vector<8x60xf32>
    %69 = tpu.concatenate %65, %66, %67, %68 in 1 : vector<8x60xf32>, vector<8x60xf32>, vector<8x60xf32>, vector<8x60xf32> -> vector<8x240xf32>
    %cst_20 = arith.constant dense<0.000000e+00> : vector<8x120xf32>
    %70 = tpu.matmul %69, %1, %cst_20 {dimension_numbers = #tpu.dot_dimension_numbers<[1], [0], [0], [1], [0, 0, 1, 1], [], []>} : vector<8x240xf32>, vector<240x120xf32>, vector<8x120xf32> -> vector<8x120xf32>
    %71 = vector.broadcast %2 : vector<1x120xf32> to vector<8x120xf32>
    %72 = arith.addf %70, %71 : vector<8x120xf32>
    %cst_21 = arith.constant 0.000000e+00 : f32
    %73 = vector.broadcast %cst_21 : f32 to vector<8x120xf32>
    %74 = arith.maximumf %72, %73 : vector<8x120xf32>
    %75 = vector.extract_strided_slice %0 {offsets = [0, 448], sizes = [8, 60], strides = [1, 1]} : vector<8x1024xf32> to vector<8x60xf32>
    %76 = vector.extract_strided_slice %0 {offsets = [0, 452], sizes = [8, 60], strides = [1, 1]} : vector<8x1024xf32> to vector<8x60xf32>
    %77 = vector.extract_strided_slice %0 {offsets = [0, 512], sizes = [8, 60], strides = [1, 1]} : vector<8x1024xf32> to vector<8x60xf32>
    %78 = vector.extract_strided_slice %0 {offsets = [0, 516], sizes = [8, 60], strides = [1, 1]} : vector<8x1024xf32> to vector<8x60xf32>
    %79 = tpu.concatenate %75, %76, %77, %78 in 1 : vector<8x60xf32>, vector<8x60xf32>, vector<8x60xf32>, vector<8x60xf32> -> vector<8x240xf32>
    %cst_22 = arith.constant dense<0.000000e+00> : vector<8x120xf32>
    %80 = tpu.matmul %79, %1, %cst_22 {dimension_numbers = #tpu.dot_dimension_numbers<[1], [0], [0], [1], [0, 0, 1, 1], [], []>} : vector<8x240xf32>, vector<240x120xf32>, vector<8x120xf32> -> vector<8x120xf32>
    %81 = vector.broadcast %2 : vector<1x120xf32> to vector<8x120xf32>
    %82 = arith.addf %80, %81 : vector<8x120xf32>
    %cst_23 = arith.constant 0.000000e+00 : f32
    %83 = vector.broadcast %cst_23 : f32 to vector<8x120xf32>
    %84 = arith.maximumf %82, %83 : vector<8x120xf32>
    %85 = vector.extract_strided_slice %0 {offsets = [0, 512], sizes = [8, 60], strides = [1, 1]} : vector<8x1024xf32> to vector<8x60xf32>
    %86 = vector.extract_strided_slice %0 {offsets = [0, 516], sizes = [8, 60], strides = [1, 1]} : vector<8x1024xf32> to vector<8x60xf32>
    %87 = vector.extract_strided_slice %0 {offsets = [0, 576], sizes = [8, 60], strides = [1, 1]} : vector<8x1024xf32> to vector<8x60xf32>
    %88 = vector.extract_strided_slice %0 {offsets = [0, 580], sizes = [8, 60], strides = [1, 1]} : vector<8x1024xf32> to vector<8x60xf32>
    %89 = tpu.concatenate %85, %86, %87, %88 in 1 : vector<8x60xf32>, vector<8x60xf32>, vector<8x60xf32>, vector<8x60xf32> -> vector<8x240xf32>
    %cst_24 = arith.constant dense<0.000000e+00> : vector<8x120xf32>
    %90 = tpu.matmul %89, %1, %cst_24 {dimension_numbers = #tpu.dot_dimension_numbers<[1], [0], [0], [1], [0, 0, 1, 1], [], []>} : vector<8x240xf32>, vector<240x120xf32>, vector<8x120xf32> -> vector<8x120xf32>
    %91 = vector.broadcast %2 : vector<1x120xf32> to vector<8x120xf32>
    %92 = arith.addf %90, %91 : vector<8x120xf32>
    %cst_25 = arith.constant 0.000000e+00 : f32
    %93 = vector.broadcast %cst_25 : f32 to vector<8x120xf32>
    %94 = arith.maximumf %92, %93 : vector<8x120xf32>
    %95 = vector.extract_strided_slice %0 {offsets = [0, 576], sizes = [8, 60], strides = [1, 1]} : vector<8x1024xf32> to vector<8x60xf32>
    %96 = vector.extract_strided_slice %0 {offsets = [0, 580], sizes = [8, 60], strides = [1, 1]} : vector<8x1024xf32> to vector<8x60xf32>
    %97 = vector.extract_strided_slice %0 {offsets = [0, 640], sizes = [8, 60], strides = [1, 1]} : vector<8x1024xf32> to vector<8x60xf32>
    %98 = vector.extract_strided_slice %0 {offsets = [0, 644], sizes = [8, 60], strides = [1, 1]} : vector<8x1024xf32> to vector<8x60xf32>
    %99 = tpu.concatenate %95, %96, %97, %98 in 1 : vector<8x60xf32>, vector<8x60xf32>, vector<8x60xf32>, vector<8x60xf32> -> vector<8x240xf32>
    %cst_26 = arith.constant dense<0.000000e+00> : vector<8x120xf32>
    %100 = tpu.matmul %99, %1, %cst_26 {dimension_numbers = #tpu.dot_dimension_numbers<[1], [0], [0], [1], [0, 0, 1, 1], [], []>} : vector<8x240xf32>, vector<240x120xf32>, vector<8x120xf32> -> vector<8x120xf32>
    %101 = vector.broadcast %2 : vector<1x120xf32> to vector<8x120xf32>
    %102 = arith.addf %100, %101 : vector<8x120xf32>
    %cst_27 = arith.constant 0.000000e+00 : f32
    %103 = vector.broadcast %cst_27 : f32 to vector<8x120xf32>
    %104 = arith.maximumf %102, %103 : vector<8x120xf32>
    %105 = vector.extract_strided_slice %0 {offsets = [0, 640], sizes = [8, 60], strides = [1, 1]} : vector<8x1024xf32> to vector<8x60xf32>
    %106 = vector.extract_strided_slice %0 {offsets = [0, 644], sizes = [8, 60], strides = [1, 1]} : vector<8x1024xf32> to vector<8x60xf32>
    %107 = vector.extract_strided_slice %0 {offsets = [0, 704], sizes = [8, 60], strides = [1, 1]} : vector<8x1024xf32> to vector<8x60xf32>
    %108 = vector.extract_strided_slice %0 {offsets = [0, 708], sizes = [8, 60], strides = [1, 1]} : vector<8x1024xf32> to vector<8x60xf32>
    %109 = tpu.concatenate %105, %106, %107, %108 in 1 : vector<8x60xf32>, vector<8x60xf32>, vector<8x60xf32>, vector<8x60xf32> -> vector<8x240xf32>
    %cst_28 = arith.constant dense<0.000000e+00> : vector<8x120xf32>
    %110 = tpu.matmul %109, %1, %cst_28 {dimension_numbers = #tpu.dot_dimension_numbers<[1], [0], [0], [1], [0, 0, 1, 1], [], []>} : vector<8x240xf32>, vector<240x120xf32>, vector<8x120xf32> -> vector<8x120xf32>
    %111 = vector.broadcast %2 : vector<1x120xf32> to vector<8x120xf32>
    %112 = arith.addf %110, %111 : vector<8x120xf32>
    %cst_29 = arith.constant 0.000000e+00 : f32
    %113 = vector.broadcast %cst_29 : f32 to vector<8x120xf32>
    %114 = arith.maximumf %112, %113 : vector<8x120xf32>
    %115 = vector.extract_strided_slice %0 {offsets = [0, 704], sizes = [8, 60], strides = [1, 1]} : vector<8x1024xf32> to vector<8x60xf32>
    %116 = vector.extract_strided_slice %0 {offsets = [0, 708], sizes = [8, 60], strides = [1, 1]} : vector<8x1024xf32> to vector<8x60xf32>
    %117 = vector.extract_strided_slice %0 {offsets = [0, 768], sizes = [8, 60], strides = [1, 1]} : vector<8x1024xf32> to vector<8x60xf32>
    %118 = vector.extract_strided_slice %0 {offsets = [0, 772], sizes = [8, 60], strides = [1, 1]} : vector<8x1024xf32> to vector<8x60xf32>
    %119 = tpu.concatenate %115, %116, %117, %118 in 1 : vector<8x60xf32>, vector<8x60xf32>, vector<8x60xf32>, vector<8x60xf32> -> vector<8x240xf32>
    %cst_30 = arith.constant dense<0.000000e+00> : vector<8x120xf32>
    %120 = tpu.matmul %119, %1, %cst_30 {dimension_numbers = #tpu.dot_dimension_numbers<[1], [0], [0], [1], [0, 0, 1, 1], [], []>} : vector<8x240xf32>, vector<240x120xf32>, vector<8x120xf32> -> vector<8x120xf32>
    %121 = vector.broadcast %2 : vector<1x120xf32> to vector<8x120xf32>
    %122 = arith.addf %120, %121 : vector<8x120xf32>
    %cst_31 = arith.constant 0.000000e+00 : f32
    %123 = vector.broadcast %cst_31 : f32 to vector<8x120xf32>
    %124 = arith.maximumf %122, %123 : vector<8x120xf32>
    %125 = vector.extract_strided_slice %0 {offsets = [0, 768], sizes = [8, 60], strides = [1, 1]} : vector<8x1024xf32> to vector<8x60xf32>
    %126 = vector.extract_strided_slice %0 {offsets = [0, 772], sizes = [8, 60], strides = [1, 1]} : vector<8x1024xf32> to vector<8x60xf32>
    %127 = vector.extract_strided_slice %0 {offsets = [0, 832], sizes = [8, 60], strides = [1, 1]} : vector<8x1024xf32> to vector<8x60xf32>
    %128 = vector.extract_strided_slice %0 {offsets = [0, 836], sizes = [8, 60], strides = [1, 1]} : vector<8x1024xf32> to vector<8x60xf32>
    %129 = tpu.concatenate %125, %126, %127, %128 in 1 : vector<8x60xf32>, vector<8x60xf32>, vector<8x60xf32>, vector<8x60xf32> -> vector<8x240xf32>
    %cst_32 = arith.constant dense<0.000000e+00> : vector<8x120xf32>
    %130 = tpu.matmul %129, %1, %cst_32 {dimension_numbers = #tpu.dot_dimension_numbers<[1], [0], [0], [1], [0, 0, 1, 1], [], []>} : vector<8x240xf32>, vector<240x120xf32>, vector<8x120xf32> -> vector<8x120xf32>
    %131 = vector.broadcast %2 : vector<1x120xf32> to vector<8x120xf32>
    %132 = arith.addf %130, %131 : vector<8x120xf32>
    %cst_33 = arith.constant 0.000000e+00 : f32
    %133 = vector.broadcast %cst_33 : f32 to vector<8x120xf32>
    %134 = arith.maximumf %132, %133 : vector<8x120xf32>
    %135 = vector.extract_strided_slice %0 {offsets = [0, 832], sizes = [8, 60], strides = [1, 1]} : vector<8x1024xf32> to vector<8x60xf32>
    %136 = vector.extract_strided_slice %0 {offsets = [0, 836], sizes = [8, 60], strides = [1, 1]} : vector<8x1024xf32> to vector<8x60xf32>
    %137 = vector.extract_strided_slice %0 {offsets = [0, 896], sizes = [8, 60], strides = [1, 1]} : vector<8x1024xf32> to vector<8x60xf32>
    %138 = vector.extract_strided_slice %0 {offsets = [0, 900], sizes = [8, 60], strides = [1, 1]} : vector<8x1024xf32> to vector<8x60xf32>
    %139 = tpu.concatenate %135, %136, %137, %138 in 1 : vector<8x60xf32>, vector<8x60xf32>, vector<8x60xf32>, vector<8x60xf32> -> vector<8x240xf32>
    %cst_34 = arith.constant dense<0.000000e+00> : vector<8x120xf32>
    %140 = tpu.matmul %139, %1, %cst_34 {dimension_numbers = #tpu.dot_dimension_numbers<[1], [0], [0], [1], [0, 0, 1, 1], [], []>} : vector<8x240xf32>, vector<240x120xf32>, vector<8x120xf32> -> vector<8x120xf32>
    %141 = vector.broadcast %2 : vector<1x120xf32> to vector<8x120xf32>
    %142 = arith.addf %140, %141 : vector<8x120xf32>
    %cst_35 = arith.constant 0.000000e+00 : f32
    %143 = vector.broadcast %cst_35 : f32 to vector<8x120xf32>
    %144 = arith.maximumf %142, %143 : vector<8x120xf32>
    %145 = vector.extract_strided_slice %0 {offsets = [0, 896], sizes = [8, 60], strides = [1, 1]} : vector<8x1024xf32> to vector<8x60xf32>
    %146 = vector.extract_strided_slice %0 {offsets = [0, 900], sizes = [8, 60], strides = [1, 1]} : vector<8x1024xf32> to vector<8x60xf32>
    %147 = vector.extract_strided_slice %0 {offsets = [0, 960], sizes = [8, 60], strides = [1, 1]} : vector<8x1024xf32> to vector<8x60xf32>
    %148 = vector.extract_strided_slice %0 {offsets = [0, 964], sizes = [8, 60], strides = [1, 1]} : vector<8x1024xf32> to vector<8x60xf32>
    %149 = tpu.concatenate %145, %146, %147, %148 in 1 : vector<8x60xf32>, vector<8x60xf32>, vector<8x60xf32>, vector<8x60xf32> -> vector<8x240xf32>
    %cst_36 = arith.constant dense<0.000000e+00> : vector<8x120xf32>
    %150 = tpu.matmul %149, %1, %cst_36 {dimension_numbers = #tpu.dot_dimension_numbers<[1], [0], [0], [1], [0, 0, 1, 1], [], []>} : vector<8x240xf32>, vector<240x120xf32>, vector<8x120xf32> -> vector<8x120xf32>
    %151 = vector.broadcast %2 : vector<1x120xf32> to vector<8x120xf32>
    %152 = arith.addf %150, %151 : vector<8x120xf32>
    %cst_37 = arith.constant 0.000000e+00 : f32
    %153 = vector.broadcast %cst_37 : f32 to vector<8x120xf32>
    %154 = arith.maximumf %152, %153 : vector<8x120xf32>
    %cst_38 = arith.constant 0.000000e+00 : f32
    %155 = vector.broadcast %cst_38 : f32 to vector<8x128xf32>
    %156 = vector.extract_strided_slice %14 {offsets = [0, 0], sizes = [8, 112], strides = [1, 1]} : vector<8x120xf32> to vector<8x112xf32>
    %157 = vector.extract_strided_slice %14 {offsets = [0, 8], sizes = [8, 112], strides = [1, 1]} : vector<8x120xf32> to vector<8x112xf32>
    %158 = vector.extract_strided_slice %24 {offsets = [0, 0], sizes = [8, 112], strides = [1, 1]} : vector<8x120xf32> to vector<8x112xf32>
    %159 = vector.extract_strided_slice %24 {offsets = [0, 8], sizes = [8, 112], strides = [1, 1]} : vector<8x120xf32> to vector<8x112xf32>
    %160 = tpu.concatenate %156, %157, %158, %159 in 1 : vector<8x112xf32>, vector<8x112xf32>, vector<8x112xf32>, vector<8x112xf32> -> vector<8x448xf32>
    %cst_39 = arith.constant dense<0.000000e+00> : vector<8x224xf32>
    %161 = tpu.matmul %160, %3, %cst_39 {dimension_numbers = #tpu.dot_dimension_numbers<[1], [0], [0], [1], [0, 0, 1, 1], [], []>} : vector<8x448xf32>, vector<448x224xf32>, vector<8x224xf32> -> vector<8x224xf32>
    %162 = vector.broadcast %4 : vector<1x224xf32> to vector<8x224xf32>
    %163 = arith.addf %161, %162 : vector<8x224xf32>
    %cst_40 = arith.constant 0.000000e+00 : f32
    %164 = vector.broadcast %cst_40 : f32 to vector<8x224xf32>
    %165 = arith.maximumf %163, %164 : vector<8x224xf32>
    %c0_41 = arith.constant 0 : index
    %c0_42 = arith.constant 0 : index
    %166 = vector.load %arg6[%c0_41, %c0_42] : memref<3136x128xf32, #tpu.memory_space<vmem>>, vector<224x128xf32>
    %cst_43 = arith.constant dense<0.000000e+00> : vector<8x128xf32>
    %167 = tpu.matmul %165, %166, %cst_43 {dimension_numbers = #tpu.dot_dimension_numbers<[1], [0], [0], [1], [0, 0, 1, 1], [], []>} : vector<8x224xf32>, vector<224x128xf32>, vector<8x128xf32> -> vector<8x128xf32>
    %168 = arith.addf %155, %167 : vector<8x128xf32>
    %169 = vector.extract_strided_slice %24 {offsets = [0, 0], sizes = [8, 112], strides = [1, 1]} : vector<8x120xf32> to vector<8x112xf32>
    %170 = vector.extract_strided_slice %24 {offsets = [0, 8], sizes = [8, 112], strides = [1, 1]} : vector<8x120xf32> to vector<8x112xf32>
    %171 = vector.extract_strided_slice %34 {offsets = [0, 0], sizes = [8, 112], strides = [1, 1]} : vector<8x120xf32> to vector<8x112xf32>
    %172 = vector.extract_strided_slice %34 {offsets = [0, 8], sizes = [8, 112], strides = [1, 1]} : vector<8x120xf32> to vector<8x112xf32>
    %173 = tpu.concatenate %169, %170, %171, %172 in 1 : vector<8x112xf32>, vector<8x112xf32>, vector<8x112xf32>, vector<8x112xf32> -> vector<8x448xf32>
    %cst_44 = arith.constant dense<0.000000e+00> : vector<8x224xf32>
    %174 = tpu.matmul %173, %3, %cst_44 {dimension_numbers = #tpu.dot_dimension_numbers<[1], [0], [0], [1], [0, 0, 1, 1], [], []>} : vector<8x448xf32>, vector<448x224xf32>, vector<8x224xf32> -> vector<8x224xf32>
    %175 = vector.broadcast %4 : vector<1x224xf32> to vector<8x224xf32>
    %176 = arith.addf %174, %175 : vector<8x224xf32>
    %cst_45 = arith.constant 0.000000e+00 : f32
    %177 = vector.broadcast %cst_45 : f32 to vector<8x224xf32>
    %178 = arith.maximumf %176, %177 : vector<8x224xf32>
    %c224 = arith.constant 224 : index
    %c0_46 = arith.constant 0 : index
    %179 = vector.load %arg6[%c224, %c0_46] : memref<3136x128xf32, #tpu.memory_space<vmem>>, vector<224x128xf32>
    %cst_47 = arith.constant dense<0.000000e+00> : vector<8x128xf32>
    %180 = tpu.matmul %178, %179, %cst_47 {dimension_numbers = #tpu.dot_dimension_numbers<[1], [0], [0], [1], [0, 0, 1, 1], [], []>} : vector<8x224xf32>, vector<224x128xf32>, vector<8x128xf32> -> vector<8x128xf32>
    %181 = arith.addf %168, %180 : vector<8x128xf32>
    %182 = vector.extract_strided_slice %34 {offsets = [0, 0], sizes = [8, 112], strides = [1, 1]} : vector<8x120xf32> to vector<8x112xf32>
    %183 = vector.extract_strided_slice %34 {offsets = [0, 8], sizes = [8, 112], strides = [1, 1]} : vector<8x120xf32> to vector<8x112xf32>
    %184 = vector.extract_strided_slice %44 {offsets = [0, 0], sizes = [8, 112], strides = [1, 1]} : vector<8x120xf32> to vector<8x112xf32>
    %185 = vector.extract_strided_slice %44 {offsets = [0, 8], sizes = [8, 112], strides = [1, 1]} : vector<8x120xf32> to vector<8x112xf32>
    %186 = tpu.concatenate %182, %183, %184, %185 in 1 : vector<8x112xf32>, vector<8x112xf32>, vector<8x112xf32>, vector<8x112xf32> -> vector<8x448xf32>
    %cst_48 = arith.constant dense<0.000000e+00> : vector<8x224xf32>
    %187 = tpu.matmul %186, %3, %cst_48 {dimension_numbers = #tpu.dot_dimension_numbers<[1], [0], [0], [1], [0, 0, 1, 1], [], []>} : vector<8x448xf32>, vector<448x224xf32>, vector<8x224xf32> -> vector<8x224xf32>
    %188 = vector.broadcast %4 : vector<1x224xf32> to vector<8x224xf32>
    %189 = arith.addf %187, %188 : vector<8x224xf32>
    %cst_49 = arith.constant 0.000000e+00 : f32
    %190 = vector.broadcast %cst_49 : f32 to vector<8x224xf32>
    %191 = arith.maximumf %189, %190 : vector<8x224xf32>
    %c448 = arith.constant 448 : index
    %c0_50 = arith.constant 0 : index
    %192 = vector.load %arg6[%c448, %c0_50] : memref<3136x128xf32, #tpu.memory_space<vmem>>, vector<224x128xf32>
    %cst_51 = arith.constant dense<0.000000e+00> : vector<8x128xf32>
    %193 = tpu.matmul %191, %192, %cst_51 {dimension_numbers = #tpu.dot_dimension_numbers<[1], [0], [0], [1], [0, 0, 1, 1], [], []>} : vector<8x224xf32>, vector<224x128xf32>, vector<8x128xf32> -> vector<8x128xf32>
    %194 = arith.addf %181, %193 : vector<8x128xf32>
    %195 = vector.extract_strided_slice %44 {offsets = [0, 0], sizes = [8, 112], strides = [1, 1]} : vector<8x120xf32> to vector<8x112xf32>
    %196 = vector.extract_strided_slice %44 {offsets = [0, 8], sizes = [8, 112], strides = [1, 1]} : vector<8x120xf32> to vector<8x112xf32>
    %197 = vector.extract_strided_slice %54 {offsets = [0, 0], sizes = [8, 112], strides = [1, 1]} : vector<8x120xf32> to vector<8x112xf32>
    %198 = vector.extract_strided_slice %54 {offsets = [0, 8], sizes = [8, 112], strides = [1, 1]} : vector<8x120xf32> to vector<8x112xf32>
    %199 = tpu.concatenate %195, %196, %197, %198 in 1 : vector<8x112xf32>, vector<8x112xf32>, vector<8x112xf32>, vector<8x112xf32> -> vector<8x448xf32>
    %cst_52 = arith.constant dense<0.000000e+00> : vector<8x224xf32>
    %200 = tpu.matmul %199, %3, %cst_52 {dimension_numbers = #tpu.dot_dimension_numbers<[1], [0], [0], [1], [0, 0, 1, 1], [], []>} : vector<8x448xf32>, vector<448x224xf32>, vector<8x224xf32> -> vector<8x224xf32>
    %201 = vector.broadcast %4 : vector<1x224xf32> to vector<8x224xf32>
    %202 = arith.addf %200, %201 : vector<8x224xf32>
    %cst_53 = arith.constant 0.000000e+00 : f32
    %203 = vector.broadcast %cst_53 : f32 to vector<8x224xf32>
    %204 = arith.maximumf %202, %203 : vector<8x224xf32>
    %c672 = arith.constant 672 : index
    %c0_54 = arith.constant 0 : index
    %205 = vector.load %arg6[%c672, %c0_54] : memref<3136x128xf32, #tpu.memory_space<vmem>>, vector<224x128xf32>
    %cst_55 = arith.constant dense<0.000000e+00> : vector<8x128xf32>
    %206 = tpu.matmul %204, %205, %cst_55 {dimension_numbers = #tpu.dot_dimension_numbers<[1], [0], [0], [1], [0, 0, 1, 1], [], []>} : vector<8x224xf32>, vector<224x128xf32>, vector<8x128xf32> -> vector<8x128xf32>
    %207 = arith.addf %194, %206 : vector<8x128xf32>
    %208 = vector.extract_strided_slice %54 {offsets = [0, 0], sizes = [8, 112], strides = [1, 1]} : vector<8x120xf32> to vector<8x112xf32>
    %209 = vector.extract_strided_slice %54 {offsets = [0, 8], sizes = [8, 112], strides = [1, 1]} : vector<8x120xf32> to vector<8x112xf32>
    %210 = vector.extract_strided_slice %64 {offsets = [0, 0], sizes = [8, 112], strides = [1, 1]} : vector<8x120xf32> to vector<8x112xf32>
    %211 = vector.extract_strided_slice %64 {offsets = [0, 8], sizes = [8, 112], strides = [1, 1]} : vector<8x120xf32> to vector<8x112xf32>
    %212 = tpu.concatenate %208, %209, %210, %211 in 1 : vector<8x112xf32>, vector<8x112xf32>, vector<8x112xf32>, vector<8x112xf32> -> vector<8x448xf32>
    %cst_56 = arith.constant dense<0.000000e+00> : vector<8x224xf32>
    %213 = tpu.matmul %212, %3, %cst_56 {dimension_numbers = #tpu.dot_dimension_numbers<[1], [0], [0], [1], [0, 0, 1, 1], [], []>} : vector<8x448xf32>, vector<448x224xf32>, vector<8x224xf32> -> vector<8x224xf32>
    %214 = vector.broadcast %4 : vector<1x224xf32> to vector<8x224xf32>
    %215 = arith.addf %213, %214 : vector<8x224xf32>
    %cst_57 = arith.constant 0.000000e+00 : f32
    %216 = vector.broadcast %cst_57 : f32 to vector<8x224xf32>
    %217 = arith.maximumf %215, %216 : vector<8x224xf32>
    %c896 = arith.constant 896 : index
    %c0_58 = arith.constant 0 : index
    %218 = vector.load %arg6[%c896, %c0_58] : memref<3136x128xf32, #tpu.memory_space<vmem>>, vector<224x128xf32>
    %cst_59 = arith.constant dense<0.000000e+00> : vector<8x128xf32>
    %219 = tpu.matmul %217, %218, %cst_59 {dimension_numbers = #tpu.dot_dimension_numbers<[1], [0], [0], [1], [0, 0, 1, 1], [], []>} : vector<8x224xf32>, vector<224x128xf32>, vector<8x128xf32> -> vector<8x128xf32>
    %220 = arith.addf %207, %219 : vector<8x128xf32>
    %221 = vector.extract_strided_slice %64 {offsets = [0, 0], sizes = [8, 112], strides = [1, 1]} : vector<8x120xf32> to vector<8x112xf32>
    %222 = vector.extract_strided_slice %64 {offsets = [0, 8], sizes = [8, 112], strides = [1, 1]} : vector<8x120xf32> to vector<8x112xf32>
    %223 = vector.extract_strided_slice %74 {offsets = [0, 0], sizes = [8, 112], strides = [1, 1]} : vector<8x120xf32> to vector<8x112xf32>
    %224 = vector.extract_strided_slice %74 {offsets = [0, 8], sizes = [8, 112], strides = [1, 1]} : vector<8x120xf32> to vector<8x112xf32>
    %225 = tpu.concatenate %221, %222, %223, %224 in 1 : vector<8x112xf32>, vector<8x112xf32>, vector<8x112xf32>, vector<8x112xf32> -> vector<8x448xf32>
    %cst_60 = arith.constant dense<0.000000e+00> : vector<8x224xf32>
    %226 = tpu.matmul %225, %3, %cst_60 {dimension_numbers = #tpu.dot_dimension_numbers<[1], [0], [0], [1], [0, 0, 1, 1], [], []>} : vector<8x448xf32>, vector<448x224xf32>, vector<8x224xf32> -> vector<8x224xf32>
    %227 = vector.broadcast %4 : vector<1x224xf32> to vector<8x224xf32>
    %228 = arith.addf %226, %227 : vector<8x224xf32>
    %cst_61 = arith.constant 0.000000e+00 : f32
    %229 = vector.broadcast %cst_61 : f32 to vector<8x224xf32>
    %230 = arith.maximumf %228, %229 : vector<8x224xf32>
    %c1120 = arith.constant 1120 : index
    %c0_62 = arith.constant 0 : index
    %231 = vector.load %arg6[%c1120, %c0_62] : memref<3136x128xf32, #tpu.memory_space<vmem>>, vector<224x128xf32>
    %cst_63 = arith.constant dense<0.000000e+00> : vector<8x128xf32>
    %232 = tpu.matmul %230, %231, %cst_63 {dimension_numbers = #tpu.dot_dimension_numbers<[1], [0], [0], [1], [0, 0, 1, 1], [], []>} : vector<8x224xf32>, vector<224x128xf32>, vector<8x128xf32> -> vector<8x128xf32>
    %233 = arith.addf %220, %232 : vector<8x128xf32>
    %234 = vector.extract_strided_slice %74 {offsets = [0, 0], sizes = [8, 112], strides = [1, 1]} : vector<8x120xf32> to vector<8x112xf32>
    %235 = vector.extract_strided_slice %74 {offsets = [0, 8], sizes = [8, 112], strides = [1, 1]} : vector<8x120xf32> to vector<8x112xf32>
    %236 = vector.extract_strided_slice %84 {offsets = [0, 0], sizes = [8, 112], strides = [1, 1]} : vector<8x120xf32> to vector<8x112xf32>
    %237 = vector.extract_strided_slice %84 {offsets = [0, 8], sizes = [8, 112], strides = [1, 1]} : vector<8x120xf32> to vector<8x112xf32>
    %238 = tpu.concatenate %234, %235, %236, %237 in 1 : vector<8x112xf32>, vector<8x112xf32>, vector<8x112xf32>, vector<8x112xf32> -> vector<8x448xf32>
    %cst_64 = arith.constant dense<0.000000e+00> : vector<8x224xf32>
    %239 = tpu.matmul %238, %3, %cst_64 {dimension_numbers = #tpu.dot_dimension_numbers<[1], [0], [0], [1], [0, 0, 1, 1], [], []>} : vector<8x448xf32>, vector<448x224xf32>, vector<8x224xf32> -> vector<8x224xf32>
    %240 = vector.broadcast %4 : vector<1x224xf32> to vector<8x224xf32>
    %241 = arith.addf %239, %240 : vector<8x224xf32>
    %cst_65 = arith.constant 0.000000e+00 : f32
    %242 = vector.broadcast %cst_65 : f32 to vector<8x224xf32>
    %243 = arith.maximumf %241, %242 : vector<8x224xf32>
    %c1344 = arith.constant 1344 : index
    %c0_66 = arith.constant 0 : index
    %244 = vector.load %arg6[%c1344, %c0_66] : memref<3136x128xf32, #tpu.memory_space<vmem>>, vector<224x128xf32>
    %cst_67 = arith.constant dense<0.000000e+00> : vector<8x128xf32>
    %245 = tpu.matmul %243, %244, %cst_67 {dimension_numbers = #tpu.dot_dimension_numbers<[1], [0], [0], [1], [0, 0, 1, 1], [], []>} : vector<8x224xf32>, vector<224x128xf32>, vector<8x128xf32> -> vector<8x128xf32>
    %246 = arith.addf %233, %245 : vector<8x128xf32>
    %247 = vector.extract_strided_slice %84 {offsets = [0, 0], sizes = [8, 112], strides = [1, 1]} : vector<8x120xf32> to vector<8x112xf32>
    %248 = vector.extract_strided_slice %84 {offsets = [0, 8], sizes = [8, 112], strides = [1, 1]} : vector<8x120xf32> to vector<8x112xf32>
    %249 = vector.extract_strided_slice %94 {offsets = [0, 0], sizes = [8, 112], strides = [1, 1]} : vector<8x120xf32> to vector<8x112xf32>
    %250 = vector.extract_strided_slice %94 {offsets = [0, 8], sizes = [8, 112], strides = [1, 1]} : vector<8x120xf32> to vector<8x112xf32>
    %251 = tpu.concatenate %247, %248, %249, %250 in 1 : vector<8x112xf32>, vector<8x112xf32>, vector<8x112xf32>, vector<8x112xf32> -> vector<8x448xf32>
    %cst_68 = arith.constant dense<0.000000e+00> : vector<8x224xf32>
    %252 = tpu.matmul %251, %3, %cst_68 {dimension_numbers = #tpu.dot_dimension_numbers<[1], [0], [0], [1], [0, 0, 1, 1], [], []>} : vector<8x448xf32>, vector<448x224xf32>, vector<8x224xf32> -> vector<8x224xf32>
    %253 = vector.broadcast %4 : vector<1x224xf32> to vector<8x224xf32>
    %254 = arith.addf %252, %253 : vector<8x224xf32>
    %cst_69 = arith.constant 0.000000e+00 : f32
    %255 = vector.broadcast %cst_69 : f32 to vector<8x224xf32>
    %256 = arith.maximumf %254, %255 : vector<8x224xf32>
    %c1568 = arith.constant 1568 : index
    %c0_70 = arith.constant 0 : index
    %257 = vector.load %arg6[%c1568, %c0_70] : memref<3136x128xf32, #tpu.memory_space<vmem>>, vector<224x128xf32>
    %cst_71 = arith.constant dense<0.000000e+00> : vector<8x128xf32>
    %258 = tpu.matmul %256, %257, %cst_71 {dimension_numbers = #tpu.dot_dimension_numbers<[1], [0], [0], [1], [0, 0, 1, 1], [], []>} : vector<8x224xf32>, vector<224x128xf32>, vector<8x128xf32> -> vector<8x128xf32>
    %259 = arith.addf %246, %258 : vector<8x128xf32>
    %260 = vector.extract_strided_slice %94 {offsets = [0, 0], sizes = [8, 112], strides = [1, 1]} : vector<8x120xf32> to vector<8x112xf32>
    %261 = vector.extract_strided_slice %94 {offsets = [0, 8], sizes = [8, 112], strides = [1, 1]} : vector<8x120xf32> to vector<8x112xf32>
    %262 = vector.extract_strided_slice %104 {offsets = [0, 0], sizes = [8, 112], strides = [1, 1]} : vector<8x120xf32> to vector<8x112xf32>
    %263 = vector.extract_strided_slice %104 {offsets = [0, 8], sizes = [8, 112], strides = [1, 1]} : vector<8x120xf32> to vector<8x112xf32>
    %264 = tpu.concatenate %260, %261, %262, %263 in 1 : vector<8x112xf32>, vector<8x112xf32>, vector<8x112xf32>, vector<8x112xf32> -> vector<8x448xf32>
    %cst_72 = arith.constant dense<0.000000e+00> : vector<8x224xf32>
    %265 = tpu.matmul %264, %3, %cst_72 {dimension_numbers = #tpu.dot_dimension_numbers<[1], [0], [0], [1], [0, 0, 1, 1], [], []>} : vector<8x448xf32>, vector<448x224xf32>, vector<8x224xf32> -> vector<8x224xf32>
    %266 = vector.broadcast %4 : vector<1x224xf32> to vector<8x224xf32>
    %267 = arith.addf %265, %266 : vector<8x224xf32>
    %cst_73 = arith.constant 0.000000e+00 : f32
    %268 = vector.broadcast %cst_73 : f32 to vector<8x224xf32>
    %269 = arith.maximumf %267, %268 : vector<8x224xf32>
    %c1792 = arith.constant 1792 : index
    %c0_74 = arith.constant 0 : index
    %270 = vector.load %arg6[%c1792, %c0_74] : memref<3136x128xf32, #tpu.memory_space<vmem>>, vector<224x128xf32>
    %cst_75 = arith.constant dense<0.000000e+00> : vector<8x128xf32>
    %271 = tpu.matmul %269, %270, %cst_75 {dimension_numbers = #tpu.dot_dimension_numbers<[1], [0], [0], [1], [0, 0, 1, 1], [], []>} : vector<8x224xf32>, vector<224x128xf32>, vector<8x128xf32> -> vector<8x128xf32>
    %272 = arith.addf %259, %271 : vector<8x128xf32>
    %273 = vector.extract_strided_slice %104 {offsets = [0, 0], sizes = [8, 112], strides = [1, 1]} : vector<8x120xf32> to vector<8x112xf32>
    %274 = vector.extract_strided_slice %104 {offsets = [0, 8], sizes = [8, 112], strides = [1, 1]} : vector<8x120xf32> to vector<8x112xf32>
    %275 = vector.extract_strided_slice %114 {offsets = [0, 0], sizes = [8, 112], strides = [1, 1]} : vector<8x120xf32> to vector<8x112xf32>
    %276 = vector.extract_strided_slice %114 {offsets = [0, 8], sizes = [8, 112], strides = [1, 1]} : vector<8x120xf32> to vector<8x112xf32>
    %277 = tpu.concatenate %273, %274, %275, %276 in 1 : vector<8x112xf32>, vector<8x112xf32>, vector<8x112xf32>, vector<8x112xf32> -> vector<8x448xf32>
    %cst_76 = arith.constant dense<0.000000e+00> : vector<8x224xf32>
    %278 = tpu.matmul %277, %3, %cst_76 {dimension_numbers = #tpu.dot_dimension_numbers<[1], [0], [0], [1], [0, 0, 1, 1], [], []>} : vector<8x448xf32>, vector<448x224xf32>, vector<8x224xf32> -> vector<8x224xf32>
    %279 = vector.broadcast %4 : vector<1x224xf32> to vector<8x224xf32>
    %280 = arith.addf %278, %279 : vector<8x224xf32>
    %cst_77 = arith.constant 0.000000e+00 : f32
    %281 = vector.broadcast %cst_77 : f32 to vector<8x224xf32>
    %282 = arith.maximumf %280, %281 : vector<8x224xf32>
    %c2016 = arith.constant 2016 : index
    %c0_78 = arith.constant 0 : index
    %283 = vector.load %arg6[%c2016, %c0_78] : memref<3136x128xf32, #tpu.memory_space<vmem>>, vector<224x128xf32>
    %cst_79 = arith.constant dense<0.000000e+00> : vector<8x128xf32>
    %284 = tpu.matmul %282, %283, %cst_79 {dimension_numbers = #tpu.dot_dimension_numbers<[1], [0], [0], [1], [0, 0, 1, 1], [], []>} : vector<8x224xf32>, vector<224x128xf32>, vector<8x128xf32> -> vector<8x128xf32>
    %285 = arith.addf %272, %284 : vector<8x128xf32>
    %286 = vector.extract_strided_slice %114 {offsets = [0, 0], sizes = [8, 112], strides = [1, 1]} : vector<8x120xf32> to vector<8x112xf32>
    %287 = vector.extract_strided_slice %114 {offsets = [0, 8], sizes = [8, 112], strides = [1, 1]} : vector<8x120xf32> to vector<8x112xf32>
    %288 = vector.extract_strided_slice %124 {offsets = [0, 0], sizes = [8, 112], strides = [1, 1]} : vector<8x120xf32> to vector<8x112xf32>
    %289 = vector.extract_strided_slice %124 {offsets = [0, 8], sizes = [8, 112], strides = [1, 1]} : vector<8x120xf32> to vector<8x112xf32>
    %290 = tpu.concatenate %286, %287, %288, %289 in 1 : vector<8x112xf32>, vector<8x112xf32>, vector<8x112xf32>, vector<8x112xf32> -> vector<8x448xf32>
    %cst_80 = arith.constant dense<0.000000e+00> : vector<8x224xf32>
    %291 = tpu.matmul %290, %3, %cst_80 {dimension_numbers = #tpu.dot_dimension_numbers<[1], [0], [0], [1], [0, 0, 1, 1], [], []>} : vector<8x448xf32>, vector<448x224xf32>, vector<8x224xf32> -> vector<8x224xf32>
    %292 = vector.broadcast %4 : vector<1x224xf32> to vector<8x224xf32>
    %293 = arith.addf %291, %292 : vector<8x224xf32>
    %cst_81 = arith.constant 0.000000e+00 : f32
    %294 = vector.broadcast %cst_81 : f32 to vector<8x224xf32>
    %295 = arith.maximumf %293, %294 : vector<8x224xf32>
    %c2240 = arith.constant 2240 : index
    %c0_82 = arith.constant 0 : index
    %296 = vector.load %arg6[%c2240, %c0_82] : memref<3136x128xf32, #tpu.memory_space<vmem>>, vector<224x128xf32>
    %cst_83 = arith.constant dense<0.000000e+00> : vector<8x128xf32>
    %297 = tpu.matmul %295, %296, %cst_83 {dimension_numbers = #tpu.dot_dimension_numbers<[1], [0], [0], [1], [0, 0, 1, 1], [], []>} : vector<8x224xf32>, vector<224x128xf32>, vector<8x128xf32> -> vector<8x128xf32>
    %298 = arith.addf %285, %297 : vector<8x128xf32>
    %299 = vector.extract_strided_slice %124 {offsets = [0, 0], sizes = [8, 112], strides = [1, 1]} : vector<8x120xf32> to vector<8x112xf32>
    %300 = vector.extract_strided_slice %124 {offsets = [0, 8], sizes = [8, 112], strides = [1, 1]} : vector<8x120xf32> to vector<8x112xf32>
    %301 = vector.extract_strided_slice %134 {offsets = [0, 0], sizes = [8, 112], strides = [1, 1]} : vector<8x120xf32> to vector<8x112xf32>
    %302 = vector.extract_strided_slice %134 {offsets = [0, 8], sizes = [8, 112], strides = [1, 1]} : vector<8x120xf32> to vector<8x112xf32>
    %303 = tpu.concatenate %299, %300, %301, %302 in 1 : vector<8x112xf32>, vector<8x112xf32>, vector<8x112xf32>, vector<8x112xf32> -> vector<8x448xf32>
    %cst_84 = arith.constant dense<0.000000e+00> : vector<8x224xf32>
    %304 = tpu.matmul %303, %3, %cst_84 {dimension_numbers = #tpu.dot_dimension_numbers<[1], [0], [0], [1], [0, 0, 1, 1], [], []>} : vector<8x448xf32>, vector<448x224xf32>, vector<8x224xf32> -> vector<8x224xf32>
    %305 = vector.broadcast %4 : vector<1x224xf32> to vector<8x224xf32>
    %306 = arith.addf %304, %305 : vector<8x224xf32>
    %cst_85 = arith.constant 0.000000e+00 : f32
    %307 = vector.broadcast %cst_85 : f32 to vector<8x224xf32>
    %308 = arith.maximumf %306, %307 : vector<8x224xf32>
    %c2464 = arith.constant 2464 : index
    %c0_86 = arith.constant 0 : index
    %309 = vector.load %arg6[%c2464, %c0_86] : memref<3136x128xf32, #tpu.memory_space<vmem>>, vector<224x128xf32>
    %cst_87 = arith.constant dense<0.000000e+00> : vector<8x128xf32>
    %310 = tpu.matmul %308, %309, %cst_87 {dimension_numbers = #tpu.dot_dimension_numbers<[1], [0], [0], [1], [0, 0, 1, 1], [], []>} : vector<8x224xf32>, vector<224x128xf32>, vector<8x128xf32> -> vector<8x128xf32>
    %311 = arith.addf %298, %310 : vector<8x128xf32>
    %312 = vector.extract_strided_slice %134 {offsets = [0, 0], sizes = [8, 112], strides = [1, 1]} : vector<8x120xf32> to vector<8x112xf32>
    %313 = vector.extract_strided_slice %134 {offsets = [0, 8], sizes = [8, 112], strides = [1, 1]} : vector<8x120xf32> to vector<8x112xf32>
    %314 = vector.extract_strided_slice %144 {offsets = [0, 0], sizes = [8, 112], strides = [1, 1]} : vector<8x120xf32> to vector<8x112xf32>
    %315 = vector.extract_strided_slice %144 {offsets = [0, 8], sizes = [8, 112], strides = [1, 1]} : vector<8x120xf32> to vector<8x112xf32>
    %316 = tpu.concatenate %312, %313, %314, %315 in 1 : vector<8x112xf32>, vector<8x112xf32>, vector<8x112xf32>, vector<8x112xf32> -> vector<8x448xf32>
    %cst_88 = arith.constant dense<0.000000e+00> : vector<8x224xf32>
    %317 = tpu.matmul %316, %3, %cst_88 {dimension_numbers = #tpu.dot_dimension_numbers<[1], [0], [0], [1], [0, 0, 1, 1], [], []>} : vector<8x448xf32>, vector<448x224xf32>, vector<8x224xf32> -> vector<8x224xf32>
    %318 = vector.broadcast %4 : vector<1x224xf32> to vector<8x224xf32>
    %319 = arith.addf %317, %318 : vector<8x224xf32>
    %cst_89 = arith.constant 0.000000e+00 : f32
    %320 = vector.broadcast %cst_89 : f32 to vector<8x224xf32>
    %321 = arith.maximumf %319, %320 : vector<8x224xf32>
    %c2688 = arith.constant 2688 : index
    %c0_90 = arith.constant 0 : index
    %322 = vector.load %arg6[%c2688, %c0_90] : memref<3136x128xf32, #tpu.memory_space<vmem>>, vector<224x128xf32>
    %cst_91 = arith.constant dense<0.000000e+00> : vector<8x128xf32>
    %323 = tpu.matmul %321, %322, %cst_91 {dimension_numbers = #tpu.dot_dimension_numbers<[1], [0], [0], [1], [0, 0, 1, 1], [], []>} : vector<8x224xf32>, vector<224x128xf32>, vector<8x128xf32> -> vector<8x128xf32>
    %324 = arith.addf %311, %323 : vector<8x128xf32>
    %325 = vector.extract_strided_slice %144 {offsets = [0, 0], sizes = [8, 112], strides = [1, 1]} : vector<8x120xf32> to vector<8x112xf32>
    %326 = vector.extract_strided_slice %144 {offsets = [0, 8], sizes = [8, 112], strides = [1, 1]} : vector<8x120xf32> to vector<8x112xf32>
    %327 = vector.extract_strided_slice %154 {offsets = [0, 0], sizes = [8, 112], strides = [1, 1]} : vector<8x120xf32> to vector<8x112xf32>
    %328 = vector.extract_strided_slice %154 {offsets = [0, 8], sizes = [8, 112], strides = [1, 1]} : vector<8x120xf32> to vector<8x112xf32>
    %329 = tpu.concatenate %325, %326, %327, %328 in 1 : vector<8x112xf32>, vector<8x112xf32>, vector<8x112xf32>, vector<8x112xf32> -> vector<8x448xf32>
    %cst_92 = arith.constant dense<0.000000e+00> : vector<8x224xf32>
    %330 = tpu.matmul %329, %3, %cst_92 {dimension_numbers = #tpu.dot_dimension_numbers<[1], [0], [0], [1], [0, 0, 1, 1], [], []>} : vector<8x448xf32>, vector<448x224xf32>, vector<8x224xf32> -> vector<8x224xf32>
    %331 = vector.broadcast %4 : vector<1x224xf32> to vector<8x224xf32>
    %332 = arith.addf %330, %331 : vector<8x224xf32>
    %cst_93 = arith.constant 0.000000e+00 : f32
    %333 = vector.broadcast %cst_93 : f32 to vector<8x224xf32>
    %334 = arith.maximumf %332, %333 : vector<8x224xf32>
    %c2912 = arith.constant 2912 : index
    %c0_94 = arith.constant 0 : index
    %335 = vector.load %arg6[%c2912, %c0_94] : memref<3136x128xf32, #tpu.memory_space<vmem>>, vector<224x128xf32>
    %cst_95 = arith.constant dense<0.000000e+00> : vector<8x128xf32>
    %336 = tpu.matmul %334, %335, %cst_95 {dimension_numbers = #tpu.dot_dimension_numbers<[1], [0], [0], [1], [0, 0, 1, 1], [], []>} : vector<8x224xf32>, vector<224x128xf32>, vector<8x128xf32> -> vector<8x128xf32>
    %337 = arith.addf %324, %336 : vector<8x128xf32>
    %c0_96 = arith.constant 0 : index
    %c0_97 = arith.constant 0 : index
    %338 = vector.load %arg7[%c0_96, %c0_97] : memref<1x128xf32, #tpu.memory_space<vmem>>, vector<1x128xf32>
    %339 = vector.broadcast %338 : vector<1x128xf32> to vector<8x128xf32>
    %340 = arith.addf %337, %339 : vector<8x128xf32>
    %c0_98 = arith.constant 0 : index
    %c0_99 = arith.constant 0 : index
    %341 = vector.load %arg8[%c0_98, %c0_99] : memref<8x128xf32, #tpu.memory_space<vmem>>, vector<8x128xf32>
    tpu.vector_store %arg8[%c0_98, %c0_99], %340 {strides = array<i32>} : memref<8x128xf32, #tpu.memory_space<vmem>>, vector<8x128xf32>,
    return
  }
  func.func @transform_0(%arg0: i32) -> (i32, i32) {
    %c0_i32 = arith.constant 0 : i32
    %c0_i32_0 = arith.constant 0 : i32
    return %arg0, %c0_i32 : i32, i32
  }
  func.func @transform_1(%arg0: i32) -> (i32, i32) {
    %c0_i32 = arith.constant 0 : i32
    %c0_i32_0 = arith.constant 0 : i32
    %c0_i32_1 = arith.constant 0 : i32
    return %c0_i32, %c0_i32_0 : i32, i32
  }
  func.func @transform_2(%arg0: i32) -> (i32, i32) {
    %c0_i32 = arith.constant 0 : i32
    %c0_i32_0 = arith.constant 0 : i32
    %c0_i32_1 = arith.constant 0 : i32
    return %c0_i32, %c0_i32_0 : i32, i32
  }
  func.func @transform_3(%arg0: i32) -> (i32, i32) {
    %c0_i32 = arith.constant 0 : i32
    %c0_i32_0 = arith.constant 0 : i32
    %c0_i32_1 = arith.constant 0 : i32
    return %c0_i32, %c0_i32_0 : i32, i32
  }
  func.func @transform_4(%arg0: i32) -> (i32, i32) {
    %c0_i32 = arith.constant 0 : i32
    %c0_i32_0 = arith.constant 0 : i32
    %c0_i32_1 = arith.constant 0 : i32
    return %c0_i32, %c0_i32_0 : i32, i32
  }
  func.func @transform_5(%arg0: i32) -> (i32, i32) {
    %c0_i32 = arith.constant 0 : i32
    %c0_i32_0 = arith.constant 0 : i32
    %c0_i32_1 = arith.constant 0 : i32
    return %c0_i32, %c0_i32_0 : i32, i32
  }
  func.func @transform_6(%arg0: i32) -> (i32, i32) {
    %c0_i32 = arith.constant 0 : i32
    %c0_i32_0 = arith.constant 0 : i32
    %c0_i32_1 = arith.constant 0 : i32
    return %c0_i32, %c0_i32_0 : i32, i32
  }
  func.func @transform_7(%arg0: i32) -> (i32, i32) {
    %c0_i32 = arith.constant 0 : i32
    %c0_i32_0 = arith.constant 0 : i32
    return %arg0, %c0_i32 : i32, i32
  }
}

</mosaic_0001>

<llo_original>
// kernel: tpu_custom_call.1
$region0: #{tpu_custom_call.1}
  #allocation0 [shape = 'u32[]', space=smem, size = 0x4, offset = 0x4, fixed_abs, tag = 'smem constant byte address 0x4 - core index']
  #allocation1 [shape = 'u32[144,128]{1,0:T(1,128)}', space=vmem, size = 0x12000, scoped, tag = 'internal scratch']
  %s0 = inlined_call_operand.hbm [shape: f32[8,1024], index: 0, kind: input, shape index: {}]
  %s1 = inlined_call_operand.hbm [shape: f32[240,120], index: 1, kind: input, shape index: {}]
  %s2 = inlined_call_operand.hbm [shape: f32[1,120], index: 2, kind: input, shape index: {}]
  %s3 = inlined_call_operand.hbm [shape: f32[448,224], index: 3, kind: input, shape index: {}]
  %s4 = inlined_call_operand.hbm [shape: f32[1,224], index: 4, kind: input, shape index: {}]
  %s5 = inlined_call_operand.hbm [shape: f32[3136,128], index: 5, kind: input, shape index: {}]
  %s6 = inlined_call_operand.hbm [shape: f32[1,128], index: 6, kind: input, shape index: {}]
  %s7 = inlined_call_operand.hbm [shape: f32[8,128], index: 7, kind: output, shape index: {}]
  %s8 = sld [smem:[#allocation0]]
  $region66: #{tpu_custom_call.1} parent=0
    _
  %s10 = ssub.s32 1, %s8
  %s11 = scalar_select 0, %s10, %s8
  $region1: #{tpu_custom_call.1} parent=0
    #allocation2 [shape = 'u8[32768]{0}', space=vmem, size = 0x8000, scoped, tag = 'input window, operand 0, single buffered']
    #allocation3 [shape = 's32[1]{0}', space=sflag, size = 0x4, scoped, tag = 'scoped memory for tpu_custom_call.1']
    #allocation4 [shape = 's32[1]{0}', space=sflag, size = 0x4, scoped, tag = 'scoped memory for tpu_custom_call.1']
    #allocation5 [shape = 'u8[122880]{0}', space=vmem, size = 0x1e000, scoped, tag = 'input window, operand 1, single buffered']
    #allocation6 [shape = 's32[1]{0}', space=sflag, size = 0x4, scoped, tag = 'scoped memory for tpu_custom_call.1']
    #allocation7 [shape = 'u8[512]{0}', space=vmem, size = 0x400, scoped, tag = 'input window, operand 2, single buffered']
    #allocation8 [shape = 'u8[458752]{0}', space=vmem, size = 0x70000, scoped, tag = 'input window, operand 3, single buffered']
    #allocation9 [shape = 's32[1]{0}', space=sflag, size = 0x4, scoped, tag = 'scoped memory for tpu_custom_call.1']
    #allocation10 [shape = 'u8[1024]{0}', space=vmem, size = 0x400, scoped, tag = 'input window, operand 4, single buffered']
    #allocation11 [shape = 'u8[1605632]{0}', space=vmem, size = 0x188000, scoped, tag = 'input window, operand 5, single buffered']
    #allocation12 [shape = 's32[1]{0}', space=sflag, size = 0x4, scoped, tag = 'scoped memory for tpu_custom_call.1']
    #allocation13 [shape = 'u8[512]{0}', space=vmem, size = 0x400, scoped, tag = 'input window, operand 6, single buffered']
    #allocation14 [shape = 'u8[4096]{0}', space=vmem, size = 0x1000, scoped, tag = 'output window, operand 0, single buffered']
    %12 = vsyncpa [#allocation3], 0
    %13 = vsyncpa [#allocation6], 0
    %14 = vsyncpa [#allocation9], 0
    %15 = vsyncpa [#allocation12], 0
    %16 = vsyncpa [#allocation4], 0
    // Predicated region
    $region2: #{tpu_custom_call.1} parent=1 // pred_check
      _
    $region3: #{tpu_custom_call.1} parent=1 // pred_check_branch
      %18 = sbr.rel (0) target = $region5
    $region4: #{tpu_custom_call.1} parent=1 // pred_region
      %s20 = ssub.s32 1024, 1024
      %21 = vsyncadd [#allocation3], %s20
      %s23 = sshll.u32 [#allocation2], 4
      %s24 = int_to_ptr.vmem [resolvable:$true] %s23
      %26 = dma.hbm_to_vmem [thread:$0]  %s0, 1024, %s24, [#allocation3]
    $region5: #{tpu_custom_call.1} parent=1 // pred_fallthru
      _
    // Predicated region
    $region6: #{tpu_custom_call.1} parent=1 // pred_check
      _
    $region7: #{tpu_custom_call.1} parent=1 // pred_check_branch
      %28 = sbr.rel (0) target = $region9
    $region8: #{tpu_custom_call.1} parent=1 // pred_region
      %s30 = ssub.s32 3840, 3840
      %31 = vsyncadd [#allocation6], %s30
      %s32 = sshll.u32 [#allocation5], 4
      %s33 = int_to_ptr.vmem [resolvable:$true] %s32
      %38 = dma.hbm_to_vmem [thread:$0]  %s1, 3840, %s33, [#allocation6], 128, 128, 8
    $region9: #{tpu_custom_call.1} parent=1 // pred_fallthru
      _
    // Predicated region
    $region10: #{tpu_custom_call.1} parent=1 // pred_check
      _
    $region11: #{tpu_custom_call.1} parent=1 // pred_check_branch
      %40 = sbr.rel (0) target = $region13
    $region12: #{tpu_custom_call.1} parent=1 // pred_region
      %s42 = ssub.s32 16, 16
      %43 = vsyncadd [#allocation6], %s42
      %s45 = sshll.u32 [#allocation7], 4
      %s46 = int_to_ptr.vmem [resolvable:$true] %s45
      %48 = dma.hbm_to_vmem [thread:$0]  %s2, 16, %s46, [#allocation6]
    $region13: #{tpu_custom_call.1} parent=1 // pred_fallthru
      _
    // Predicated region
    $region14: #{tpu_custom_call.1} parent=1 // pred_check
      _
    $region15: #{tpu_custom_call.1} parent=1 // pred_check_branch
      %50 = sbr.rel (0) target = $region17
    $region16: #{tpu_custom_call.1} parent=1 // pred_region
      %s52 = ssub.s32 14336, 14336
      %53 = vsyncadd [#allocation9], %s52
      %s54 = sshll.u32 [#allocation8], 4
      %s55 = int_to_ptr.vmem [resolvable:$true] %s54
      %60 = dma.hbm_to_vmem [thread:$0]  %s3, 14336, %s55, [#allocation9], 256, 256, 16
    $region17: #{tpu_custom_call.1} parent=1 // pred_fallthru
      _
    // Predicated region
    $region18: #{tpu_custom_call.1} parent=1 // pred_check
      _
    $region19: #{tpu_custom_call.1} parent=1 // pred_check_branch
      %62 = sbr.rel (0) target = $region21
    $region20: #{tpu_custom_call.1} parent=1 // pred_region
      %s64 = ssub.s32 32, 32
      %65 = vsyncadd [#allocation9], %s64
      %s67 = sshll.u32 [#allocation10], 4
      %s68 = int_to_ptr.vmem [resolvable:$true] %s67
      %70 = dma.hbm_to_vmem [thread:$0]  %s4, 32, %s68, [#allocation9]
    $region21: #{tpu_custom_call.1} parent=1 // pred_fallthru
      _
    // Predicated region
    $region22: #{tpu_custom_call.1} parent=1 // pred_check
      _
    $region23: #{tpu_custom_call.1} parent=1 // pred_check_branch
      %72 = sbr.rel (0) target = $region25
    $region24: #{tpu_custom_call.1} parent=1 // pred_region
      %s74 = ssub.s32 50176, 50176
      %75 = vsyncadd [#allocation12], %s74
      %s76 = sshll.u32 [#allocation11], 4
      %s77 = int_to_ptr.vmem [resolvable:$true] %s76
      %82 = dma.hbm_to_vmem [thread:$0]  %s5, 50176, %s77, [#allocation12], 128, 128, 8
    $region25: #{tpu_custom_call.1} parent=1 // pred_fallthru
      _
    // Predicated region
    $region26: #{tpu_custom_call.1} parent=1 // pred_check
      _
    $region27: #{tpu_custom_call.1} parent=1 // pred_check_branch
      %84 = sbr.rel (0) target = $region29
    $region28: #{tpu_custom_call.1} parent=1 // pred_region
      %s86 = ssub.s32 16, 16
      %87 = vsyncadd [#allocation12], %s86
      %s89 = sshll.u32 [#allocation13], 4
      %s90 = int_to_ptr.vmem [resolvable:$true] %s89
      %92 = dma.hbm_to_vmem [thread:$0]  %s6, 16, %s90, [#allocation12]
    $region29: #{tpu_custom_call.1} parent=1 // pred_fallthru
      _
    // Predicated region
    $region30: #{tpu_custom_call.1} parent=1 // pred_check
      _
    $region31: #{tpu_custom_call.1} parent=1 // pred_check_branch
      %94 = sbr.rel (0) target = $region33
    $region32: #{tpu_custom_call.1} parent=1 // pred_region
      %95 = dma.done [#allocation3], 1024
    $region33: #{tpu_custom_call.1} parent=1 // pred_fallthru
      _
    // Predicated region
    $region34: #{tpu_custom_call.1} parent=1 // pred_check
      _
    $region35: #{tpu_custom_call.1} parent=1 // pred_check_branch
      %97 = sbr.rel (0) target = $region37
    $region36: #{tpu_custom_call.1} parent=1 // pred_region
      %98 = dma.done [#allocation6], 3840
    $region37: #{tpu_custom_call.1} parent=1 // pred_fallthru
      _
    // Predicated region
    $region38: #{tpu_custom_call.1} parent=1 // pred_check
      _
    $region39: #{tpu_custom_call.1} parent=1 // pred_check_branch
      %100 = sbr.rel (0) target = $region41
    $region40: #{tpu_custom_call.1} parent=1 // pred_region
      %101 = dma.done [#allocation6], 16
    $region41: #{tpu_custom_call.1} parent=1 // pred_fallthru
      _
    // Predicated region
    $region42: #{tpu_custom_call.1} parent=1 // pred_check
      _
    $region43: #{tpu_custom_call.1} parent=1 // pred_check_branch
      %103 = sbr.rel (0) target = $region45
    $region44: #{tpu_custom_call.1} parent=1 // pred_region
      %104 = dma.done [#allocation9], 14336
    $region45: #{tpu_custom_call.1} parent=1 // pred_fallthru
      _
    // Predicated region
    $region46: #{tpu_custom_call.1} parent=1 // pred_check
      _
    $region47: #{tpu_custom_call.1} parent=1 // pred_check_branch
      %106 = sbr.rel (0) target = $region49
    $region48: #{tpu_custom_call.1} parent=1 // pred_region
      %107 = dma.done [#allocation9], 32
    $region49: #{tpu_custom_call.1} parent=1 // pred_fallthru
      _
    // Predicated region
    $region50: #{tpu_custom_call.1} parent=1 // pred_check
      _
    $region51: #{tpu_custom_call.1} parent=1 // pred_check_branch
      %109 = sbr.rel (0) target = $region53
    $region52: #{tpu_custom_call.1} parent=1 // pred_region
      %110 = dma.done [#allocation12], 50176
    $region53: #{tpu_custom_call.1} parent=1 // pred_fallthru
      _
    // Predicated region
    $region54: #{tpu_custom_call.1} parent=1 // pred_check
      _
    $region55: #{tpu_custom_call.1} parent=1 // pred_check_branch
      %112 = sbr.rel (0) target = $region57
    $region56: #{tpu_custom_call.1} parent=1 // pred_region
      %113 = dma.done [#allocation12], 16
    $region57: #{tpu_custom_call.1} parent=1 // pred_fallthru
      _
    %v114 = vld [vmem:[#allocation2] sm:$0xff]
    %v115 = vld [vmem:[#allocation2 + $0x8] sm:$0xff]
    %v116 = vld [vmem:[#allocation2 + $0x10] sm:$0xff]
    %v117 = vld [vmem:[#allocation2 + $0x18] sm:$0xff]
    %v118 = vld [vmem:[#allocation2 + $0x20] sm:$0xff]
    %v119 = vld [vmem:[#allocation2 + $0x28] sm:$0xff]
    %v120 = vld [vmem:[#allocation2 + $0x30] sm:$0xff]
    %v121 = vld [vmem:[#allocation2 + $0x38] sm:$0xff]
    %v122 = vld [vmem:[#allocation5] sm:$0xff]
    %v123 = vld [vmem:[#allocation5 + $0x8] sm:$0xff]
    %v124 = vld [vmem:[#allocation5 + $0x10] sm:$0xff]
    %v125 = vld [vmem:[#allocation5 + $0x18] sm:$0xff]
    %v126 = vld [vmem:[#allocation5 + $0x20] sm:$0xff]
    %v127 = vld [vmem:[#allocation5 + $0x28] sm:$0xff]
    %v128 = vld [vmem:[#allocation5 + $0x30] sm:$0xff]
    %v129 = vld [vmem:[#allocation5 + $0x38] sm:$0xff]
    %v130 = vld [vmem:[#allocation5 + $0x40] sm:$0xff]
    %v131 = vld [vmem:[#allocation5 + $0x48] sm:$0xff]
    %v132 = vld [vmem:[#allocation5 + $0x50] sm:$0xff]
    %v133 = vld [vmem:[#allocation5 + $0x58] sm:$0xff]
    %v134 = vld [vmem:[#allocation5 + $0x60] sm:$0xff]
    %v135 = vld [vmem:[#allocation5 + $0x68] sm:$0xff]
    %v136 = vld [vmem:[#allocation5 + $0x70] sm:$0xff]
    %v137 = vld [vmem:[#allocation5 + $0x78] sm:$0xff]
    %v138 = vld [vmem:[#allocation5 + $0x80] sm:$0xff]
    %v139 = vld [vmem:[#allocation5 + $0x88] sm:$0xff]
    %v140 = vld [vmem:[#allocation5 + $0x90] sm:$0xff]
    %v141 = vld [vmem:[#allocation5 + $0x98] sm:$0xff]
    %v142 = vld [vmem:[#allocation5 + $0xa0] sm:$0xff]
    %v143 = vld [vmem:[#allocation5 + $0xa8] sm:$0xff]
    %v144 = vld [vmem:[#allocation5 + $0xb0] sm:$0xff]
    %v145 = vld [vmem:[#allocation5 + $0xb8] sm:$0xff]
    %v146 = vld [vmem:[#allocation5 + $0xc0] sm:$0xff]
    %v147 = vld [vmem:[#allocation5 + $0xc8] sm:$0xff]
    %v148 = vld [vmem:[#allocation5 + $0xd0] sm:$0xff]
    %v149 = vld [vmem:[#allocation5 + $0xd8] sm:$0xff]
    %v150 = vld [vmem:[#allocation5 + $0xe0] sm:$0xff]
    %v151 = vld [vmem:[#allocation5 + $0xe8] sm:$0xff]
    %v152 = vld [vmem:[#allocation7] sm:$0x1]
    %v153 = vld [vmem:[#allocation8] sm:$0xff]
    %v154 = vld [vmem:[#allocation8 + $0x8] sm:$0xff]
    %v155 = vld [vmem:[#allocation8 + $0x10] sm:$0xff]
    %v156 = vld [vmem:[#allocation8 + $0x18] sm:$0xff]
    %v157 = vld [vmem:[#allocation8 + $0x20] sm:$0xff]
    %v158 = vld [vmem:[#allocation8 + $0x28] sm:$0xff]
    %v159 = vld [vmem:[#allocation8 + $0x30] sm:$0xff]
    %v160 = vld [vmem:[#allocation8 + $0x38] sm:$0xff]
    %v161 = vld [vmem:[#allocation8 + $0x40] sm:$0xff]
    %v162 = vld [vmem:[#allocation8 + $0x48] sm:$0xff]
    %v163 = vld [vmem:[#allocation8 + $0x50] sm:$0xff]
    %v164 = vld [vmem:[#allocation8 + $0x58] sm:$0xff]
    %v165 = vld [vmem:[#allocation8 + $0x60] sm:$0xff]
    %v166 = vld [vmem:[#allocation8 + $0x68] sm:$0xff]
    %v167 = vld [vmem:[#allocation8 + $0x70] sm:$0xff]
    %v168 = vld [vmem:[#allocation8 + $0x78] sm:$0xff]
    %v169 = vld [vmem:[#allocation8 + $0x80] sm:$0xff]
    %v170 = vld [vmem:[#allocation8 + $0x88] sm:$0xff]
    %v171 = vld [vmem:[#allocation8 + $0x90] sm:$0xff]
    %v172 = vld [vmem:[#allocation8 + $0x98] sm:$0xff]
    %v173 = vld [vmem:[#allocation8 + $0xa0] sm:$0xff]
    %v174 = vld [vmem:[#allocation8 + $0xa8] sm:$0xff]
    %v175 = vld [vmem:[#allocation8 + $0xb0] sm:$0xff]
    %v176 = vld [vmem:[#allocation8 + $0xb8] sm:$0xff]
    %v177 = vld [vmem:[#allocation8 + $0xc0] sm:$0xff]
    %v178 = vld [vmem:[#allocation8 + $0xc8] sm:$0xff]
    %v179 = vld [vmem:[#allocation8 + $0xd0] sm:$0xff]
    %v180 = vld [vmem:[#allocation8 + $0xd8] sm:$0xff]
    %v181 = vld [vmem:[#allocation8 + $0xe0] sm:$0xff]
    %v182 = vld [vmem:[#allocation8 + $0xe8] sm:$0xff]
    %v183 = vld [vmem:[#allocation8 + $0xf0] sm:$0xff]
    %v184 = vld [vmem:[#allocation8 + $0xf8] sm:$0xff]
    %v185 = vld [vmem:[#allocation8 + $0x100] sm:$0xff]
    %v186 = vld [vmem:[#allocation8 + $0x108] sm:$0xff]
    %v187 = vld [vmem:[#allocation8 + $0x110] sm:$0xff]
    %v188 = vld [vmem:[#allocation8 + $0x118] sm:$0xff]
    %v189 = vld [vmem:[#allocation8 + $0x120] sm:$0xff]
    %v190 = vld [vmem:[#allocation8 + $0x128] sm:$0xff]
    %v191 = vld [vmem:[#allocation8 + $0x130] sm:$0xff]
    %v192 = vld [vmem:[#allocation8 + $0x138] sm:$0xff]
    %v193 = vld [vmem:[#allocation8 + $0x140] sm:$0xff]
    %v194 = vld [vmem:[#allocation8 + $0x148] sm:$0xff]
    %v195 = vld [vmem:[#allocation8 + $0x150] sm:$0xff]
    %v196 = vld [vmem:[#allocation8 + $0x158] sm:$0xff]
    %v197 = vld [vmem:[#allocation8 + $0x160] sm:$0xff]
    %v198 = vld [vmem:[#allocation8 + $0x168] sm:$0xff]
    %v199 = vld [vmem:[#allocation8 + $0x170] sm:$0xff]
    %v200 = vld [vmem:[#allocation8 + $0x178] sm:$0xff]
    %v201 = vld [vmem:[#allocation8 + $0x180] sm:$0xff]
    %v202 = vld [vmem:[#allocation8 + $0x188] sm:$0xff]
    %v203 = vld [vmem:[#allocation8 + $0x190] sm:$0xff]
    %v204 = vld [vmem:[#allocation8 + $0x198] sm:$0xff]
    %v205 = vld [vmem:[#allocation8 + $0x1a0] sm:$0xff]
    %v206 = vld [vmem:[#allocation8 + $0x1a8] sm:$0xff]
    %v207 = vld [vmem:[#allocation8 + $0x1b0] sm:$0xff]
    %v208 = vld [vmem:[#allocation8 + $0x1b8] sm:$0xff]
    %v209 = vld [vmem:[#allocation8 + $0x1c0] sm:$0xff]
    %v210 = vld [vmem:[#allocation8 + $0x1c8] sm:$0xff]
    %v211 = vld [vmem:[#allocation8 + $0x1d0] sm:$0xff]
    %v212 = vld [vmem:[#allocation8 + $0x1d8] sm:$0xff]
    %v213 = vld [vmem:[#allocation8 + $0x1e0] sm:$0xff]
    %v214 = vld [vmem:[#allocation8 + $0x1e8] sm:$0xff]
    %v215 = vld [vmem:[#allocation8 + $0x1f0] sm:$0xff]
    %v216 = vld [vmem:[#allocation8 + $0x1f8] sm:$0xff]
    %v217 = vld [vmem:[#allocation8 + $0x200] sm:$0xff]
    %v218 = vld [vmem:[#allocation8 + $0x208] sm:$0xff]
    %v219 = vld [vmem:[#allocation8 + $0x210] sm:$0xff]
    %v220 = vld [vmem:[#allocation8 + $0x218] sm:$0xff]
    %v221 = vld [vmem:[#allocation8 + $0x220] sm:$0xff]
    %v222 = vld [vmem:[#allocation8 + $0x228] sm:$0xff]
    %v223 = vld [vmem:[#allocation8 + $0x230] sm:$0xff]
    %v224 = vld [vmem:[#allocation8 + $0x238] sm:$0xff]
    %v225 = vld [vmem:[#allocation8 + $0x240] sm:$0xff]
    %v226 = vld [vmem:[#allocation8 + $0x248] sm:$0xff]
    %v227 = vld [vmem:[#allocation8 + $0x250] sm:$0xff]
    %v228 = vld [vmem:[#allocation8 + $0x258] sm:$0xff]
    %v229 = vld [vmem:[#allocation8 + $0x260] sm:$0xff]
    %v230 = vld [vmem:[#allocation8 + $0x268] sm:$0xff]
    %v231 = vld [vmem:[#allocation8 + $0x270] sm:$0xff]
    %v232 = vld [vmem:[#allocation8 + $0x278] sm:$0xff]
    %v233 = vld [vmem:[#allocation8 + $0x280] sm:$0xff]
    %v234 = vld [vmem:[#allocation8 + $0x288] sm:$0xff]
    %v235 = vld [vmem:[#allocation8 + $0x290] sm:$0xff]
    %v236 = vld [vmem:[#allocation8 + $0x298] sm:$0xff]
    %v237 = vld [vmem:[#allocation8 + $0x2a0] sm:$0xff]
    %v238 = vld [vmem:[#allocation8 + $0x2a8] sm:$0xff]
    %v239 = vld [vmem:[#allocation8 + $0x2b0] sm:$0xff]
    %v240 = vld [vmem:[#allocation8 + $0x2b8] sm:$0xff]
    %v241 = vld [vmem:[#allocation8 + $0x2c0] sm:$0xff]
    %v242 = vld [vmem:[#allocation8 + $0x2c8] sm:$0xff]
    %v243 = vld [vmem:[#allocation8 + $0x2d0] sm:$0xff]
    %v244 = vld [vmem:[#allocation8 + $0x2d8] sm:$0xff]
    %v245 = vld [vmem:[#allocation8 + $0x2e0] sm:$0xff]
    %v246 = vld [vmem:[#allocation8 + $0x2e8] sm:$0xff]
    %v247 = vld [vmem:[#allocation8 + $0x2f0] sm:$0xff]
    %v248 = vld [vmem:[#allocation8 + $0x2f8] sm:$0xff]
    %v249 = vld [vmem:[#allocation8 + $0x300] sm:$0xff]
    %v250 = vld [vmem:[#allocation8 + $0x308] sm:$0xff]
    %v251 = vld [vmem:[#allocation8 + $0x310] sm:$0xff]
    %v252 = vld [vmem:[#allocation8 + $0x318] sm:$0xff]
    %v253 = vld [vmem:[#allocation8 + $0x320] sm:$0xff]
    %v254 = vld [vmem:[#allocation8 + $0x328] sm:$0xff]
    %v255 = vld [vmem:[#allocation8 + $0x330] sm:$0xff]
    %v256 = vld [vmem:[#allocation8 + $0x338] sm:$0xff]
    %v257 = vld [vmem:[#allocation8 + $0x340] sm:$0xff]
    %v258 = vld [vmem:[#allocation8 + $0x348] sm:$0xff]
    %v259 = vld [vmem:[#allocation8 + $0x350] sm:$0xff]
    %v260 = vld [vmem:[#allocation8 + $0x358] sm:$0xff]
    %v261 = vld [vmem:[#allocation8 + $0x360] sm:$0xff]
    %v262 = vld [vmem:[#allocation8 + $0x368] sm:$0xff]
    %v263 = vld [vmem:[#allocation8 + $0x370] sm:$0xff]
    %v264 = vld [vmem:[#allocation8 + $0x378] sm:$0xff]
    %v265 = vld [vmem:[#allocation10] sm:$0x3]
    %267 = vrot.lane.b32.xlu0 %v114, 56
    %v268 = vpop.permute.xlu0 %267
    %270 = vrot.lane.b32.xlu0 %v114, 112
    %v271 = vpop.permute.xlu0 %270
    %vm273 = vcmask 490496
    %v274 = vsel %vm273, %v114, %v268
    %vm275 = vcmask 982016
    %v276 = vsel %vm275, %v274, %v268
    %vm277 = vcmask 424960
    %v278 = vsel %vm277, %v268, %v271
    %v280 = vlaneseq
    %v281 = vshrl.u32 %v280, 7
    %v282 = vsub.s32 0, %v281
    %v283 = vrot.slane %v152, %v282
    %vm285 = vcmask 916480
    %v287 = vsel %vm285, %v278, 0
    %289 = vmatprep.subr.mxu0 0.0
    %290 = vmatpush1.msra.mxu0 %v137
    %291 = vmatprep.subr.mxu0 0.0
    %292 = vmatpush1.msra.mxu0 %v136
    %293 = vmatprep.subr.mxu0 0.0
    %294 = vmatpush1.msra.mxu0 %v135
    %295 = vmatprep.subr.mxu0 0.0
    %296 = vmatpush1.msra.mxu0 %v134
    %297 = vmatprep.subr.mxu0 0.0
    %298 = vmatpush1.msra.mxu0 %v133
    %299 = vmatprep.subr.mxu0 0.0
    %300 = vmatpush1.msra.mxu0 %v132
    %301 = vmatprep.subr.mxu0 0.0
    %302 = vmatpush1.msra.mxu0 %v131
    %303 = vmatprep.subr.mxu0 0.0
    %304 = vmatpush1.msra.mxu0 %v130
    %305 = vmatprep.subr.mxu0 0.0
    %306 = vmatpush1.msra.mxu0 %v129
    %307 = vmatprep.subr.mxu0 0.0
    %308 = vmatpush1.msra.mxu0 %v128
    %309 = vmatprep.subr.mxu0 0.0
    %310 = vmatpush1.msra.mxu0 %v127
    %311 = vmatprep.subr.mxu0 0.0
    %312 = vmatpush1.msra.mxu0 %v126
    %313 = vmatprep.subr.mxu0 0.0
    %314 = vmatpush1.msra.mxu0 %v125
    %315 = vmatprep.subr.mxu0 0.0
    %316 = vmatpush1.msra.mxu0 %v124
    %317 = vmatprep.subr.mxu0 0.0
    %318 = vmatpush1.msra.mxu0 %v123
    %319 = vmatprep.subr.mxu0 0.0
    %320 = vmatpush1.msra.mxu0 %v122
    %321 = vmatprep.subr.mxu0 0.0
    %322 = vmatpush2.msra.mxu0 0.0
    %323 = vmatprep.subr.mxu0 0.0
    %324 = vmatpush2.msra.mxu0 0.0
    %325 = vmatprep.subr.mxu0 0.0
    %326 = vmatpush2.msra.mxu0 %v151
    %327 = vmatprep.subr.mxu0 0.0
    %328 = vmatpush2.msra.mxu0 %v150
    %329 = vmatprep.subr.mxu0 0.0
    %330 = vmatpush2.msra.mxu0 %v149
    %331 = vmatprep.subr.mxu0 0.0
    %332 = vmatpush2.msra.mxu0 %v148
    %333 = vmatprep.subr.mxu0 0.0
    %334 = vmatpush2.msra.mxu0 %v147
    %335 = vmatprep.subr.mxu0 0.0
    %336 = vmatpush2.msra.mxu0 %v146
    %337 = vmatprep.subr.mxu0 0.0
    %338 = vmatpush2.msra.mxu0 %v145
    %339 = vmatprep.subr.mxu0 0.0
    %340 = vmatpush2.msra.mxu0 %v144
    %341 = vmatprep.subr.mxu0 0.0
    %342 = vmatpush2.msra.mxu0 %v143
    %343 = vmatprep.subr.mxu0 0.0
    %344 = vmatpush2.msra.mxu0 %v142
    %345 = vmatprep.subr.mxu0 0.0
    %346 = vmatpush2.msra.mxu0 %v141
    %347 = vmatprep.subr.mxu0 0.0
    %348 = vmatpush2.msra.mxu0 %v140
    %349 = vmatprep.subr.mxu0 0.0
    %350 = vmatpush2.msra.mxu0 %v139
    %351 = vmatprep.subr.mxu0 0.0
    %352 = vmatpush2.msra.mxu0 %v138
    %353 = vmatprep.mubr.f32.mxu0 %v287
    %354 = vmatmul.mubr.f32.gmra.mxu0 %v276
    %v355 = vpop.f32.mrf.mxu0
    %v356 = vadd.f32 %v283, %v355
    %v357 = vpop.f32.mrf.mxu0
    %358 = vdwg.mxu0
    %v359 = vmax.f32 %v356, 0.0
    %360 = vrot.lane.b32.xlu0 %v114, 64
    %v361 = vpop.permute.xlu0 %360
    %363 = vrot.lane.b32.xlu0 %v114, 120
    %v364 = vpop.permute.xlu0 %363
    %367 = vrot.lane.b32.xlu0 %v115, 120
    %v368 = vpop.permute.xlu0 %367
    %370 = vrot.lane.b32.xlu0 %v115, 48
    %v371 = vpop.permute.xlu0 %370
    %v373 = vsel %vm273, %v361, %v364
    %v374 = vsel %vm275, %v373, %v368
    %v375 = vsel %vm277, %v368, %v371
    %v377 = vsel %vm285, %v375, 0
    %379 = vmatprep.subr.mxu0 0.0
    %380 = vmatpush1.msra.mxu0 %v137
    %381 = vmatprep.subr.mxu0 0.0
    %382 = vmatpush1.msra.mxu0 %v136
    %383 = vmatprep.subr.mxu0 0.0
    %384 = vmatpush1.msra.mxu0 %v135
    %385 = vmatprep.subr.mxu0 0.0
    %386 = vmatpush1.msra.mxu0 %v134
    %387 = vmatprep.subr.mxu0 0.0
    %388 = vmatpush1.msra.mxu0 %v133
    %389 = vmatprep.subr.mxu0 0.0
    %390 = vmatpush1.msra.mxu0 %v132
    %391 = vmatprep.subr.mxu0 0.0
    %392 = vmatpush1.msra.mxu0 %v131
    %393 = vmatprep.subr.mxu0 0.0
    %394 = vmatpush1.msra.mxu0 %v130
    %395 = vmatprep.subr.mxu0 0.0
    %396 = vmatpush1.msra.mxu0 %v129
    %397 = vmatprep.subr.mxu0 0.0
    %398 = vmatpush1.msra.mxu0 %v128
    %399 = vmatprep.subr.mxu0 0.0
    %400 = vmatpush1.msra.mxu0 %v127
    %401 = vmatprep.subr.mxu0 0.0
    %402 = vmatpush1.msra.mxu0 %v126
    %403 = vmatprep.subr.mxu0 0.0
    %404 = vmatpush1.msra.mxu0 %v125
    %405 = vmatprep.subr.mxu0 0.0
    %406 = vmatpush1.msra.mxu0 %v124
    %407 = vmatprep.subr.mxu0 0.0
    %408 = vmatpush1.msra.mxu0 %v123
    %409 = vmatprep.subr.mxu0 0.0
    %410 = vmatpush1.msra.mxu0 %v122
    %411 = vmatprep.subr.mxu0 0.0
    %412 = vmatpush2.msra.mxu0 0.0
    %413 = vmatprep.subr.mxu0 0.0
    %414 = vmatpush2.msra.mxu0 0.0
    %415 = vmatprep.subr.mxu0 0.0
    %416 = vmatpush2.msra.mxu0 %v151
    %417 = vmatprep.subr.mxu0 0.0
    %418 = vmatpush2.msra.mxu0 %v150
    %419 = vmatprep.subr.mxu0 0.0
    %420 = vmatpush2.msra.mxu0 %v149
    %421 = vmatprep.subr.mxu0 0.0
    %422 = vmatpush2.msra.mxu0 %v148
    %423 = vmatprep.subr.mxu0 0.0
    %424 = vmatpush2.msra.mxu0 %v147
    %425 = vmatprep.subr.mxu0 0.0
    %426 = vmatpush2.msra.mxu0 %v146
    %427 = vmatprep.subr.mxu0 0.0
    %428 = vmatpush2.msra.mxu0 %v145
    %429 = vmatprep.subr.mxu0 0.0
    %430 = vmatpush2.msra.mxu0 %v144
    %431 = vmatprep.subr.mxu0 0.0
    %432 = vmatpush2.msra.mxu0 %v143
    %433 = vmatprep.subr.mxu0 0.0
    %434 = vmatpush2.msra.mxu0 %v142
    %435 = vmatprep.subr.mxu0 0.0
    %436 = vmatpush2.msra.mxu0 %v141
    %437 = vmatprep.subr.mxu0 0.0
    %438 = vmatpush2.msra.mxu0 %v140
    %439 = vmatprep.subr.mxu0 0.0
    %440 = vmatpush2.msra.mxu0 %v139
    %441 = vmatprep.subr.mxu0 0.0
    %442 = vmatpush2.msra.mxu0 %v138
    %443 = vmatprep.mubr.f32.mxu0 %v377
    %444 = vmatmul.mubr.f32.gmra.mxu0 %v374
    %v445 = vpop.f32.mrf.mxu0
    %v446 = vadd.f32 %v283, %v445
    %v447 = vpop.f32.mrf.mxu0
    %448 = vdwg.mxu0
    %v449 = vmax.f32 %v446, 0.0
    %450 = vrot.lane.b32.xlu0 %v115, 56
    %v451 = vpop.permute.xlu0 %450
    %453 = vrot.lane.b32.xlu0 %v115, 112
    %v454 = vpop.permute.xlu0 %453
    %v456 = vsel %vm273, %v115, %v451
    %v457 = vsel %vm275, %v456, %v451
    %v458 = vsel %vm277, %v451, %v454
    %v460 = vsel %vm285, %v458, 0
    %462 = vmatprep.subr.mxu0 0.0
    %463 = vmatpush1.msra.mxu0 %v137
    %464 = vmatprep.subr.mxu0 0.0
    %465 = vmatpush1.msra.mxu0 %v136
    %466 = vmatprep.subr.mxu0 0.0
    %467 = vmatpush1.msra.mxu0 %v135
    %468 = vmatprep.subr.mxu0 0.0
    %469 = vmatpush1.msra.mxu0 %v134
    %470 = vmatprep.subr.mxu0 0.0
    %471 = vmatpush1.msra.mxu0 %v133
    %472 = vmatprep.subr.mxu0 0.0
    %473 = vmatpush1.msra.mxu0 %v132
    %474 = vmatprep.subr.mxu0 0.0
    %475 = vmatpush1.msra.mxu0 %v131
    %476 = vmatprep.subr.mxu0 0.0
    %477 = vmatpush1.msra.mxu0 %v130
    %478 = vmatprep.subr.mxu0 0.0
    %479 = vmatpush1.msra.mxu0 %v129
    %480 = vmatprep.subr.mxu0 0.0
    %481 = vmatpush1.msra.mxu0 %v128
    %482 = vmatprep.subr.mxu0 0.0
    %483 = vmatpush1.msra.mxu0 %v127
    %484 = vmatprep.subr.mxu0 0.0
    %485 = vmatpush1.msra.mxu0 %v126
    %486 = vmatprep.subr.mxu0 0.0
    %487 = vmatpush1.msra.mxu0 %v125
    %488 = vmatprep.subr.mxu0 0.0
    %489 = vmatpush1.msra.mxu0 %v124
    %490 = vmatprep.subr.mxu0 0.0
    %491 = vmatpush1.msra.mxu0 %v123
    %492 = vmatprep.subr.mxu0 0.0
    %493 = vmatpush1.msra.mxu0 %v122
    %494 = vmatprep.subr.mxu0 0.0
    %495 = vmatpush2.msra.mxu0 0.0
    %496 = vmatprep.subr.mxu0 0.0
    %497 = vmatpush2.msra.mxu0 0.0
    %498 = vmatprep.subr.mxu0 0.0
    %499 = vmatpush2.msra.mxu0 %v151
    %500 = vmatprep.subr.mxu0 0.0
    %501 = vmatpush2.msra.mxu0 %v150
    %502 = vmatprep.subr.mxu0 0.0
    %503 = vmatpush2.msra.mxu0 %v149
    %504 = vmatprep.subr.mxu0 0.0
    %505 = vmatpush2.msra.mxu0 %v148
    %506 = vmatprep.subr.mxu0 0.0
    %507 = vmatpush2.msra.mxu0 %v147
    %508 = vmatprep.subr.mxu0 0.0
    %509 = vmatpush2.msra.mxu0 %v146
    %510 = vmatprep.subr.mxu0 0.0
    %511 = vmatpush2.msra.mxu0 %v145
    %512 = vmatprep.subr.mxu0 0.0
    %513 = vmatpush2.msra.mxu0 %v144
    %514 = vmatprep.subr.mxu0 0.0
    %515 = vmatpush2.msra.mxu0 %v143
    %516 = vmatprep.subr.mxu0 0.0
    %517 = vmatpush2.msra.mxu0 %v142
    %518 = vmatprep.subr.mxu0 0.0
    %519 = vmatpush2.msra.mxu0 %v141
    %520 = vmatprep.subr.mxu0 0.0
    %521 = vmatpush2.msra.mxu0 %v140
    %522 = vmatprep.subr.mxu0 0.0
    %523 = vmatpush2.msra.mxu0 %v139
    %524 = vmatprep.subr.mxu0 0.0
    %525 = vmatpush2.msra.mxu0 %v138
    %526 = vmatprep.mubr.f32.mxu0 %v460
    %527 = vmatmul.mubr.f32.gmra.mxu0 %v457
    %v528 = vpop.f32.mrf.mxu0
    %v529 = vadd.f32 %v283, %v528
    %v530 = vpop.f32.mrf.mxu0
    %531 = vdwg.mxu0
    %v532 = vmax.f32 %v529, 0.0
    %533 = vrot.lane.b32.xlu0 %v115, 64
    %v534 = vpop.permute.xlu0 %533
    %537 = vrot.lane.b32.xlu0 %v116, 120
    %v538 = vpop.permute.xlu0 %537
    %540 = vrot.lane.b32.xlu0 %v116, 48
    %v541 = vpop.permute.xlu0 %540
    %v543 = vsel %vm273, %v534, %v368
    %v544 = vsel %vm275, %v543, %v538
    %v545 = vsel %vm277, %v538, %v541
    %v547 = vsel %vm285, %v545, 0
    %549 = vmatprep.subr.mxu0 0.0
    %550 = vmatpush1.msra.mxu0 %v137
    %551 = vmatprep.subr.mxu0 0.0
    %552 = vmatpush1.msra.mxu0 %v136
    %553 = vmatprep.subr.mxu0 0.0
    %554 = vmatpush1.msra.mxu0 %v135
    %555 = vmatprep.subr.mxu0 0.0
    %556 = vmatpush1.msra.mxu0 %v134
    %557 = vmatprep.subr.mxu0 0.0
    %558 = vmatpush1.msra.mxu0 %v133
    %559 = vmatprep.subr.mxu0 0.0
    %560 = vmatpush1.msra.mxu0 %v132
    %561 = vmatprep.subr.mxu0 0.0
    %562 = vmatpush1.msra.mxu0 %v131
    %563 = vmatprep.subr.mxu0 0.0
    %564 = vmatpush1.msra.mxu0 %v130
    %565 = vmatprep.subr.mxu0 0.0
    %566 = vmatpush1.msra.mxu0 %v129
    %567 = vmatprep.subr.mxu0 0.0
    %568 = vmatpush1.msra.mxu0 %v128
    %569 = vmatprep.subr.mxu0 0.0
    %570 = vmatpush1.msra.mxu0 %v127
    %571 = vmatprep.subr.mxu0 0.0
    %572 = vmatpush1.msra.mxu0 %v126
    %573 = vmatprep.subr.mxu0 0.0
    %574 = vmatpush1.msra.mxu0 %v125
    %575 = vmatprep.subr.mxu0 0.0
    %576 = vmatpush1.msra.mxu0 %v124
    %577 = vmatprep.subr.mxu0 0.0
    %578 = vmatpush1.msra.mxu0 %v123
    %579 = vmatprep.subr.mxu0 0.0
    %580 = vmatpush1.msra.mxu0 %v122
    %581 = vmatprep.subr.mxu0 0.0
    %582 = vmatpush2.msra.mxu0 0.0
    %583 = vmatprep.subr.mxu0 0.0
    %584 = vmatpush2.msra.mxu0 0.0
    %585 = vmatprep.subr.mxu0 0.0
    %586 = vmatpush2.msra.mxu0 %v151
    %587 = vmatprep.subr.mxu0 0.0
    %588 = vmatpush2.msra.mxu0 %v150
    %589 = vmatprep.subr.mxu0 0.0
    %590 = vmatpush2.msra.mxu0 %v149
    %591 = vmatprep.subr.mxu0 0.0
    %592 = vmatpush2.msra.mxu0 %v148
    %593 = vmatprep.subr.mxu0 0.0
    %594 = vmatpush2.msra.mxu0 %v147
    %595 = vmatprep.subr.mxu0 0.0
    %596 = vmatpush2.msra.mxu0 %v146
    %597 = vmatprep.subr.mxu0 0.0
    %598 = vmatpush2.msra.mxu0 %v145
    %599 = vmatprep.subr.mxu0 0.0
    %600 = vmatpush2.msra.mxu0 %v144
    %601 = vmatprep.subr.mxu0 0.0
    %602 = vmatpush2.msra.mxu0 %v143
    %603 = vmatprep.subr.mxu0 0.0
    %604 = vmatpush2.msra.mxu0 %v142
    %605 = vmatprep.subr.mxu0 0.0
    %606 = vmatpush2.msra.mxu0 %v141
    %607 = vmatprep.subr.mxu0 0.0
    %608 = vmatpush2.msra.mxu0 %v140
    %609 = vmatprep.subr.mxu0 0.0
    %610 = vmatpush2.msra.mxu0 %v139
    %611 = vmatprep.subr.mxu0 0.0
    %612 = vmatpush2.msra.mxu0 %v138
    %613 = vmatprep.mubr.f32.mxu0 %v547
    %614 = vmatmul.mubr.f32.gmra.mxu0 %v544
    %v615 = vpop.f32.mrf.mxu0
    %v616 = vadd.f32 %v283, %v615
    %v617 = vpop.f32.mrf.mxu0
    %618 = vdwg.mxu0
    %v619 = vmax.f32 %v616, 0.0
    %620 = vrot.lane.b32.xlu0 %v116, 56
    %v621 = vpop.permute.xlu0 %620
    %623 = vrot.lane.b32.xlu0 %v116, 112
    %v624 = vpop.permute.xlu0 %623
    %v626 = vsel %vm273, %v116, %v621
    %v627 = vsel %vm275, %v626, %v621
    %v628 = vsel %vm277, %v621, %v624
    %v630 = vsel %vm285, %v628, 0
    %632 = vmatprep.subr.mxu0 0.0
    %633 = vmatpush1.msra.mxu0 %v137
    %634 = vmatprep.subr.mxu0 0.0
    %635 = vmatpush1.msra.mxu0 %v136
    %636 = vmatprep.subr.mxu0 0.0
    %637 = vmatpush1.msra.mxu0 %v135
    %638 = vmatprep.subr.mxu0 0.0
    %639 = vmatpush1.msra.mxu0 %v134
    %640 = vmatprep.subr.mxu0 0.0
    %641 = vmatpush1.msra.mxu0 %v133
    %642 = vmatprep.subr.mxu0 0.0
    %643 = vmatpush1.msra.mxu0 %v132
    %644 = vmatprep.subr.mxu0 0.0
    %645 = vmatpush1.msra.mxu0 %v131
    %646 = vmatprep.subr.mxu0 0.0
    %647 = vmatpush1.msra.mxu0 %v130
    %648 = vmatprep.subr.mxu0 0.0
    %649 = vmatpush1.msra.mxu0 %v129
    %650 = vmatprep.subr.mxu0 0.0
    %651 = vmatpush1.msra.mxu0 %v128
    %652 = vmatprep.subr.mxu0 0.0
    %653 = vmatpush1.msra.mxu0 %v127
    %654 = vmatprep.subr.mxu0 0.0
    %655 = vmatpush1.msra.mxu0 %v126
    %656 = vmatprep.subr.mxu0 0.0
    %657 = vmatpush1.msra.mxu0 %v125
    %658 = vmatprep.subr.mxu0 0.0
    %659 = vmatpush1.msra.mxu0 %v124
    %660 = vmatprep.subr.mxu0 0.0
    %661 = vmatpush1.msra.mxu0 %v123
    %662 = vmatprep.subr.mxu0 0.0
    %663 = vmatpush1.msra.mxu0 %v122
    %664 = vmatprep.subr.mxu0 0.0
    %665 = vmatpush2.msra.mxu0 0.0
    %666 = vmatprep.subr.mxu0 0.0
    %667 = vmatpush2.msra.mxu0 0.0
    %668 = vmatprep.subr.mxu0 0.0
    %669 = vmatpush2.msra.mxu0 %v151
    %670 = vmatprep.subr.mxu0 0.0
    %671 = vmatpush2.msra.mxu0 %v150
    %672 = vmatprep.subr.mxu0 0.0
    %673 = vmatpush2.msra.mxu0 %v149
    %674 = vmatprep.subr.mxu0 0.0
    %675 = vmatpush2.msra.mxu0 %v148
    %676 = vmatprep.subr.mxu0 0.0
    %677 = vmatpush2.msra.mxu0 %v147
    %678 = vmatprep.subr.mxu0 0.0
    %679 = vmatpush2.msra.mxu0 %v146
    %680 = vmatprep.subr.mxu0 0.0
    %681 = vmatpush2.msra.mxu0 %v145
    %682 = vmatprep.subr.mxu0 0.0
    %683 = vmatpush2.msra.mxu0 %v144
    %684 = vmatprep.subr.mxu0 0.0
    %685 = vmatpush2.msra.mxu0 %v143
    %686 = vmatprep.subr.mxu0 0.0
    %687 = vmatpush2.msra.mxu0 %v142
    %688 = vmatprep.subr.mxu0 0.0
    %689 = vmatpush2.msra.mxu0 %v141
    %690 = vmatprep.subr.mxu0 0.0
    %691 = vmatpush2.msra.mxu0 %v140
    %692 = vmatprep.subr.mxu0 0.0
    %693 = vmatpush2.msra.mxu0 %v139
    %694 = vmatprep.subr.mxu0 0.0
    %695 = vmatpush2.msra.mxu0 %v138
    %696 = vmatprep.mubr.f32.mxu0 %v630
    %697 = vmatmul.mubr.f32.gmra.mxu0 %v627
    %v698 = vpop.f32.mrf.mxu0
    %v699 = vadd.f32 %v283, %v698
    %v700 = vpop.f32.mrf.mxu0
    %701 = vdwg.mxu0
    %v702 = vmax.f32 %v699, 0.0
    %703 = vrot.lane.b32.xlu0 %v116, 64
    %v704 = vpop.permute.xlu0 %703
    %707 = vrot.lane.b32.xlu0 %v117, 120
    %v708 = vpop.permute.xlu0 %707
    %710 = vrot.lane.b32.xlu0 %v117, 48
    %v711 = vpop.permute.xlu0 %710
    %v713 = vsel %vm273, %v704, %v538
    %v714 = vsel %vm275, %v713, %v708
    %v715 = vsel %vm277, %v708, %v711
    %v717 = vsel %vm285, %v715, 0
    %719 = vmatprep.subr.mxu0 0.0
    %720 = vmatpush1.msra.mxu0 %v137
    %721 = vmatprep.subr.mxu0 0.0
    %722 = vmatpush1.msra.mxu0 %v136
    %723 = vmatprep.subr.mxu0 0.0
    %724 = vmatpush1.msra.mxu0 %v135
    %725 = vmatprep.subr.mxu0 0.0
    %726 = vmatpush1.msra.mxu0 %v134
    %727 = vmatprep.subr.mxu0 0.0
    %728 = vmatpush1.msra.mxu0 %v133
    %729 = vmatprep.subr.mxu0 0.0
    %730 = vmatpush1.msra.mxu0 %v132
    %731 = vmatprep.subr.mxu0 0.0
    %732 = vmatpush1.msra.mxu0 %v131
    %733 = vmatprep.subr.mxu0 0.0
    %734 = vmatpush1.msra.mxu0 %v130
    %735 = vmatprep.subr.mxu0 0.0
    %736 = vmatpush1.msra.mxu0 %v129
    %737 = vmatprep.subr.mxu0 0.0
    %738 = vmatpush1.msra.mxu0 %v128
    %739 = vmatprep.subr.mxu0 0.0
    %740 = vmatpush1.msra.mxu0 %v127
    %741 = vmatprep.subr.mxu0 0.0
    %742 = vmatpush1.msra.mxu0 %v126
    %743 = vmatprep.subr.mxu0 0.0
    %744 = vmatpush1.msra.mxu0 %v125
    %745 = vmatprep.subr.mxu0 0.0
    %746 = vmatpush1.msra.mxu0 %v124
    %747 = vmatprep.subr.mxu0 0.0
    %748 = vmatpush1.msra.mxu0 %v123
    %749 = vmatprep.subr.mxu0 0.0
    %750 = vmatpush1.msra.mxu0 %v122
    %751 = vmatprep.subr.mxu0 0.0
    %752 = vmatpush2.msra.mxu0 0.0
    %753 = vmatprep.subr.mxu0 0.0
    %754 = vmatpush2.msra.mxu0 0.0
    %755 = vmatprep.subr.mxu0 0.0
    %756 = vmatpush2.msra.mxu0 %v151
    %757 = vmatprep.subr.mxu0 0.0
    %758 = vmatpush2.msra.mxu0 %v150
    %759 = vmatprep.subr.mxu0 0.0
    %760 = vmatpush2.msra.mxu0 %v149
    %761 = vmatprep.subr.mxu0 0.0
    %762 = vmatpush2.msra.mxu0 %v148
    %763 = vmatprep.subr.mxu0 0.0
    %764 = vmatpush2.msra.mxu0 %v147
    %765 = vmatprep.subr.mxu0 0.0
    %766 = vmatpush2.msra.mxu0 %v146
    %767 = vmatprep.subr.mxu0 0.0
    %768 = vmatpush2.msra.mxu0 %v145
    %769 = vmatprep.subr.mxu0 0.0
    %770 = vmatpush2.msra.mxu0 %v144
    %771 = vmatprep.subr.mxu0 0.0
    %772 = vmatpush2.msra.mxu0 %v143
    %773 = vmatprep.subr.mxu0 0.0
    %774 = vmatpush2.msra.mxu0 %v142
    %775 = vmatprep.subr.mxu0 0.0
    %776 = vmatpush2.msra.mxu0 %v141
    %777 = vmatprep.subr.mxu0 0.0
    %778 = vmatpush2.msra.mxu0 %v140
    %779 = vmatprep.subr.mxu0 0.0
    %780 = vmatpush2.msra.mxu0 %v139
    %781 = vmatprep.subr.mxu0 0.0
    %782 = vmatpush2.msra.mxu0 %v138
    %783 = vmatprep.mubr.f32.mxu0 %v717
    %784 = vmatmul.mubr.f32.gmra.mxu0 %v714
    %v785 = vpop.f32.mrf.mxu0
    %v786 = vadd.f32 %v283, %v785
    %v787 = vpop.f32.mrf.mxu0
    %788 = vdwg.mxu0
    %v789 = vmax.f32 %v786, 0.0
    %790 = vrot.lane.b32.xlu0 %v117, 56
    %v791 = vpop.permute.xlu0 %790
    %793 = vrot.lane.b32.xlu0 %v117, 112
    %v794 = vpop.permute.xlu0 %793
    %v796 = vsel %vm273, %v117, %v791
    %v797 = vsel %vm275, %v796, %v791
    %v798 = vsel %vm277, %v791, %v794
    %v800 = vsel %vm285, %v798, 0
    %802 = vmatprep.subr.mxu0 0.0
    %803 = vmatpush1.msra.mxu0 %v137
    %804 = vmatprep.subr.mxu0 0.0
    %805 = vmatpush1.msra.mxu0 %v136
    %806 = vmatprep.subr.mxu0 0.0
    %807 = vmatpush1.msra.mxu0 %v135
    %808 = vmatprep.subr.mxu0 0.0
    %809 = vmatpush1.msra.mxu0 %v134
    %810 = vmatprep.subr.mxu0 0.0
    %811 = vmatpush1.msra.mxu0 %v133
    %812 = vmatprep.subr.mxu0 0.0
    %813 = vmatpush1.msra.mxu0 %v132
    %814 = vmatprep.subr.mxu0 0.0
    %815 = vmatpush1.msra.mxu0 %v131
    %816 = vmatprep.subr.mxu0 0.0
    %817 = vmatpush1.msra.mxu0 %v130
    %818 = vmatprep.subr.mxu0 0.0
    %819 = vmatpush1.msra.mxu0 %v129
    %820 = vmatprep.subr.mxu0 0.0
    %821 = vmatpush1.msra.mxu0 %v128
    %822 = vmatprep.subr.mxu0 0.0
    %823 = vmatpush1.msra.mxu0 %v127
    %824 = vmatprep.subr.mxu0 0.0
    %825 = vmatpush1.msra.mxu0 %v126
    %826 = vmatprep.subr.mxu0 0.0
    %827 = vmatpush1.msra.mxu0 %v125
    %828 = vmatprep.subr.mxu0 0.0
    %829 = vmatpush1.msra.mxu0 %v124
    %830 = vmatprep.subr.mxu0 0.0
    %831 = vmatpush1.msra.mxu0 %v123
    %832 = vmatprep.subr.mxu0 0.0
    %833 = vmatpush1.msra.mxu0 %v122
    %834 = vmatprep.subr.mxu0 0.0
    %835 = vmatpush2.msra.mxu0 0.0
    %836 = vmatprep.subr.mxu0 0.0
    %837 = vmatpush2.msra.mxu0 0.0
    %838 = vmatprep.subr.mxu0 0.0
    %839 = vmatpush2.msra.mxu0 %v151
    %840 = vmatprep.subr.mxu0 0.0
    %841 = vmatpush2.msra.mxu0 %v150
    %842 = vmatprep.subr.mxu0 0.0
    %843 = vmatpush2.msra.mxu0 %v149
    %844 = vmatprep.subr.mxu0 0.0
    %845 = vmatpush2.msra.mxu0 %v148
    %846 = vmatprep.subr.mxu0 0.0
    %847 = vmatpush2.msra.mxu0 %v147
    %848 = vmatprep.subr.mxu0 0.0
    %849 = vmatpush2.msra.mxu0 %v146
    %850 = vmatprep.subr.mxu0 0.0
    %851 = vmatpush2.msra.mxu0 %v145
    %852 = vmatprep.subr.mxu0 0.0
    %853 = vmatpush2.msra.mxu0 %v144
    %854 = vmatprep.subr.mxu0 0.0
    %855 = vmatpush2.msra.mxu0 %v143
    %856 = vmatprep.subr.mxu0 0.0
    %857 = vmatpush2.msra.mxu0 %v142
    %858 = vmatprep.subr.mxu0 0.0
    %859 = vmatpush2.msra.mxu0 %v141
    %860 = vmatprep.subr.mxu0 0.0
    %861 = vmatpush2.msra.mxu0 %v140
    %862 = vmatprep.subr.mxu0 0.0
    %863 = vmatpush2.msra.mxu0 %v139
    %864 = vmatprep.subr.mxu0 0.0
    %865 = vmatpush2.msra.mxu0 %v138
    %866 = vmatprep.mubr.f32.mxu0 %v800
    %867 = vmatmul.mubr.f32.gmra.mxu0 %v797
    %v868 = vpop.f32.mrf.mxu0
    %v869 = vadd.f32 %v283, %v868
    %v870 = vpop.f32.mrf.mxu0
    %871 = vdwg.mxu0
    %v872 = vmax.f32 %v869, 0.0
    %873 = vrot.lane.b32.xlu0 %v117, 64
    %v874 = vpop.permute.xlu0 %873
    %877 = vrot.lane.b32.xlu0 %v118, 120
    %v878 = vpop.permute.xlu0 %877
    %880 = vrot.lane.b32.xlu0 %v118, 48
    %v881 = vpop.permute.xlu0 %880
    %v883 = vsel %vm273, %v874, %v708
    %v884 = vsel %vm275, %v883, %v878
    %v885 = vsel %vm277, %v878, %v881
    %v887 = vsel %vm285, %v885, 0
    %889 = vmatprep.subr.mxu0 0.0
    %890 = vmatpush1.msra.mxu0 %v137
    %891 = vmatprep.subr.mxu0 0.0
    %892 = vmatpush1.msra.mxu0 %v136
    %893 = vmatprep.subr.mxu0 0.0
    %894 = vmatpush1.msra.mxu0 %v135
    %895 = vmatprep.subr.mxu0 0.0
    %896 = vmatpush1.msra.mxu0 %v134
    %897 = vmatprep.subr.mxu0 0.0
    %898 = vmatpush1.msra.mxu0 %v133
    %899 = vmatprep.subr.mxu0 0.0
    %900 = vmatpush1.msra.mxu0 %v132
    %901 = vmatprep.subr.mxu0 0.0
    %902 = vmatpush1.msra.mxu0 %v131
    %903 = vmatprep.subr.mxu0 0.0
    %904 = vmatpush1.msra.mxu0 %v130
    %905 = vmatprep.subr.mxu0 0.0
    %906 = vmatpush1.msra.mxu0 %v129
    %907 = vmatprep.subr.mxu0 0.0
    %908 = vmatpush1.msra.mxu0 %v128
    %909 = vmatprep.subr.mxu0 0.0
    %910 = vmatpush1.msra.mxu0 %v127
    %911 = vmatprep.subr.mxu0 0.0
    %912 = vmatpush1.msra.mxu0 %v126
    %913 = vmatprep.subr.mxu0 0.0
    %914 = vmatpush1.msra.mxu0 %v125
    %915 = vmatprep.subr.mxu0 0.0
    %916 = vmatpush1.msra.mxu0 %v124
    %917 = vmatprep.subr.mxu0 0.0
    %918 = vmatpush1.msra.mxu0 %v123
    %919 = vmatprep.subr.mxu0 0.0
    %920 = vmatpush1.msra.mxu0 %v122
    %921 = vmatprep.subr.mxu0 0.0
    %922 = vmatpush2.msra.mxu0 0.0
    %923 = vmatprep.subr.mxu0 0.0
    %924 = vmatpush2.msra.mxu0 0.0
    %925 = vmatprep.subr.mxu0 0.0
    %926 = vmatpush2.msra.mxu0 %v151
    %927 = vmatprep.subr.mxu0 0.0
    %928 = vmatpush2.msra.mxu0 %v150
    %929 = vmatprep.subr.mxu0 0.0
    %930 = vmatpush2.msra.mxu0 %v149
    %931 = vmatprep.subr.mxu0 0.0
    %932 = vmatpush2.msra.mxu0 %v148
    %933 = vmatprep.subr.mxu0 0.0
    %934 = vmatpush2.msra.mxu0 %v147
    %935 = vmatprep.subr.mxu0 0.0
    %936 = vmatpush2.msra.mxu0 %v146
    %937 = vmatprep.subr.mxu0 0.0
    %938 = vmatpush2.msra.mxu0 %v145
    %939 = vmatprep.subr.mxu0 0.0
    %940 = vmatpush2.msra.mxu0 %v144
    %941 = vmatprep.subr.mxu0 0.0
    %942 = vmatpush2.msra.mxu0 %v143
    %943 = vmatprep.subr.mxu0 0.0
    %944 = vmatpush2.msra.mxu0 %v142
    %945 = vmatprep.subr.mxu0 0.0
    %946 = vmatpush2.msra.mxu0 %v141
    %947 = vmatprep.subr.mxu0 0.0
    %948 = vmatpush2.msra.mxu0 %v140
    %949 = vmatprep.subr.mxu0 0.0
    %950 = vmatpush2.msra.mxu0 %v139
    %951 = vmatprep.subr.mxu0 0.0
    %952 = vmatpush2.msra.mxu0 %v138
    %953 = vmatprep.mubr.f32.mxu0 %v887
    %954 = vmatmul.mubr.f32.gmra.mxu0 %v884
    %v955 = vpop.f32.mrf.mxu0
    %v956 = vadd.f32 %v283, %v955
    %v957 = vpop.f32.mrf.mxu0
    %958 = vdwg.mxu0
    %v959 = vmax.f32 %v956, 0.0
    %960 = vrot.lane.b32.xlu0 %v118, 56
    %v961 = vpop.permute.xlu0 %960
    %963 = vrot.lane.b32.xlu0 %v118, 112
    %v964 = vpop.permute.xlu0 %963
    %v966 = vsel %vm273, %v118, %v961
    %v967 = vsel %vm275, %v966, %v961
    %v968 = vsel %vm277, %v961, %v964
    %v970 = vsel %vm285, %v968, 0
    %972 = vmatprep.subr.mxu0 0.0
    %973 = vmatpush1.msra.mxu0 %v137
    %974 = vmatprep.subr.mxu0 0.0
    %975 = vmatpush1.msra.mxu0 %v136
    %976 = vmatprep.subr.mxu0 0.0
    %977 = vmatpush1.msra.mxu0 %v135
    %978 = vmatprep.subr.mxu0 0.0
    %979 = vmatpush1.msra.mxu0 %v134
    %980 = vmatprep.subr.mxu0 0.0
    %981 = vmatpush1.msra.mxu0 %v133
    %982 = vmatprep.subr.mxu0 0.0
    %983 = vmatpush1.msra.mxu0 %v132
    %984 = vmatprep.subr.mxu0 0.0
    %985 = vmatpush1.msra.mxu0 %v131
    %986 = vmatprep.subr.mxu0 0.0
    %987 = vmatpush1.msra.mxu0 %v130
    %988 = vmatprep.subr.mxu0 0.0
    %989 = vmatpush1.msra.mxu0 %v129
    %990 = vmatprep.subr.mxu0 0.0
    %991 = vmatpush1.msra.mxu0 %v128
    %992 = vmatprep.subr.mxu0 0.0
    %993 = vmatpush1.msra.mxu0 %v127
    %994 = vmatprep.subr.mxu0 0.0
    %995 = vmatpush1.msra.mxu0 %v126
    %996 = vmatprep.subr.mxu0 0.0
    %997 = vmatpush1.msra.mxu0 %v125
    %998 = vmatprep.subr.mxu0 0.0
    %999 = vmatpush1.msra.mxu0 %v124
    %1000 = vmatprep.subr.mxu0 0.0
    %1001 = vmatpush1.msra.mxu0 %v123
    %1002 = vmatprep.subr.mxu0 0.0
    %1003 = vmatpush1.msra.mxu0 %v122
    %1004 = vmatprep.subr.mxu0 0.0
    %1005 = vmatpush2.msra.mxu0 0.0
    %1006 = vmatprep.subr.mxu0 0.0
    %1007 = vmatpush2.msra.mxu0 0.0
    %1008 = vmatprep.subr.mxu0 0.0
    %1009 = vmatpush2.msra.mxu0 %v151
    %1010 = vmatprep.subr.mxu0 0.0
    %1011 = vmatpush2.msra.mxu0 %v150
    %1012 = vmatprep.subr.mxu0 0.0
    %1013 = vmatpush2.msra.mxu0 %v149
    %1014 = vmatprep.subr.mxu0 0.0
    %1015 = vmatpush2.msra.mxu0 %v148
    %1016 = vmatprep.subr.mxu0 0.0
    %1017 = vmatpush2.msra.mxu0 %v147
    %1018 = vmatprep.subr.mxu0 0.0
    %1019 = vmatpush2.msra.mxu0 %v146
    %1020 = vmatprep.subr.mxu0 0.0
    %1021 = vmatpush2.msra.mxu0 %v145
    %1022 = vmatprep.subr.mxu0 0.0
    %1023 = vmatpush2.msra.mxu0 %v144
    %1024 = vmatprep.subr.mxu0 0.0
    %1025 = vmatpush2.msra.mxu0 %v143
    %1026 = vmatprep.subr.mxu0 0.0
    %1027 = vmatpush2.msra.mxu0 %v142
    %1028 = vmatprep.subr.mxu0 0.0
    %1029 = vmatpush2.msra.mxu0 %v141
    %1030 = vmatprep.subr.mxu0 0.0
    %1031 = vmatpush2.msra.mxu0 %v140
    %1032 = vmatprep.subr.mxu0 0.0
    %1033 = vmatpush2.msra.mxu0 %v139
    %1034 = vmatprep.subr.mxu0 0.0
    %1035 = vmatpush2.msra.mxu0 %v138
    %1036 = vmatprep.mubr.f32.mxu0 %v970
    %1037 = vmatmul.mubr.f32.gmra.mxu0 %v967
    %v1038 = vpop.f32.mrf.mxu0
    %v1039 = vadd.f32 %v283, %v1038
    %v1040 = vpop.f32.mrf.mxu0
    %1041 = vdwg.mxu0
    %v1042 = vmax.f32 %v1039, 0.0
    %1043 = vrot.lane.b32.xlu0 %v118, 64
    %v1044 = vpop.permute.xlu0 %1043
    %1047 = vrot.lane.b32.xlu0 %v119, 120
    %v1048 = vpop.permute.xlu0 %1047
    %1050 = vrot.lane.b32.xlu0 %v119, 48
    %v1051 = vpop.permute.xlu0 %1050
    %v1053 = vsel %vm273, %v1044, %v878
    %v1054 = vsel %vm275, %v1053, %v1048
    %v1055 = vsel %vm277, %v1048, %v1051
    %v1057 = vsel %vm285, %v1055, 0
    %1059 = vmatprep.subr.mxu0 0.0
    %1060 = vmatpush1.msra.mxu0 %v137
    %1061 = vmatprep.subr.mxu0 0.0
    %1062 = vmatpush1.msra.mxu0 %v136
    %1063 = vmatprep.subr.mxu0 0.0
    %1064 = vmatpush1.msra.mxu0 %v135
    %1065 = vmatprep.subr.mxu0 0.0
    %1066 = vmatpush1.msra.mxu0 %v134
    %1067 = vmatprep.subr.mxu0 0.0
    %1068 = vmatpush1.msra.mxu0 %v133
    %1069 = vmatprep.subr.mxu0 0.0
    %1070 = vmatpush1.msra.mxu0 %v132
    %1071 = vmatprep.subr.mxu0 0.0
    %1072 = vmatpush1.msra.mxu0 %v131
    %1073 = vmatprep.subr.mxu0 0.0
    %1074 = vmatpush1.msra.mxu0 %v130
    %1075 = vmatprep.subr.mxu0 0.0
    %1076 = vmatpush1.msra.mxu0 %v129
    %1077 = vmatprep.subr.mxu0 0.0
    %1078 = vmatpush1.msra.mxu0 %v128
    %1079 = vmatprep.subr.mxu0 0.0
    %1080 = vmatpush1.msra.mxu0 %v127
    %1081 = vmatprep.subr.mxu0 0.0
    %1082 = vmatpush1.msra.mxu0 %v126
    %1083 = vmatprep.subr.mxu0 0.0
    %1084 = vmatpush1.msra.mxu0 %v125
    %1085 = vmatprep.subr.mxu0 0.0
    %1086 = vmatpush1.msra.mxu0 %v124
    %1087 = vmatprep.subr.mxu0 0.0
    %1088 = vmatpush1.msra.mxu0 %v123
    %1089 = vmatprep.subr.mxu0 0.0
    %1090 = vmatpush1.msra.mxu0 %v122
    %1091 = vmatprep.subr.mxu0 0.0
    %1092 = vmatpush2.msra.mxu0 0.0
    %1093 = vmatprep.subr.mxu0 0.0
    %1094 = vmatpush2.msra.mxu0 0.0
    %1095 = vmatprep.subr.mxu0 0.0
    %1096 = vmatpush2.msra.mxu0 %v151
    %1097 = vmatprep.subr.mxu0 0.0
    %1098 = vmatpush2.msra.mxu0 %v150
    %1099 = vmatprep.subr.mxu0 0.0
    %1100 = vmatpush2.msra.mxu0 %v149
    %1101 = vmatprep.subr.mxu0 0.0
    %1102 = vmatpush2.msra.mxu0 %v148
    %1103 = vmatprep.subr.mxu0 0.0
    %1104 = vmatpush2.msra.mxu0 %v147
    %1105 = vmatprep.subr.mxu0 0.0
    %1106 = vmatpush2.msra.mxu0 %v146
    %1107 = vmatprep.subr.mxu0 0.0
    %1108 = vmatpush2.msra.mxu0 %v145
    %1109 = vmatprep.subr.mxu0 0.0
    %1110 = vmatpush2.msra.mxu0 %v144
    %1111 = vmatprep.subr.mxu0 0.0
    %1112 = vmatpush2.msra.mxu0 %v143
    %1113 = vmatprep.subr.mxu0 0.0
    %1114 = vmatpush2.msra.mxu0 %v142
    %1115 = vmatprep.subr.mxu0 0.0
    %1116 = vmatpush2.msra.mxu0 %v141
    %1117 = vmatprep.subr.mxu0 0.0
    %1118 = vmatpush2.msra.mxu0 %v140
    %1119 = vmatprep.subr.mxu0 0.0
    %1120 = vmatpush2.msra.mxu0 %v139
    %1121 = vmatprep.subr.mxu0 0.0
    %1122 = vmatpush2.msra.mxu0 %v138
    %1123 = vmatprep.mubr.f32.mxu0 %v1057
    %1124 = vmatmul.mubr.f32.gmra.mxu0 %v1054
    %v1125 = vpop.f32.mrf.mxu0
    %v1126 = vadd.f32 %v283, %v1125
    %v1127 = vpop.f32.mrf.mxu0
    %1128 = vdwg.mxu0
    %v1129 = vmax.f32 %v1126, 0.0
    %1130 = vrot.lane.b32.xlu0 %v119, 56
    %v1131 = vpop.permute.xlu0 %1130
    %1133 = vrot.lane.b32.xlu0 %v119, 112
    %v1134 = vpop.permute.xlu0 %1133
    %v1136 = vsel %vm273, %v119, %v1131
    %v1137 = vsel %vm275, %v1136, %v1131
    %v1138 = vsel %vm277, %v1131, %v1134
    %v1140 = vsel %vm285, %v1138, 0
    %1142 = vmatprep.subr.mxu0 0.0
    %1143 = vmatpush1.msra.mxu0 %v137
    %1144 = vmatprep.subr.mxu0 0.0
    %1145 = vmatpush1.msra.mxu0 %v136
    %1146 = vmatprep.subr.mxu0 0.0
    %1147 = vmatpush1.msra.mxu0 %v135
    %1148 = vmatprep.subr.mxu0 0.0
    %1149 = vmatpush1.msra.mxu0 %v134
    %1150 = vmatprep.subr.mxu0 0.0
    %1151 = vmatpush1.msra.mxu0 %v133
    %1152 = vmatprep.subr.mxu0 0.0
    %1153 = vmatpush1.msra.mxu0 %v132
    %1154 = vmatprep.subr.mxu0 0.0
    %1155 = vmatpush1.msra.mxu0 %v131
    %1156 = vmatprep.subr.mxu0 0.0
    %1157 = vmatpush1.msra.mxu0 %v130
    %1158 = vmatprep.subr.mxu0 0.0
    %1159 = vmatpush1.msra.mxu0 %v129
    %1160 = vmatprep.subr.mxu0 0.0
    %1161 = vmatpush1.msra.mxu0 %v128
    %1162 = vmatprep.subr.mxu0 0.0
    %1163 = vmatpush1.msra.mxu0 %v127
    %1164 = vmatprep.subr.mxu0 0.0
    %1165 = vmatpush1.msra.mxu0 %v126
    %1166 = vmatprep.subr.mxu0 0.0
    %1167 = vmatpush1.msra.mxu0 %v125
    %1168 = vmatprep.subr.mxu0 0.0
    %1169 = vmatpush1.msra.mxu0 %v124
    %1170 = vmatprep.subr.mxu0 0.0
    %1171 = vmatpush1.msra.mxu0 %v123
    %1172 = vmatprep.subr.mxu0 0.0
    %1173 = vmatpush1.msra.mxu0 %v122
    %1174 = vmatprep.subr.mxu0 0.0
    %1175 = vmatpush2.msra.mxu0 0.0
    %1176 = vmatprep.subr.mxu0 0.0
    %1177 = vmatpush2.msra.mxu0 0.0
    %1178 = vmatprep.subr.mxu0 0.0
    %1179 = vmatpush2.msra.mxu0 %v151
    %1180 = vmatprep.subr.mxu0 0.0
    %1181 = vmatpush2.msra.mxu0 %v150
    %1182 = vmatprep.subr.mxu0 0.0
    %1183 = vmatpush2.msra.mxu0 %v149
    %1184 = vmatprep.subr.mxu0 0.0
    %1185 = vmatpush2.msra.mxu0 %v148
    %1186 = vmatprep.subr.mxu0 0.0
    %1187 = vmatpush2.msra.mxu0 %v147
    %1188 = vmatprep.subr.mxu0 0.0
    %1189 = vmatpush2.msra.mxu0 %v146
    %1190 = vmatprep.subr.mxu0 0.0
    %1191 = vmatpush2.msra.mxu0 %v145
    %1192 = vmatprep.subr.mxu0 0.0
    %1193 = vmatpush2.msra.mxu0 %v144
    %1194 = vmatprep.subr.mxu0 0.0
    %1195 = vmatpush2.msra.mxu0 %v143
    %1196 = vmatprep.subr.mxu0 0.0
    %1197 = vmatpush2.msra.mxu0 %v142
    %1198 = vmatprep.subr.mxu0 0.0
    %1199 = vmatpush2.msra.mxu0 %v141
    %1200 = vmatprep.subr.mxu0 0.0
    %1201 = vmatpush2.msra.mxu0 %v140
    %1202 = vmatprep.subr.mxu0 0.0
    %1203 = vmatpush2.msra.mxu0 %v139
    %1204 = vmatprep.subr.mxu0 0.0
    %1205 = vmatpush2.msra.mxu0 %v138
    %1206 = vmatprep.mubr.f32.mxu0 %v1140
    %1207 = vmatmul.mubr.f32.gmra.mxu0 %v1137
    %v1208 = vpop.f32.mrf.mxu0
    %v1209 = vadd.f32 %v283, %v1208
    %v1210 = vpop.f32.mrf.mxu0
    %1211 = vdwg.mxu0
    %v1212 = vmax.f32 %v1209, 0.0
    %1213 = vrot.lane.b32.xlu0 %v119, 64
    %v1214 = vpop.permute.xlu0 %1213
    %1217 = vrot.lane.b32.xlu0 %v120, 120
    %v1218 = vpop.permute.xlu0 %1217
    %1220 = vrot.lane.b32.xlu0 %v120, 48
    %v1221 = vpop.permute.xlu0 %1220
    %v1223 = vsel %vm273, %v1214, %v1048
    %v1224 = vsel %vm275, %v1223, %v1218
    %v1225 = vsel %vm277, %v1218, %v1221
    %v1227 = vsel %vm285, %v1225, 0
    %1229 = vmatprep.subr.mxu0 0.0
    %1230 = vmatpush1.msra.mxu0 %v137
    %1231 = vmatprep.subr.mxu0 0.0
    %1232 = vmatpush1.msra.mxu0 %v136
    %1233 = vmatprep.subr.mxu0 0.0
    %1234 = vmatpush1.msra.mxu0 %v135
    %1235 = vmatprep.subr.mxu0 0.0
    %1236 = vmatpush1.msra.mxu0 %v134
    %1237 = vmatprep.subr.mxu0 0.0
    %1238 = vmatpush1.msra.mxu0 %v133
    %1239 = vmatprep.subr.mxu0 0.0
    %1240 = vmatpush1.msra.mxu0 %v132
    %1241 = vmatprep.subr.mxu0 0.0
    %1242 = vmatpush1.msra.mxu0 %v131
    %1243 = vmatprep.subr.mxu0 0.0
    %1244 = vmatpush1.msra.mxu0 %v130
    %1245 = vmatprep.subr.mxu0 0.0
    %1246 = vmatpush1.msra.mxu0 %v129
    %1247 = vmatprep.subr.mxu0 0.0
    %1248 = vmatpush1.msra.mxu0 %v128
    %1249 = vmatprep.subr.mxu0 0.0
    %1250 = vmatpush1.msra.mxu0 %v127
    %1251 = vmatprep.subr.mxu0 0.0
    %1252 = vmatpush1.msra.mxu0 %v126
    %1253 = vmatprep.subr.mxu0 0.0
    %1254 = vmatpush1.msra.mxu0 %v125
    %1255 = vmatprep.subr.mxu0 0.0
    %1256 = vmatpush1.msra.mxu0 %v124
    %1257 = vmatprep.subr.mxu0 0.0
    %1258 = vmatpush1.msra.mxu0 %v123
    %1259 = vmatprep.subr.mxu0 0.0
    %1260 = vmatpush1.msra.mxu0 %v122
    %1261 = vmatprep.subr.mxu0 0.0
    %1262 = vmatpush2.msra.mxu0 0.0
    %1263 = vmatprep.subr.mxu0 0.0
    %1264 = vmatpush2.msra.mxu0 0.0
    %1265 = vmatprep.subr.mxu0 0.0
    %1266 = vmatpush2.msra.mxu0 %v151
    %1267 = vmatprep.subr.mxu0 0.0
    %1268 = vmatpush2.msra.mxu0 %v150
    %1269 = vmatprep.subr.mxu0 0.0
    %1270 = vmatpush2.msra.mxu0 %v149
    %1271 = vmatprep.subr.mxu0 0.0
    %1272 = vmatpush2.msra.mxu0 %v148
    %1273 = vmatprep.subr.mxu0 0.0
    %1274 = vmatpush2.msra.mxu0 %v147
    %1275 = vmatprep.subr.mxu0 0.0
    %1276 = vmatpush2.msra.mxu0 %v146
    %1277 = vmatprep.subr.mxu0 0.0
    %1278 = vmatpush2.msra.mxu0 %v145
    %1279 = vmatprep.subr.mxu0 0.0
    %1280 = vmatpush2.msra.mxu0 %v144
    %1281 = vmatprep.subr.mxu0 0.0
    %1282 = vmatpush2.msra.mxu0 %v143
    %1283 = vmatprep.subr.mxu0 0.0
    %1284 = vmatpush2.msra.mxu0 %v142
    %1285 = vmatprep.subr.mxu0 0.0
    %1286 = vmatpush2.msra.mxu0 %v141
    %1287 = vmatprep.subr.mxu0 0.0
    %1288 = vmatpush2.msra.mxu0 %v140
    %1289 = vmatprep.subr.mxu0 0.0
    %1290 = vmatpush2.msra.mxu0 %v139
    %1291 = vmatprep.subr.mxu0 0.0
    %1292 = vmatpush2.msra.mxu0 %v138
    %1293 = vmatprep.mubr.f32.mxu0 %v1227
    %1294 = vmatmul.mubr.f32.gmra.mxu0 %v1224
    %v1295 = vpop.f32.mrf.mxu0
    %v1296 = vadd.f32 %v283, %v1295
    %v1297 = vpop.f32.mrf.mxu0
    %1298 = vdwg.mxu0
    %v1299 = vmax.f32 %v1296, 0.0
    %1300 = vrot.lane.b32.xlu0 %v120, 56
    %v1301 = vpop.permute.xlu0 %1300
    %1303 = vrot.lane.b32.xlu0 %v120, 112
    %v1304 = vpop.permute.xlu0 %1303
    %v1306 = vsel %vm273, %v120, %v1301
    %v1307 = vsel %vm275, %v1306, %v1301
    %v1308 = vsel %vm277, %v1301, %v1304
    %v1310 = vsel %vm285, %v1308, 0
    %1312 = vmatprep.subr.mxu0 0.0
    %1313 = vmatpush1.msra.mxu0 %v137
    %1314 = vmatprep.subr.mxu0 0.0
    %1315 = vmatpush1.msra.mxu0 %v136
    %1316 = vmatprep.subr.mxu0 0.0
    %1317 = vmatpush1.msra.mxu0 %v135
    %1318 = vmatprep.subr.mxu0 0.0
    %1319 = vmatpush1.msra.mxu0 %v134
    %1320 = vmatprep.subr.mxu0 0.0
    %1321 = vmatpush1.msra.mxu0 %v133
    %1322 = vmatprep.subr.mxu0 0.0
    %1323 = vmatpush1.msra.mxu0 %v132
    %1324 = vmatprep.subr.mxu0 0.0
    %1325 = vmatpush1.msra.mxu0 %v131
    %1326 = vmatprep.subr.mxu0 0.0
    %1327 = vmatpush1.msra.mxu0 %v130
    %1328 = vmatprep.subr.mxu0 0.0
    %1329 = vmatpush1.msra.mxu0 %v129
    %1330 = vmatprep.subr.mxu0 0.0
    %1331 = vmatpush1.msra.mxu0 %v128
    %1332 = vmatprep.subr.mxu0 0.0
    %1333 = vmatpush1.msra.mxu0 %v127
    %1334 = vmatprep.subr.mxu0 0.0
    %1335 = vmatpush1.msra.mxu0 %v126
    %1336 = vmatprep.subr.mxu0 0.0
    %1337 = vmatpush1.msra.mxu0 %v125
    %1338 = vmatprep.subr.mxu0 0.0
    %1339 = vmatpush1.msra.mxu0 %v124
    %1340 = vmatprep.subr.mxu0 0.0
    %1341 = vmatpush1.msra.mxu0 %v123
    %1342 = vmatprep.subr.mxu0 0.0
    %1343 = vmatpush1.msra.mxu0 %v122
    %1344 = vmatprep.subr.mxu0 0.0
    %1345 = vmatpush2.msra.mxu0 0.0
    %1346 = vmatprep.subr.mxu0 0.0
    %1347 = vmatpush2.msra.mxu0 0.0
    %1348 = vmatprep.subr.mxu0 0.0
    %1349 = vmatpush2.msra.mxu0 %v151
    %1350 = vmatprep.subr.mxu0 0.0
    %1351 = vmatpush2.msra.mxu0 %v150
    %1352 = vmatprep.subr.mxu0 0.0
    %1353 = vmatpush2.msra.mxu0 %v149
    %1354 = vmatprep.subr.mxu0 0.0
    %1355 = vmatpush2.msra.mxu0 %v148
    %1356 = vmatprep.subr.mxu0 0.0
    %1357 = vmatpush2.msra.mxu0 %v147
    %1358 = vmatprep.subr.mxu0 0.0
    %1359 = vmatpush2.msra.mxu0 %v146
    %1360 = vmatprep.subr.mxu0 0.0
    %1361 = vmatpush2.msra.mxu0 %v145
    %1362 = vmatprep.subr.mxu0 0.0
    %1363 = vmatpush2.msra.mxu0 %v144
    %1364 = vmatprep.subr.mxu0 0.0
    %1365 = vmatpush2.msra.mxu0 %v143
    %1366 = vmatprep.subr.mxu0 0.0
    %1367 = vmatpush2.msra.mxu0 %v142
    %1368 = vmatprep.subr.mxu0 0.0
    %1369 = vmatpush2.msra.mxu0 %v141
    %1370 = vmatprep.subr.mxu0 0.0
    %1371 = vmatpush2.msra.mxu0 %v140
    %1372 = vmatprep.subr.mxu0 0.0
    %1373 = vmatpush2.msra.mxu0 %v139
    %1374 = vmatprep.subr.mxu0 0.0
    %1375 = vmatpush2.msra.mxu0 %v138
    %1376 = vmatprep.mubr.f32.mxu0 %v1310
    %1377 = vmatmul.mubr.f32.gmra.mxu0 %v1307
    %v1378 = vpop.f32.mrf.mxu0
    %v1379 = vadd.f32 %v283, %v1378
    %v1380 = vpop.f32.mrf.mxu0
    %1381 = vdwg.mxu0
    %v1382 = vmax.f32 %v1379, 0.0
    %1383 = vrot.lane.b32.xlu0 %v120, 64
    %v1384 = vpop.permute.xlu0 %1383
    %1387 = vrot.lane.b32.xlu0 %v121, 120
    %v1388 = vpop.permute.xlu0 %1387
    %1390 = vrot.lane.b32.xlu0 %v121, 48
    %v1391 = vpop.permute.xlu0 %1390
    %v1393 = vsel %vm273, %v1384, %v1218
    %v1394 = vsel %vm275, %v1393, %v1388
    %v1395 = vsel %vm277, %v1388, %v1391
    %v1397 = vsel %vm285, %v1395, 0
    %1399 = vmatprep.subr.mxu0 0.0
    %1400 = vmatpush1.msra.mxu0 %v137
    %1401 = vmatprep.subr.mxu0 0.0
    %1402 = vmatpush1.msra.mxu0 %v136
    %1403 = vmatprep.subr.mxu0 0.0
    %1404 = vmatpush1.msra.mxu0 %v135
    %1405 = vmatprep.subr.mxu0 0.0
    %1406 = vmatpush1.msra.mxu0 %v134
    %1407 = vmatprep.subr.mxu0 0.0
    %1408 = vmatpush1.msra.mxu0 %v133
    %1409 = vmatprep.subr.mxu0 0.0
    %1410 = vmatpush1.msra.mxu0 %v132
    %1411 = vmatprep.subr.mxu0 0.0
    %1412 = vmatpush1.msra.mxu0 %v131
    %1413 = vmatprep.subr.mxu0 0.0
    %1414 = vmatpush1.msra.mxu0 %v130
    %1415 = vmatprep.subr.mxu0 0.0
    %1416 = vmatpush1.msra.mxu0 %v129
    %1417 = vmatprep.subr.mxu0 0.0
    %1418 = vmatpush1.msra.mxu0 %v128
    %1419 = vmatprep.subr.mxu0 0.0
    %1420 = vmatpush1.msra.mxu0 %v127
    %1421 = vmatprep.subr.mxu0 0.0
    %1422 = vmatpush1.msra.mxu0 %v126
    %1423 = vmatprep.subr.mxu0 0.0
    %1424 = vmatpush1.msra.mxu0 %v125
    %1425 = vmatprep.subr.mxu0 0.0
    %1426 = vmatpush1.msra.mxu0 %v124
    %1427 = vmatprep.subr.mxu0 0.0
    %1428 = vmatpush1.msra.mxu0 %v123
    %1429 = vmatprep.subr.mxu0 0.0
    %1430 = vmatpush1.msra.mxu0 %v122
    %1431 = vmatprep.subr.mxu0 0.0
    %1432 = vmatpush2.msra.mxu0 0.0
    %1433 = vmatprep.subr.mxu0 0.0
    %1434 = vmatpush2.msra.mxu0 0.0
    %1435 = vmatprep.subr.mxu0 0.0
    %1436 = vmatpush2.msra.mxu0 %v151
    %1437 = vmatprep.subr.mxu0 0.0
    %1438 = vmatpush2.msra.mxu0 %v150
    %1439 = vmatprep.subr.mxu0 0.0
    %1440 = vmatpush2.msra.mxu0 %v149
    %1441 = vmatprep.subr.mxu0 0.0
    %1442 = vmatpush2.msra.mxu0 %v148
    %1443 = vmatprep.subr.mxu0 0.0
    %1444 = vmatpush2.msra.mxu0 %v147
    %1445 = vmatprep.subr.mxu0 0.0
    %1446 = vmatpush2.msra.mxu0 %v146
    %1447 = vmatprep.subr.mxu0 0.0
    %1448 = vmatpush2.msra.mxu0 %v145
    %1449 = vmatprep.subr.mxu0 0.0
    %1450 = vmatpush2.msra.mxu0 %v144
    %1451 = vmatprep.subr.mxu0 0.0
    %1452 = vmatpush2.msra.mxu0 %v143
    %1453 = vmatprep.subr.mxu0 0.0
    %1454 = vmatpush2.msra.mxu0 %v142
    %1455 = vmatprep.subr.mxu0 0.0
    %1456 = vmatpush2.msra.mxu0 %v141
    %1457 = vmatprep.subr.mxu0 0.0
    %1458 = vmatpush2.msra.mxu0 %v140
    %1459 = vmatprep.subr.mxu0 0.0
    %1460 = vmatpush2.msra.mxu0 %v139
    %1461 = vmatprep.subr.mxu0 0.0
    %1462 = vmatpush2.msra.mxu0 %v138
    %1463 = vmatprep.mubr.f32.mxu0 %v1397
    %1464 = vmatmul.mubr.f32.gmra.mxu0 %v1394
    %v1465 = vpop.f32.mrf.mxu0
    %v1466 = vadd.f32 %v283, %v1465
    %v1467 = vpop.f32.mrf.mxu0
    %1468 = vdwg.mxu0
    %v1469 = vmax.f32 %v1466, 0.0
    %1470 = vrot.lane.b32.xlu0 %v121, 56
    %v1471 = vpop.permute.xlu0 %1470
    %1473 = vrot.lane.b32.xlu0 %v121, 112
    %v1474 = vpop.permute.xlu0 %1473
    %v1476 = vsel %vm273, %v121, %v1471
    %v1477 = vsel %vm275, %v1476, %v1471
    %v1478 = vsel %vm277, %v1471, %v1474
    %v1480 = vsel %vm285, %v1478, 0
    %1482 = vmatprep.subr.mxu0 0.0
    %1483 = vmatpush1.msra.mxu0 %v137
    %1484 = vmatprep.subr.mxu0 0.0
    %1485 = vmatpush1.msra.mxu0 %v136
    %1486 = vmatprep.subr.mxu0 0.0
    %1487 = vmatpush1.msra.mxu0 %v135
    %1488 = vmatprep.subr.mxu0 0.0
    %1489 = vmatpush1.msra.mxu0 %v134
    %1490 = vmatprep.subr.mxu0 0.0
    %1491 = vmatpush1.msra.mxu0 %v133
    %1492 = vmatprep.subr.mxu0 0.0
    %1493 = vmatpush1.msra.mxu0 %v132
    %1494 = vmatprep.subr.mxu0 0.0
    %1495 = vmatpush1.msra.mxu0 %v131
    %1496 = vmatprep.subr.mxu0 0.0
    %1497 = vmatpush1.msra.mxu0 %v130
    %1498 = vmatprep.subr.mxu0 0.0
    %1499 = vmatpush1.msra.mxu0 %v129
    %1500 = vmatprep.subr.mxu0 0.0
    %1501 = vmatpush1.msra.mxu0 %v128
    %1502 = vmatprep.subr.mxu0 0.0
    %1503 = vmatpush1.msra.mxu0 %v127
    %1504 = vmatprep.subr.mxu0 0.0
    %1505 = vmatpush1.msra.mxu0 %v126
    %1506 = vmatprep.subr.mxu0 0.0
    %1507 = vmatpush1.msra.mxu0 %v125
    %1508 = vmatprep.subr.mxu0 0.0
    %1509 = vmatpush1.msra.mxu0 %v124
    %1510 = vmatprep.subr.mxu0 0.0
    %1511 = vmatpush1.msra.mxu0 %v123
    %1512 = vmatprep.subr.mxu0 0.0
    %1513 = vmatpush1.msra.mxu0 %v122
    %1514 = vmatprep.subr.mxu0 0.0
    %1515 = vmatpush2.msra.mxu0 0.0
    %1516 = vmatprep.subr.mxu0 0.0
    %1517 = vmatpush2.msra.mxu0 0.0
    %1518 = vmatprep.subr.mxu0 0.0
    %1519 = vmatpush2.msra.mxu0 %v151
    %1520 = vmatprep.subr.mxu0 0.0
    %1521 = vmatpush2.msra.mxu0 %v150
    %1522 = vmatprep.subr.mxu0 0.0
    %1523 = vmatpush2.msra.mxu0 %v149
    %1524 = vmatprep.subr.mxu0 0.0
    %1525 = vmatpush2.msra.mxu0 %v148
    %1526 = vmatprep.subr.mxu0 0.0
    %1527 = vmatpush2.msra.mxu0 %v147
    %1528 = vmatprep.subr.mxu0 0.0
    %1529 = vmatpush2.msra.mxu0 %v146
    %1530 = vmatprep.subr.mxu0 0.0
    %1531 = vmatpush2.msra.mxu0 %v145
    %1532 = vmatprep.subr.mxu0 0.0
    %1533 = vmatpush2.msra.mxu0 %v144
    %1534 = vmatprep.subr.mxu0 0.0
    %1535 = vmatpush2.msra.mxu0 %v143
    %1536 = vmatprep.subr.mxu0 0.0
    %1537 = vmatpush2.msra.mxu0 %v142
    %1538 = vmatprep.subr.mxu0 0.0
    %1539 = vmatpush2.msra.mxu0 %v141
    %1540 = vmatprep.subr.mxu0 0.0
    %1541 = vmatpush2.msra.mxu0 %v140
    %1542 = vmatprep.subr.mxu0 0.0
    %1543 = vmatpush2.msra.mxu0 %v139
    %1544 = vmatprep.subr.mxu0 0.0
    %1545 = vmatpush2.msra.mxu0 %v138
    %1546 = vmatprep.mubr.f32.mxu0 %v1480
    %1547 = vmatmul.mubr.f32.gmra.mxu0 %v1477
    %v1548 = vpop.f32.mrf.mxu0
    %v1549 = vadd.f32 %v283, %v1548
    %v1550 = vpop.f32.mrf.mxu0
    %1551 = vdwg.mxu0
    %v1552 = vmax.f32 %v1549, 0.0
    %1554 = vrot.lane.b32.xlu0 %v359, 104
    %v1555 = vpop.permute.xlu0 %1554
    %1558 = vrot.lane.b32.xlu0 %v449, 96
    %v1559 = vpop.permute.xlu0 %1558
    %1561 = vrot.lane.b32.xlu0 %v449, 72
    %v1562 = vpop.permute.xlu0 %1561
    %v1564 = vsel %vm285, %v359, %v1555
    %vm1565 = vcmask 785408
    %v1566 = vsel %vm1565, %v1555, %v1559
    %vm1567 = vcmask 654336
    %v1568 = vsel %vm1567, %v1559, %v1562
    %v1570 = vlaneseq
    %v1571 = vshrl.u32 %v1570, 7
    %v1572 = vsub.s32 0, %v1571
    %v1573 = vrot.slane %v265, %v1572
    %v1574 = vlaneseq
    %v1575 = vshrl.u32 %v1574, 7
    %v1576 = vsub.s32 1, %v1575
    %v1577 = vrot.slane %v265, %v1576
    %vm1580 = vcmask 523264
    %v1581 = vsel %vm1580, %v1562, 0
    %1583 = vmatprep.subr.mxu0 %v184
    %1584 = vmatpush1.msra.mxu0 %v183
    %1585 = vmatprep.subr.mxu0 %v182
    %1586 = vmatpush1.msra.mxu0 %v181
    %1587 = vmatprep.subr.mxu0 %v180
    %1588 = vmatpush1.msra.mxu0 %v179
    %1589 = vmatprep.subr.mxu0 %v178
    %1590 = vmatpush1.msra.mxu0 %v177
    %1591 = vmatprep.subr.mxu0 %v176
    %1592 = vmatpush1.msra.mxu0 %v175
    %1593 = vmatprep.subr.mxu0 %v174
    %1594 = vmatpush1.msra.mxu0 %v173
    %1595 = vmatprep.subr.mxu0 %v172
    %1596 = vmatpush1.msra.mxu0 %v171
    %1597 = vmatprep.subr.mxu0 %v170
    %1598 = vmatpush1.msra.mxu0 %v169
    %1599 = vmatprep.subr.mxu0 %v168
    %1600 = vmatpush1.msra.mxu0 %v167
    %1601 = vmatprep.subr.mxu0 %v166
    %1602 = vmatpush1.msra.mxu0 %v165
    %1603 = vmatprep.subr.mxu0 %v164
    %1604 = vmatpush1.msra.mxu0 %v163
    %1605 = vmatprep.subr.mxu0 %v162
    %1606 = vmatpush1.msra.mxu0 %v161
    %1607 = vmatprep.subr.mxu0 %v160
    %1608 = vmatpush1.msra.mxu0 %v159
    %1609 = vmatprep.subr.mxu0 %v158
    %1610 = vmatpush1.msra.mxu0 %v157
    %1611 = vmatprep.subr.mxu0 %v156
    %1612 = vmatpush1.msra.mxu0 %v155
    %1613 = vmatprep.subr.mxu0 %v154
    %1614 = vmatpush1.msra.mxu0 %v153
    %1615 = vmatprep.subr.mxu0 %v216
    %1616 = vmatpush2.msra.mxu0 %v215
    %1617 = vmatprep.subr.mxu0 %v214
    %1618 = vmatpush2.msra.mxu0 %v213
    %1619 = vmatprep.subr.mxu0 %v212
    %1620 = vmatpush2.msra.mxu0 %v211
    %1621 = vmatprep.subr.mxu0 %v210
    %1622 = vmatpush2.msra.mxu0 %v209
    %1623 = vmatprep.subr.mxu0 %v208
    %1624 = vmatpush2.msra.mxu0 %v207
    %1625 = vmatprep.subr.mxu0 %v206
    %1626 = vmatpush2.msra.mxu0 %v205
    %1627 = vmatprep.subr.mxu0 %v204
    %1628 = vmatpush2.msra.mxu0 %v203
    %1629 = vmatprep.subr.mxu0 %v202
    %1630 = vmatpush2.msra.mxu0 %v201
    %1631 = vmatprep.subr.mxu0 %v200
    %1632 = vmatpush2.msra.mxu0 %v199
    %1633 = vmatprep.subr.mxu0 %v198
    %1634 = vmatpush2.msra.mxu0 %v197
    %1635 = vmatprep.subr.mxu0 %v196
    %1636 = vmatpush2.msra.mxu0 %v195
    %1637 = vmatprep.subr.mxu0 %v194
    %1638 = vmatpush2.msra.mxu0 %v193
    %1639 = vmatprep.subr.mxu0 %v192
    %1640 = vmatpush2.msra.mxu0 %v191
    %1641 = vmatprep.subr.mxu0 %v190
    %1642 = vmatpush2.msra.mxu0 %v189
    %1643 = vmatprep.subr.mxu0 %v188
    %1644 = vmatpush2.msra.mxu0 %v187
    %1645 = vmatprep.subr.mxu0 %v186
    %1646 = vmatpush2.msra.mxu0 %v185
    %1647 = vmatprep.mubr.f32.mxu0 %v1566
    %1648 = vmatmul.mubr.f32.gmra.mxu0 %v1564
    %v1649 = vpop.f32.mrf.mxu0
    %v1650 = vadd.f32 %v1573, %v1649
    %v1651 = vpop.f32.mrf.mxu0
    %v1652 = vadd.f32 %v1577, %v1651
    %1653 = vdwg.mxu0
    %1654 = vmatprep.subr.mxu0 %v248
    %1655 = vmatpush1.msra.mxu0 %v247
    %1656 = vmatprep.subr.mxu0 %v246
    %1657 = vmatpush1.msra.mxu0 %v245
    %1658 = vmatprep.subr.mxu0 %v244
    %1659 = vmatpush1.msra.mxu0 %v243
    %1660 = vmatprep.subr.mxu0 %v242
    %1661 = vmatpush1.msra.mxu0 %v241
    %1662 = vmatprep.subr.mxu0 %v240
    %1663 = vmatpush1.msra.mxu0 %v239
    %1664 = vmatprep.subr.mxu0 %v238
    %1665 = vmatpush1.msra.mxu0 %v237
    %1666 = vmatprep.subr.mxu0 %v236
    %1667 = vmatpush1.msra.mxu0 %v235
    %1668 = vmatprep.subr.mxu0 %v234
    %1669 = vmatpush1.msra.mxu0 %v233
    %1670 = vmatprep.subr.mxu0 %v232
    %1671 = vmatpush1.msra.mxu0 %v231
    %1672 = vmatprep.subr.mxu0 %v230
    %1673 = vmatpush1.msra.mxu0 %v229
    %1674 = vmatprep.subr.mxu0 %v228
    %1675 = vmatpush1.msra.mxu0 %v227
    %1676 = vmatprep.subr.mxu0 %v226
    %1677 = vmatpush1.msra.mxu0 %v225
    %1678 = vmatprep.subr.mxu0 %v224
    %1679 = vmatpush1.msra.mxu0 %v223
    %1680 = vmatprep.subr.mxu0 %v222
    %1681 = vmatpush1.msra.mxu0 %v221
    %1682 = vmatprep.subr.mxu0 %v220
    %1683 = vmatpush1.msra.mxu0 %v219
    %1684 = vmatprep.subr.mxu0 %v218
    %1685 = vmatpush1.msra.mxu0 %v217
    %1686 = vmatprep.subr.mxu0 0.0
    %1687 = vmatpush2.msra.mxu0 0.0
    %1688 = vmatprep.subr.mxu0 0.0
    %1689 = vmatpush2.msra.mxu0 0.0
    %1690 = vmatprep.subr.mxu0 0.0
    %1691 = vmatpush2.msra.mxu0 0.0
    %1692 = vmatprep.subr.mxu0 0.0
    %1693 = vmatpush2.msra.mxu0 0.0
    %1694 = vmatprep.subr.mxu0 0.0
    %1695 = vmatpush2.msra.mxu0 0.0
    %1696 = vmatprep.subr.mxu0 0.0
    %1697 = vmatpush2.msra.mxu0 0.0
    %1698 = vmatprep.subr.mxu0 0.0
    %1699 = vmatpush2.msra.mxu0 0.0
    %1700 = vmatprep.subr.mxu0 0.0
    %1701 = vmatpush2.msra.mxu0 0.0
    %1702 = vmatprep.subr.mxu0 %v264
    %1703 = vmatpush2.msra.mxu0 %v263
    %1704 = vmatprep.subr.mxu0 %v262
    %1705 = vmatpush2.msra.mxu0 %v261
    %1706 = vmatprep.subr.mxu0 %v260
    %1707 = vmatpush2.msra.mxu0 %v259
    %1708 = vmatprep.subr.mxu0 %v258
    %1709 = vmatpush2.msra.mxu0 %v257
    %1710 = vmatprep.subr.mxu0 %v256
    %1711 = vmatpush2.msra.mxu0 %v255
    %1712 = vmatprep.subr.mxu0 %v254
    %1713 = vmatpush2.msra.mxu0 %v253
    %1714 = vmatprep.subr.mxu0 %v252
    %1715 = vmatpush2.msra.mxu0 %v251
    %1716 = vmatprep.subr.mxu0 %v250
    %1717 = vmatpush2.msra.mxu0 %v249
    %1718 = vmatprep.mubr.f32.mxu0 %v1581
    %1719 = vmatmul.mubr.f32.gmra.mxu0 %v1568
    %v1720 = vpop.f32.mrf.mxu0
    %v1721 = vadd.f32 %v1650, %v1720
    %v1722 = vpop.f32.mrf.mxu0
    %v1723 = vadd.f32 %v1652, %v1722
    %1724 = vdwg.mxu0
    %v1725 = vmax.f32 %v1721, 0.0
    %v1726 = vmax.f32 %v1723, 0.0
    %v1727 = vld [vmem:[#allocation11] sm:$0xff]
    %v1728 = vld [vmem:[#allocation11 + $0x8] sm:$0xff]
    %v1729 = vld [vmem:[#allocation11 + $0x10] sm:$0xff]
    %v1730 = vld [vmem:[#allocation11 + $0x18] sm:$0xff]
    %v1731 = vld [vmem:[#allocation11 + $0x20] sm:$0xff]
    %v1732 = vld [vmem:[#allocation11 + $0x28] sm:$0xff]
    %v1733 = vld [vmem:[#allocation11 + $0x30] sm:$0xff]
    %v1734 = vld [vmem:[#allocation11 + $0x38] sm:$0xff]
    %v1735 = vld [vmem:[#allocation11 + $0x40] sm:$0xff]
    %v1736 = vld [vmem:[#allocation11 + $0x48] sm:$0xff]
    %v1737 = vld [vmem:[#allocation11 + $0x50] sm:$0xff]
    %v1738 = vld [vmem:[#allocation11 + $0x58] sm:$0xff]
    %v1739 = vld [vmem:[#allocation11 + $0x60] sm:$0xff]
    %v1740 = vld [vmem:[#allocation11 + $0x68] sm:$0xff]
    %v1741 = vld [vmem:[#allocation11 + $0x70] sm:$0xff]
    %v1742 = vld [vmem:[#allocation11 + $0x78] sm:$0xff]
    %v1743 = vld [vmem:[#allocation11 + $0x80] sm:$0xff]
    %v1744 = vld [vmem:[#allocation11 + $0x88] sm:$0xff]
    %v1745 = vld [vmem:[#allocation11 + $0x90] sm:$0xff]
    %v1746 = vld [vmem:[#allocation11 + $0x98] sm:$0xff]
    %v1747 = vld [vmem:[#allocation11 + $0xa0] sm:$0xff]
    %v1748 = vld [vmem:[#allocation11 + $0xa8] sm:$0xff]
    %v1749 = vld [vmem:[#allocation11 + $0xb0] sm:$0xff]
    %v1750 = vld [vmem:[#allocation11 + $0xb8] sm:$0xff]
    %v1751 = vld [vmem:[#allocation11 + $0xc0] sm:$0xff]
    %v1752 = vld [vmem:[#allocation11 + $0xc8] sm:$0xff]
    %v1753 = vld [vmem:[#allocation11 + $0xd0] sm:$0xff]
    %v1754 = vld [vmem:[#allocation11 + $0xd8] sm:$0xff]
    %1755 = vrot.lane.b32.xlu0 %v449, 104
    %v1756 = vpop.permute.xlu0 %1755
    %1759 = vrot.lane.b32.xlu0 %v532, 96
    %v1760 = vpop.permute.xlu0 %1759
    %1762 = vrot.lane.b32.xlu0 %v532, 72
    %v1763 = vpop.permute.xlu0 %1762
    %v1765 = vsel %vm285, %v449, %v1756
    %v1766 = vsel %vm1565, %v1756, %v1760
    %v1767 = vsel %vm1567, %v1760, %v1763
    %v1768 = vsel %vm1580, %v1763, 0
    %1770 = vmatprep.subr.mxu0 %v184
    %1771 = vmatpush1.msra.mxu0 %v183
    %1772 = vmatprep.subr.mxu0 %v182
    %1773 = vmatpush1.msra.mxu0 %v181
    %1774 = vmatprep.subr.mxu0 %v180
    %1775 = vmatpush1.msra.mxu0 %v179
    %1776 = vmatprep.subr.mxu0 %v178
    %1777 = vmatpush1.msra.mxu0 %v177
    %1778 = vmatprep.subr.mxu0 %v176
    %1779 = vmatpush1.msra.mxu0 %v175
    %1780 = vmatprep.subr.mxu0 %v174
    %1781 = vmatpush1.msra.mxu0 %v173
    %1782 = vmatprep.subr.mxu0 %v172
    %1783 = vmatpush1.msra.mxu0 %v171
    %1784 = vmatprep.subr.mxu0 %v170
    %1785 = vmatpush1.msra.mxu0 %v169
    %1786 = vmatprep.subr.mxu0 %v168
    %1787 = vmatpush1.msra.mxu0 %v167
    %1788 = vmatprep.subr.mxu0 %v166
    %1789 = vmatpush1.msra.mxu0 %v165
    %1790 = vmatprep.subr.mxu0 %v164
    %1791 = vmatpush1.msra.mxu0 %v163
    %1792 = vmatprep.subr.mxu0 %v162
    %1793 = vmatpush1.msra.mxu0 %v161
    %1794 = vmatprep.subr.mxu0 %v160
    %1795 = vmatpush1.msra.mxu0 %v159
    %1796 = vmatprep.subr.mxu0 %v158
    %1797 = vmatpush1.msra.mxu0 %v157
    %1798 = vmatprep.subr.mxu0 %v156
    %1799 = vmatpush1.msra.mxu0 %v155
    %1800 = vmatprep.subr.mxu0 %v154
    %1801 = vmatpush1.msra.mxu0 %v153
    %1802 = vmatprep.subr.mxu0 %v216
    %1803 = vmatpush2.msra.mxu0 %v215
    %1804 = vmatprep.subr.mxu0 %v214
    %1805 = vmatpush2.msra.mxu0 %v213
    %1806 = vmatprep.subr.mxu0 %v212
    %1807 = vmatpush2.msra.mxu0 %v211
    %1808 = vmatprep.subr.mxu0 %v210
    %1809 = vmatpush2.msra.mxu0 %v209
    %1810 = vmatprep.subr.mxu0 %v208
    %1811 = vmatpush2.msra.mxu0 %v207
    %1812 = vmatprep.subr.mxu0 %v206
    %1813 = vmatpush2.msra.mxu0 %v205
    %1814 = vmatprep.subr.mxu0 %v204
    %1815 = vmatpush2.msra.mxu0 %v203
    %1816 = vmatprep.subr.mxu0 %v202
    %1817 = vmatpush2.msra.mxu0 %v201
    %1818 = vmatprep.subr.mxu0 %v200
    %1819 = vmatpush2.msra.mxu0 %v199
    %1820 = vmatprep.subr.mxu0 %v198
    %1821 = vmatpush2.msra.mxu0 %v197
    %1822 = vmatprep.subr.mxu0 %v196
    %1823 = vmatpush2.msra.mxu0 %v195
    %1824 = vmatprep.subr.mxu0 %v194
    %1825 = vmatpush2.msra.mxu0 %v193
    %1826 = vmatprep.subr.mxu0 %v192
    %1827 = vmatpush2.msra.mxu0 %v191
    %1828 = vmatprep.subr.mxu0 %v190
    %1829 = vmatpush2.msra.mxu0 %v189
    %1830 = vmatprep.subr.mxu0 %v188
    %1831 = vmatpush2.msra.mxu0 %v187
    %1832 = vmatprep.subr.mxu0 %v186
    %1833 = vmatpush2.msra.mxu0 %v185
    %1834 = vmatprep.mubr.f32.mxu0 %v1766
    %1835 = vmatmul.mubr.f32.gmra.mxu0 %v1765
    %v1836 = vpop.f32.mrf.mxu0
    %v1837 = vadd.f32 %v1573, %v1836
    %v1838 = vpop.f32.mrf.mxu0
    %v1839 = vadd.f32 %v1577, %v1838
    %1840 = vdwg.mxu0
    %1841 = vmatprep.subr.mxu0 %v248
    %1842 = vmatpush1.msra.mxu0 %v247
    %1843 = vmatprep.subr.mxu0 %v246
    %1844 = vmatpush1.msra.mxu0 %v245
    %1845 = vmatprep.subr.mxu0 %v244
    %1846 = vmatpush1.msra.mxu0 %v243
    %1847 = vmatprep.subr.mxu0 %v242
    %1848 = vmatpush1.msra.mxu0 %v241
    %1849 = vmatprep.subr.mxu0 %v240
    %1850 = vmatpush1.msra.mxu0 %v239
    %1851 = vmatprep.subr.mxu0 %v238
    %1852 = vmatpush1.msra.mxu0 %v237
    %1853 = vmatprep.subr.mxu0 %v236
    %1854 = vmatpush1.msra.mxu0 %v235
    %1855 = vmatprep.subr.mxu0 %v234
    %1856 = vmatpush1.msra.mxu0 %v233
    %1857 = vmatprep.subr.mxu0 %v232
    %1858 = vmatpush1.msra.mxu0 %v231
    %1859 = vmatprep.subr.mxu0 %v230
    %1860 = vmatpush1.msra.mxu0 %v229
    %1861 = vmatprep.subr.mxu0 %v228
    %1862 = vmatpush1.msra.mxu0 %v227
    %1863 = vmatprep.subr.mxu0 %v226
    %1864 = vmatpush1.msra.mxu0 %v225
    %1865 = vmatprep.subr.mxu0 %v224
    %1866 = vmatpush1.msra.mxu0 %v223
    %1867 = vmatprep.subr.mxu0 %v222
    %1868 = vmatpush1.msra.mxu0 %v221
    %1869 = vmatprep.subr.mxu0 %v220
    %1870 = vmatpush1.msra.mxu0 %v219
    %1871 = vmatprep.subr.mxu0 %v218
    %1872 = vmatpush1.msra.mxu0 %v217
    %1873 = vmatprep.subr.mxu0 0.0
    %1874 = vmatpush2.msra.mxu0 0.0
    %1875 = vmatprep.subr.mxu0 0.0
    %1876 = vmatpush2.msra.mxu0 0.0
    %1877 = vmatprep.subr.mxu0 0.0
    %1878 = vmatpush2.msra.mxu0 0.0
    %1879 = vmatprep.subr.mxu0 0.0
    %1880 = vmatpush2.msra.mxu0 0.0
    %1881 = vmatprep.subr.mxu0 0.0
    %1882 = vmatpush2.msra.mxu0 0.0
    %1883 = vmatprep.subr.mxu0 0.0
    %1884 = vmatpush2.msra.mxu0 0.0
    %1885 = vmatprep.subr.mxu0 0.0
    %1886 = vmatpush2.msra.mxu0 0.0
    %1887 = vmatprep.subr.mxu0 0.0
    %1888 = vmatpush2.msra.mxu0 0.0
    %1889 = vmatprep.subr.mxu0 %v264
    %1890 = vmatpush2.msra.mxu0 %v263
    %1891 = vmatprep.subr.mxu0 %v262
    %1892 = vmatpush2.msra.mxu0 %v261
    %1893 = vmatprep.subr.mxu0 %v260
    %1894 = vmatpush2.msra.mxu0 %v259
    %1895 = vmatprep.subr.mxu0 %v258
    %1896 = vmatpush2.msra.mxu0 %v257
    %1897 = vmatprep.subr.mxu0 %v256
    %1898 = vmatpush2.msra.mxu0 %v255
    %1899 = vmatprep.subr.mxu0 %v254
    %1900 = vmatpush2.msra.mxu0 %v253
    %1901 = vmatprep.subr.mxu0 %v252
    %1902 = vmatpush2.msra.mxu0 %v251
    %1903 = vmatprep.subr.mxu0 %v250
    %1904 = vmatpush2.msra.mxu0 %v249
    %1905 = vmatprep.mubr.f32.mxu0 %v1768
    %1906 = vmatmul.mubr.f32.gmra.mxu0 %v1767
    %v1907 = vpop.f32.mrf.mxu0
    %v1908 = vadd.f32 %v1837, %v1907
    %v1909 = vpop.f32.mrf.mxu0
    %v1910 = vadd.f32 %v1839, %v1909
    %1911 = vdwg.mxu0
    %v1912 = vmax.f32 %v1908, 0.0
    %v1913 = vmax.f32 %v1910, 0.0
    %v1914 = vld [vmem:[#allocation11 + $0xe0] sm:$0xff]
    %v1915 = vld [vmem:[#allocation11 + $0xe8] sm:$0xff]
    %v1916 = vld [vmem:[#allocation11 + $0xf0] sm:$0xff]
    %v1917 = vld [vmem:[#allocation11 + $0xf8] sm:$0xff]
    %v1918 = vld [vmem:[#allocation11 + $0x100] sm:$0xff]
    %v1919 = vld [vmem:[#allocation11 + $0x108] sm:$0xff]
    %v1920 = vld [vmem:[#allocation11 + $0x110] sm:$0xff]
    %v1921 = vld [vmem:[#allocation11 + $0x118] sm:$0xff]
    %v1922 = vld [vmem:[#allocation11 + $0x120] sm:$0xff]
    %v1923 = vld [vmem:[#allocation11 + $0x128] sm:$0xff]
    %v1924 = vld [vmem:[#allocation11 + $0x130] sm:$0xff]
    %v1925 = vld [vmem:[#allocation11 + $0x138] sm:$0xff]
    %v1926 = vld [vmem:[#allocation11 + $0x140] sm:$0xff]
    %v1927 = vld [vmem:[#allocation11 + $0x148] sm:$0xff]
    %v1928 = vld [vmem:[#allocation11 + $0x150] sm:$0xff]
    %v1929 = vld [vmem:[#allocation11 + $0x158] sm:$0xff]
    %v1930 = vld [vmem:[#allocation11 + $0x160] sm:$0xff]
    %v1931 = vld [vmem:[#allocation11 + $0x168] sm:$0xff]
    %v1932 = vld [vmem:[#allocation11 + $0x170] sm:$0xff]
    %v1933 = vld [vmem:[#allocation11 + $0x178] sm:$0xff]
    %v1934 = vld [vmem:[#allocation11 + $0x180] sm:$0xff]
    %v1935 = vld [vmem:[#allocation11 + $0x188] sm:$0xff]
    %v1936 = vld [vmem:[#allocation11 + $0x190] sm:$0xff]
    %v1937 = vld [vmem:[#allocation11 + $0x198] sm:$0xff]
    %v1938 = vld [vmem:[#allocation11 + $0x1a0] sm:$0xff]
    %v1939 = vld [vmem:[#allocation11 + $0x1a8] sm:$0xff]
    %v1940 = vld [vmem:[#allocation11 + $0x1b0] sm:$0xff]
    %v1941 = vld [vmem:[#allocation11 + $0x1b8] sm:$0xff]
    %v1943 = vsel %vm1565, %v1913, 0
    %1945 = vmatprep.subr.mxu0 0.0
    %1946 = vmatpush1.msra.mxu0 %v1929
    %1947 = vmatprep.subr.mxu0 0.0
    %1948 = vmatpush1.msra.mxu0 %v1928
    %1949 = vmatprep.subr.mxu0 0.0
    %1950 = vmatpush1.msra.mxu0 %v1927
    %1951 = vmatprep.subr.mxu0 0.0
    %1952 = vmatpush1.msra.mxu0 %v1926
    %1953 = vmatprep.subr.mxu0 0.0
    %1954 = vmatpush1.msra.mxu0 %v1925
    %1955 = vmatprep.subr.mxu0 0.0
    %1956 = vmatpush1.msra.mxu0 %v1924
    %1957 = vmatprep.subr.mxu0 0.0
    %1958 = vmatpush1.msra.mxu0 %v1923
    %1959 = vmatprep.subr.mxu0 0.0
    %1960 = vmatpush1.msra.mxu0 %v1922
    %1961 = vmatprep.subr.mxu0 0.0
    %1962 = vmatpush1.msra.mxu0 %v1921
    %1963 = vmatprep.subr.mxu0 0.0
    %1964 = vmatpush1.msra.mxu0 %v1920
    %1965 = vmatprep.subr.mxu0 0.0
    %1966 = vmatpush1.msra.mxu0 %v1919
    %1967 = vmatprep.subr.mxu0 0.0
    %1968 = vmatpush1.msra.mxu0 %v1918
    %1969 = vmatprep.subr.mxu0 0.0
    %1970 = vmatpush1.msra.mxu0 %v1917
    %1971 = vmatprep.subr.mxu0 0.0
    %1972 = vmatpush1.msra.mxu0 %v1916
    %1973 = vmatprep.subr.mxu0 0.0
    %1974 = vmatpush1.msra.mxu0 %v1915
    %1975 = vmatprep.subr.mxu0 0.0
    %1976 = vmatpush1.msra.mxu0 %v1914
    %1977 = vmatprep.subr.mxu0 0.0
    %1978 = vmatpush2.msra.mxu0 0.0
    %1979 = vmatprep.subr.mxu0 0.0
    %1980 = vmatpush2.msra.mxu0 0.0
    %1981 = vmatprep.subr.mxu0 0.0
    %1982 = vmatpush2.msra.mxu0 0.0
    %1983 = vmatprep.subr.mxu0 0.0
    %1984 = vmatpush2.msra.mxu0 0.0
    %1985 = vmatprep.subr.mxu0 0.0
    %1986 = vmatpush2.msra.mxu0 %v1941
    %1987 = vmatprep.subr.mxu0 0.0
    %1988 = vmatpush2.msra.mxu0 %v1940
    %1989 = vmatprep.subr.mxu0 0.0
    %1990 = vmatpush2.msra.mxu0 %v1939
    %1991 = vmatprep.subr.mxu0 0.0
    %1992 = vmatpush2.msra.mxu0 %v1938
    %1993 = vmatprep.subr.mxu0 0.0
    %1994 = vmatpush2.msra.mxu0 %v1937
    %1995 = vmatprep.subr.mxu0 0.0
    %1996 = vmatpush2.msra.mxu0 %v1936
    %1997 = vmatprep.subr.mxu0 0.0
    %1998 = vmatpush2.msra.mxu0 %v1935
    %1999 = vmatprep.subr.mxu0 0.0
    %2000 = vmatpush2.msra.mxu0 %v1934
    %2001 = vmatprep.subr.mxu0 0.0
    %2002 = vmatpush2.msra.mxu0 %v1933
    %2003 = vmatprep.subr.mxu0 0.0
    %2004 = vmatpush2.msra.mxu0 %v1932
    %2005 = vmatprep.subr.mxu0 0.0
    %2006 = vmatpush2.msra.mxu0 %v1931
    %2007 = vmatprep.subr.mxu0 0.0
    %2008 = vmatpush2.msra.mxu0 %v1930
    %2009 = vmatprep.mubr.f32.mxu0 %v1943
    %2010 = vmatmul.mubr.f32.gmra.mxu0 %v1912
    %v2011 = vpop.f32.mrf.mxu0
    %v2012 = vadd.f32 0.0, %v2011
    %v2013 = vpop.f32.mrf.mxu0
    %2014 = vdwg.mxu0
    %v2016 = vsel %vm1565, %v1726, 0
    %2018 = vmatprep.subr.mxu0 0.0
    %2019 = vmatpush1.msra.mxu0 %v1742
    %2020 = vmatprep.subr.mxu0 0.0
    %2021 = vmatpush1.msra.mxu0 %v1741
    %2022 = vmatprep.subr.mxu0 0.0
    %2023 = vmatpush1.msra.mxu0 %v1740
    %2024 = vmatprep.subr.mxu0 0.0
    %2025 = vmatpush1.msra.mxu0 %v1739
    %2026 = vmatprep.subr.mxu0 0.0
    %2027 = vmatpush1.msra.mxu0 %v1738
    %2028 = vmatprep.subr.mxu0 0.0
    %2029 = vmatpush1.msra.mxu0 %v1737
    %2030 = vmatprep.subr.mxu0 0.0
    %2031 = vmatpush1.msra.mxu0 %v1736
    %2032 = vmatprep.subr.mxu0 0.0
    %2033 = vmatpush1.msra.mxu0 %v1735
    %2034 = vmatprep.subr.mxu0 0.0
    %2035 = vmatpush1.msra.mxu0 %v1734
    %2036 = vmatprep.subr.mxu0 0.0
    %2037 = vmatpush1.msra.mxu0 %v1733
    %2038 = vmatprep.subr.mxu0 0.0
    %2039 = vmatpush1.msra.mxu0 %v1732
    %2040 = vmatprep.subr.mxu0 0.0
    %2041 = vmatpush1.msra.mxu0 %v1731
    %2042 = vmatprep.subr.mxu0 0.0
    %2043 = vmatpush1.msra.mxu0 %v1730
    %2044 = vmatprep.subr.mxu0 0.0
    %2045 = vmatpush1.msra.mxu0 %v1729
    %2046 = vmatprep.subr.mxu0 0.0
    %2047 = vmatpush1.msra.mxu0 %v1728
    %2048 = vmatprep.subr.mxu0 0.0
    %2049 = vmatpush1.msra.mxu0 %v1727
    %2050 = vmatprep.subr.mxu0 0.0
    %2051 = vmatpush2.msra.mxu0 0.0
    %2052 = vmatprep.subr.mxu0 0.0
    %2053 = vmatpush2.msra.mxu0 0.0
    %2054 = vmatprep.subr.mxu0 0.0
    %2055 = vmatpush2.msra.mxu0 0.0
    %2056 = vmatprep.subr.mxu0 0.0
    %2057 = vmatpush2.msra.mxu0 0.0
    %2058 = vmatprep.subr.mxu0 0.0
    %2059 = vmatpush2.msra.mxu0 %v1754
    %2060 = vmatprep.subr.mxu0 0.0
    %2061 = vmatpush2.msra.mxu0 %v1753
    %2062 = vmatprep.subr.mxu0 0.0
    %2063 = vmatpush2.msra.mxu0 %v1752
    %2064 = vmatprep.subr.mxu0 0.0
    %2065 = vmatpush2.msra.mxu0 %v1751
    %2066 = vmatprep.subr.mxu0 0.0
    %2067 = vmatpush2.msra.mxu0 %v1750
    %2068 = vmatprep.subr.mxu0 0.0
    %2069 = vmatpush2.msra.mxu0 %v1749
    %2070 = vmatprep.subr.mxu0 0.0
    %2071 = vmatpush2.msra.mxu0 %v1748
    %2072 = vmatprep.subr.mxu0 0.0
    %2073 = vmatpush2.msra.mxu0 %v1747
    %2074 = vmatprep.subr.mxu0 0.0
    %2075 = vmatpush2.msra.mxu0 %v1746
    %2076 = vmatprep.subr.mxu0 0.0
    %2077 = vmatpush2.msra.mxu0 %v1745
    %2078 = vmatprep.subr.mxu0 0.0
    %2079 = vmatpush2.msra.mxu0 %v1744
    %2080 = vmatprep.subr.mxu0 0.0
    %2081 = vmatpush2.msra.mxu0 %v1743
    %2082 = vmatprep.mubr.f32.mxu0 %v2016
    %2083 = vmatmul.mubr.f32.gmra.mxu0 %v1725
    %v2084 = vpop.f32.mrf.mxu0
    %v2085 = vadd.f32 %v2012, %v2084
    %v2086 = vpop.f32.mrf.mxu0
    %2087 = vdwg.mxu0
    %2088 = vrot.lane.b32.xlu0 %v532, 104
    %v2089 = vpop.permute.xlu0 %2088
    %2092 = vrot.lane.b32.xlu0 %v619, 96
    %v2093 = vpop.permute.xlu0 %2092
    %2095 = vrot.lane.b32.xlu0 %v619, 72
    %v2096 = vpop.permute.xlu0 %2095
    %v2098 = vsel %vm285, %v532, %v2089
    %v2099 = vsel %vm1565, %v2089, %v2093
    %v2100 = vsel %vm1567, %v2093, %v2096
    %v2101 = vsel %vm1580, %v2096, 0
    %2103 = vmatprep.subr.mxu0 %v184
    %2104 = vmatpush1.msra.mxu0 %v183
    %2105 = vmatprep.subr.mxu0 %v182
    %2106 = vmatpush1.msra.mxu0 %v181
    %2107 = vmatprep.subr.mxu0 %v180
    %2108 = vmatpush1.msra.mxu0 %v179
    %2109 = vmatprep.subr.mxu0 %v178
    %2110 = vmatpush1.msra.mxu0 %v177
    %2111 = vmatprep.subr.mxu0 %v176
    %2112 = vmatpush1.msra.mxu0 %v175
    %2113 = vmatprep.subr.mxu0 %v174
    %2114 = vmatpush1.msra.mxu0 %v173
    %2115 = vmatprep.subr.mxu0 %v172
    %2116 = vmatpush1.msra.mxu0 %v171
    %2117 = vmatprep.subr.mxu0 %v170
    %2118 = vmatpush1.msra.mxu0 %v169
    %2119 = vmatprep.subr.mxu0 %v168
    %2120 = vmatpush1.msra.mxu0 %v167
    %2121 = vmatprep.subr.mxu0 %v166
    %2122 = vmatpush1.msra.mxu0 %v165
    %2123 = vmatprep.subr.mxu0 %v164
    %2124 = vmatpush1.msra.mxu0 %v163
    %2125 = vmatprep.subr.mxu0 %v162
    %2126 = vmatpush1.msra.mxu0 %v161
    %2127 = vmatprep.subr.mxu0 %v160
    %2128 = vmatpush1.msra.mxu0 %v159
    %2129 = vmatprep.subr.mxu0 %v158
    %2130 = vmatpush1.msra.mxu0 %v157
    %2131 = vmatprep.subr.mxu0 %v156
    %2132 = vmatpush1.msra.mxu0 %v155
    %2133 = vmatprep.subr.mxu0 %v154
    %2134 = vmatpush1.msra.mxu0 %v153
    %2135 = vmatprep.subr.mxu0 %v216
    %2136 = vmatpush2.msra.mxu0 %v215
    %2137 = vmatprep.subr.mxu0 %v214
    %2138 = vmatpush2.msra.mxu0 %v213
    %2139 = vmatprep.subr.mxu0 %v212
    %2140 = vmatpush2.msra.mxu0 %v211
    %2141 = vmatprep.subr.mxu0 %v210
    %2142 = vmatpush2.msra.mxu0 %v209
    %2143 = vmatprep.subr.mxu0 %v208
    %2144 = vmatpush2.msra.mxu0 %v207
    %2145 = vmatprep.subr.mxu0 %v206
    %2146 = vmatpush2.msra.mxu0 %v205
    %2147 = vmatprep.subr.mxu0 %v204
    %2148 = vmatpush2.msra.mxu0 %v203
    %2149 = vmatprep.subr.mxu0 %v202
    %2150 = vmatpush2.msra.mxu0 %v201
    %2151 = vmatprep.subr.mxu0 %v200
    %2152 = vmatpush2.msra.mxu0 %v199
    %2153 = vmatprep.subr.mxu0 %v198
    %2154 = vmatpush2.msra.mxu0 %v197
    %2155 = vmatprep.subr.mxu0 %v196
    %2156 = vmatpush2.msra.mxu0 %v195
    %2157 = vmatprep.subr.mxu0 %v194
    %2158 = vmatpush2.msra.mxu0 %v193
    %2159 = vmatprep.subr.mxu0 %v192
    %2160 = vmatpush2.msra.mxu0 %v191
    %2161 = vmatprep.subr.mxu0 %v190
    %2162 = vmatpush2.msra.mxu0 %v189
    %2163 = vmatprep.subr.mxu0 %v188
    %2164 = vmatpush2.msra.mxu0 %v187
    %2165 = vmatprep.subr.mxu0 %v186
    %2166 = vmatpush2.msra.mxu0 %v185
    %2167 = vmatprep.mubr.f32.mxu0 %v2099
    %2168 = vmatmul.mubr.f32.gmra.mxu0 %v2098
    %v2169 = vpop.f32.mrf.mxu0
    %v2170 = vadd.f32 %v1573, %v2169
    %v2171 = vpop.f32.mrf.mxu0
    %v2172 = vadd.f32 %v1577, %v2171
    %2173 = vdwg.mxu0
    %2174 = vmatprep.subr.mxu0 %v248
    %2175 = vmatpush1.msra.mxu0 %v247
    %2176 = vmatprep.subr.mxu0 %v246
    %2177 = vmatpush1.msra.mxu0 %v245
    %2178 = vmatprep.subr.mxu0 %v244
    %2179 = vmatpush1.msra.mxu0 %v243
    %2180 = vmatprep.subr.mxu0 %v242
    %2181 = vmatpush1.msra.mxu0 %v241
    %2182 = vmatprep.subr.mxu0 %v240
    %2183 = vmatpush1.msra.mxu0 %v239
    %2184 = vmatprep.subr.mxu0 %v238
    %2185 = vmatpush1.msra.mxu0 %v237
    %2186 = vmatprep.subr.mxu0 %v236
    %2187 = vmatpush1.msra.mxu0 %v235
    %2188 = vmatprep.subr.mxu0 %v234
    %2189 = vmatpush1.msra.mxu0 %v233
    %2190 = vmatprep.subr.mxu0 %v232
    %2191 = vmatpush1.msra.mxu0 %v231
    %2192 = vmatprep.subr.mxu0 %v230
    %2193 = vmatpush1.msra.mxu0 %v229
    %2194 = vmatprep.subr.mxu0 %v228
    %2195 = vmatpush1.msra.mxu0 %v227
    %2196 = vmatprep.subr.mxu0 %v226
    %2197 = vmatpush1.msra.mxu0 %v225
    %2198 = vmatprep.subr.mxu0 %v224
    %2199 = vmatpush1.msra.mxu0 %v223
    %2200 = vmatprep.subr.mxu0 %v222
    %2201 = vmatpush1.msra.mxu0 %v221
    %2202 = vmatprep.subr.mxu0 %v220
    %2203 = vmatpush1.msra.mxu0 %v219
    %2204 = vmatprep.subr.mxu0 %v218
    %2205 = vmatpush1.msra.mxu0 %v217
    %2206 = vmatprep.subr.mxu0 0.0
    %2207 = vmatpush2.msra.mxu0 0.0
    %2208 = vmatprep.subr.mxu0 0.0
    %2209 = vmatpush2.msra.mxu0 0.0
    %2210 = vmatprep.subr.mxu0 0.0
    %2211 = vmatpush2.msra.mxu0 0.0
    %2212 = vmatprep.subr.mxu0 0.0
    %2213 = vmatpush2.msra.mxu0 0.0
    %2214 = vmatprep.subr.mxu0 0.0
    %2215 = vmatpush2.msra.mxu0 0.0
    %2216 = vmatprep.subr.mxu0 0.0
    %2217 = vmatpush2.msra.mxu0 0.0
    %2218 = vmatprep.subr.mxu0 0.0
    %2219 = vmatpush2.msra.mxu0 0.0
    %2220 = vmatprep.subr.mxu0 0.0
    %2221 = vmatpush2.msra.mxu0 0.0
    %2222 = vmatprep.subr.mxu0 %v264
    %2223 = vmatpush2.msra.mxu0 %v263
    %2224 = vmatprep.subr.mxu0 %v262
    %2225 = vmatpush2.msra.mxu0 %v261
    %2226 = vmatprep.subr.mxu0 %v260
    %2227 = vmatpush2.msra.mxu0 %v259
    %2228 = vmatprep.subr.mxu0 %v258
    %2229 = vmatpush2.msra.mxu0 %v257
    %2230 = vmatprep.subr.mxu0 %v256
    %2231 = vmatpush2.msra.mxu0 %v255
    %2232 = vmatprep.subr.mxu0 %v254
    %2233 = vmatpush2.msra.mxu0 %v253
    %2234 = vmatprep.subr.mxu0 %v252
    %2235 = vmatpush2.msra.mxu0 %v251
    %2236 = vmatprep.subr.mxu0 %v250
    %2237 = vmatpush2.msra.mxu0 %v249
    %2238 = vmatprep.mubr.f32.mxu0 %v2101
    %2239 = vmatmul.mubr.f32.gmra.mxu0 %v2100
    %v2240 = vpop.f32.mrf.mxu0
    %v2241 = vadd.f32 %v2170, %v2240
    %v2242 = vpop.f32.mrf.mxu0
    %v2243 = vadd.f32 %v2172, %v2242
    %2244 = vdwg.mxu0
    %v2245 = vmax.f32 %v2241, 0.0
    %v2246 = vmax.f32 %v2243, 0.0
    %v2247 = vld [vmem:[#allocation11 + $0x1c0] sm:$0xff]
    %v2248 = vld [vmem:[#allocation11 + $0x1c8] sm:$0xff]
    %v2249 = vld [vmem:[#allocation11 + $0x1d0] sm:$0xff]
    %v2250 = vld [vmem:[#allocation11 + $0x1d8] sm:$0xff]
    %v2251 = vld [vmem:[#allocation11 + $0x1e0] sm:$0xff]
    %v2252 = vld [vmem:[#allocation11 + $0x1e8] sm:$0xff]
    %v2253 = vld [vmem:[#allocation11 + $0x1f0] sm:$0xff]
    %v2254 = vld [vmem:[#allocation11 + $0x1f8] sm:$0xff]
    %v2255 = vld [vmem:[#allocation11 + $0x200] sm:$0xff]
    %v2256 = vld [vmem:[#allocation11 + $0x208] sm:$0xff]
    %v2257 = vld [vmem:[#allocation11 + $0x210] sm:$0xff]
    %v2258 = vld [vmem:[#allocation11 + $0x218] sm:$0xff]
    %v2259 = vld [vmem:[#allocation11 + $0x220] sm:$0xff]
    %v2260 = vld [vmem:[#allocation11 + $0x228] sm:$0xff]
    %v2261 = vld [vmem:[#allocation11 + $0x230] sm:$0xff]
    %v2262 = vld [vmem:[#allocation11 + $0x238] sm:$0xff]
    %v2263 = vld [vmem:[#allocation11 + $0x240] sm:$0xff]
    %v2264 = vld [vmem:[#allocation11 + $0x248] sm:$0xff]
    %v2265 = vld [vmem:[#allocation11 + $0x250] sm:$0xff]
    %v2266 = vld [vmem:[#allocation11 + $0x258] sm:$0xff]
    %v2267 = vld [vmem:[#allocation11 + $0x260] sm:$0xff]
    %v2268 = vld [vmem:[#allocation11 + $0x268] sm:$0xff]
    %v2269 = vld [vmem:[#allocation11 + $0x270] sm:$0xff]
    %v2270 = vld [vmem:[#allocation11 + $0x278] sm:$0xff]
    %v2271 = vld [vmem:[#allocation11 + $0x280] sm:$0xff]
    %v2272 = vld [vmem:[#allocation11 + $0x288] sm:$0xff]
    %v2273 = vld [vmem:[#allocation11 + $0x290] sm:$0xff]
    %v2274 = vld [vmem:[#allocation11 + $0x298] sm:$0xff]
    %v2276 = vsel %vm1565, %v2246, 0
    %2278 = vmatprep.subr.mxu0 0.0
    %2279 = vmatpush1.msra.mxu0 %v2262
    %2280 = vmatprep.subr.mxu0 0.0
    %2281 = vmatpush1.msra.mxu0 %v2261
    %2282 = vmatprep.subr.mxu0 0.0
    %2283 = vmatpush1.msra.mxu0 %v2260
    %2284 = vmatprep.subr.mxu0 0.0
    %2285 = vmatpush1.msra.mxu0 %v2259
    %2286 = vmatprep.subr.mxu0 0.0
    %2287 = vmatpush1.msra.mxu0 %v2258
    %2288 = vmatprep.subr.mxu0 0.0
    %2289 = vmatpush1.msra.mxu0 %v2257
    %2290 = vmatprep.subr.mxu0 0.0
    %2291 = vmatpush1.msra.mxu0 %v2256
    %2292 = vmatprep.subr.mxu0 0.0
    %2293 = vmatpush1.msra.mxu0 %v2255
    %2294 = vmatprep.subr.mxu0 0.0
    %2295 = vmatpush1.msra.mxu0 %v2254
    %2296 = vmatprep.subr.mxu0 0.0
    %2297 = vmatpush1.msra.mxu0 %v2253
    %2298 = vmatprep.subr.mxu0 0.0
    %2299 = vmatpush1.msra.mxu0 %v2252
    %2300 = vmatprep.subr.mxu0 0.0
    %2301 = vmatpush1.msra.mxu0 %v2251
    %2302 = vmatprep.subr.mxu0 0.0
    %2303 = vmatpush1.msra.mxu0 %v2250
    %2304 = vmatprep.subr.mxu0 0.0
    %2305 = vmatpush1.msra.mxu0 %v2249
    %2306 = vmatprep.subr.mxu0 0.0
    %2307 = vmatpush1.msra.mxu0 %v2248
    %2308 = vmatprep.subr.mxu0 0.0
    %2309 = vmatpush1.msra.mxu0 %v2247
    %2310 = vmatprep.subr.mxu0 0.0
    %2311 = vmatpush2.msra.mxu0 0.0
    %2312 = vmatprep.subr.mxu0 0.0
    %2313 = vmatpush2.msra.mxu0 0.0
    %2314 = vmatprep.subr.mxu0 0.0
    %2315 = vmatpush2.msra.mxu0 0.0
    %2316 = vmatprep.subr.mxu0 0.0
    %2317 = vmatpush2.msra.mxu0 0.0
    %2318 = vmatprep.subr.mxu0 0.0
    %2319 = vmatpush2.msra.mxu0 %v2274
    %2320 = vmatprep.subr.mxu0 0.0
    %2321 = vmatpush2.msra.mxu0 %v2273
    %2322 = vmatprep.subr.mxu0 0.0
    %2323 = vmatpush2.msra.mxu0 %v2272
    %2324 = vmatprep.subr.mxu0 0.0
    %2325 = vmatpush2.msra.mxu0 %v2271
    %2326 = vmatprep.subr.mxu0 0.0
    %2327 = vmatpush2.msra.mxu0 %v2270
    %2328 = vmatprep.subr.mxu0 0.0
    %2329 = vmatpush2.msra.mxu0 %v2269
    %2330 = vmatprep.subr.mxu0 0.0
    %2331 = vmatpush2.msra.mxu0 %v2268
    %2332 = vmatprep.subr.mxu0 0.0
    %2333 = vmatpush2.msra.mxu0 %v2267
    %2334 = vmatprep.subr.mxu0 0.0
    %2335 = vmatpush2.msra.mxu0 %v2266
    %2336 = vmatprep.subr.mxu0 0.0
    %2337 = vmatpush2.msra.mxu0 %v2265
    %2338 = vmatprep.subr.mxu0 0.0
    %2339 = vmatpush2.msra.mxu0 %v2264
    %2340 = vmatprep.subr.mxu0 0.0
    %2341 = vmatpush2.msra.mxu0 %v2263
    %2342 = vmatprep.mubr.f32.mxu0 %v2276
    %2343 = vmatmul.mubr.f32.gmra.mxu0 %v2245
    %v2344 = vpop.f32.mrf.mxu0
    %v2345 = vadd.f32 0.0, %v2344
    %v2346 = vpop.f32.mrf.mxu0
    %2347 = vdwg.mxu0
    %v2348 = vadd.f32 %v2085, %v2345
    %2349 = vrot.lane.b32.xlu0 %v619, 104
    %v2350 = vpop.permute.xlu0 %2349
    %2353 = vrot.lane.b32.xlu0 %v702, 96
    %v2354 = vpop.permute.xlu0 %2353
    %2356 = vrot.lane.b32.xlu0 %v702, 72
    %v2357 = vpop.permute.xlu0 %2356
    %v2359 = vsel %vm285, %v619, %v2350
    %v2360 = vsel %vm1565, %v2350, %v2354
    %v2361 = vsel %vm1567, %v2354, %v2357
    %v2362 = vsel %vm1580, %v2357, 0
    %2364 = vmatprep.subr.mxu0 %v184
    %2365 = vmatpush1.msra.mxu0 %v183
    %2366 = vmatprep.subr.mxu0 %v182
    %2367 = vmatpush1.msra.mxu0 %v181
    %2368 = vmatprep.subr.mxu0 %v180
    %2369 = vmatpush1.msra.mxu0 %v179
    %2370 = vmatprep.subr.mxu0 %v178
    %2371 = vmatpush1.msra.mxu0 %v177
    %2372 = vmatprep.subr.mxu0 %v176
    %2373 = vmatpush1.msra.mxu0 %v175
    %2374 = vmatprep.subr.mxu0 %v174
    %2375 = vmatpush1.msra.mxu0 %v173
    %2376 = vmatprep.subr.mxu0 %v172
    %2377 = vmatpush1.msra.mxu0 %v171
    %2378 = vmatprep.subr.mxu0 %v170
    %2379 = vmatpush1.msra.mxu0 %v169
    %2380 = vmatprep.subr.mxu0 %v168
    %2381 = vmatpush1.msra.mxu0 %v167
    %2382 = vmatprep.subr.mxu0 %v166
    %2383 = vmatpush1.msra.mxu0 %v165
    %2384 = vmatprep.subr.mxu0 %v164
    %2385 = vmatpush1.msra.mxu0 %v163
    %2386 = vmatprep.subr.mxu0 %v162
    %2387 = vmatpush1.msra.mxu0 %v161
    %2388 = vmatprep.subr.mxu0 %v160
    %2389 = vmatpush1.msra.mxu0 %v159
    %2390 = vmatprep.subr.mxu0 %v158
    %2391 = vmatpush1.msra.mxu0 %v157
    %2392 = vmatprep.subr.mxu0 %v156
    %2393 = vmatpush1.msra.mxu0 %v155
    %2394 = vmatprep.subr.mxu0 %v154
    %2395 = vmatpush1.msra.mxu0 %v153
    %2396 = vmatprep.subr.mxu0 %v216
    %2397 = vmatpush2.msra.mxu0 %v215
    %2398 = vmatprep.subr.mxu0 %v214
    %2399 = vmatpush2.msra.mxu0 %v213
    %2400 = vmatprep.subr.mxu0 %v212
    %2401 = vmatpush2.msra.mxu0 %v211
    %2402 = vmatprep.subr.mxu0 %v210
    %2403 = vmatpush2.msra.mxu0 %v209
    %2404 = vmatprep.subr.mxu0 %v208
    %2405 = vmatpush2.msra.mxu0 %v207
    %2406 = vmatprep.subr.mxu0 %v206
    %2407 = vmatpush2.msra.mxu0 %v205
    %2408 = vmatprep.subr.mxu0 %v204
    %2409 = vmatpush2.msra.mxu0 %v203
    %2410 = vmatprep.subr.mxu0 %v202
    %2411 = vmatpush2.msra.mxu0 %v201
    %2412 = vmatprep.subr.mxu0 %v200
    %2413 = vmatpush2.msra.mxu0 %v199
    %2414 = vmatprep.subr.mxu0 %v198
    %2415 = vmatpush2.msra.mxu0 %v197
    %2416 = vmatprep.subr.mxu0 %v196
    %2417 = vmatpush2.msra.mxu0 %v195
    %2418 = vmatprep.subr.mxu0 %v194
    %2419 = vmatpush2.msra.mxu0 %v193
    %2420 = vmatprep.subr.mxu0 %v192
    %2421 = vmatpush2.msra.mxu0 %v191
    %2422 = vmatprep.subr.mxu0 %v190
    %2423 = vmatpush2.msra.mxu0 %v189
    %2424 = vmatprep.subr.mxu0 %v188
    %2425 = vmatpush2.msra.mxu0 %v187
    %2426 = vmatprep.subr.mxu0 %v186
    %2427 = vmatpush2.msra.mxu0 %v185
    %2428 = vmatprep.mubr.f32.mxu0 %v2360
    %2429 = vmatmul.mubr.f32.gmra.mxu0 %v2359
    %v2430 = vpop.f32.mrf.mxu0
    %v2431 = vadd.f32 %v1573, %v2430
    %v2432 = vpop.f32.mrf.mxu0
    %v2433 = vadd.f32 %v1577, %v2432
    %2434 = vdwg.mxu0
    %2435 = vmatprep.subr.mxu0 %v248
    %2436 = vmatpush1.msra.mxu0 %v247
    %2437 = vmatprep.subr.mxu0 %v246
    %2438 = vmatpush1.msra.mxu0 %v245
    %2439 = vmatprep.subr.mxu0 %v244
    %2440 = vmatpush1.msra.mxu0 %v243
    %2441 = vmatprep.subr.mxu0 %v242
    %2442 = vmatpush1.msra.mxu0 %v241
    %2443 = vmatprep.subr.mxu0 %v240
    %2444 = vmatpush1.msra.mxu0 %v239
    %2445 = vmatprep.subr.mxu0 %v238
    %2446 = vmatpush1.msra.mxu0 %v237
    %2447 = vmatprep.subr.mxu0 %v236
    %2448 = vmatpush1.msra.mxu0 %v235
    %2449 = vmatprep.subr.mxu0 %v234
    %2450 = vmatpush1.msra.mxu0 %v233
    %2451 = vmatprep.subr.mxu0 %v232
    %2452 = vmatpush1.msra.mxu0 %v231
    %2453 = vmatprep.subr.mxu0 %v230
    %2454 = vmatpush1.msra.mxu0 %v229
    %2455 = vmatprep.subr.mxu0 %v228
    %2456 = vmatpush1.msra.mxu0 %v227
    %2457 = vmatprep.subr.mxu0 %v226
    %2458 = vmatpush1.msra.mxu0 %v225
    %2459 = vmatprep.subr.mxu0 %v224
    %2460 = vmatpush1.msra.mxu0 %v223
    %2461 = vmatprep.subr.mxu0 %v222
    %2462 = vmatpush1.msra.mxu0 %v221
    %2463 = vmatprep.subr.mxu0 %v220
    %2464 = vmatpush1.msra.mxu0 %v219
    %2465 = vmatprep.subr.mxu0 %v218
    %2466 = vmatpush1.msra.mxu0 %v217
    %2467 = vmatprep.subr.mxu0 0.0
    %2468 = vmatpush2.msra.mxu0 0.0
    %2469 = vmatprep.subr.mxu0 0.0
    %2470 = vmatpush2.msra.mxu0 0.0
    %2471 = vmatprep.subr.mxu0 0.0
    %2472 = vmatpush2.msra.mxu0 0.0
    %2473 = vmatprep.subr.mxu0 0.0
    %2474 = vmatpush2.msra.mxu0 0.0
    %2475 = vmatprep.subr.mxu0 0.0
    %2476 = vmatpush2.msra.mxu0 0.0
    %2477 = vmatprep.subr.mxu0 0.0
    %2478 = vmatpush2.msra.mxu0 0.0
    %2479 = vmatprep.subr.mxu0 0.0
    %2480 = vmatpush2.msra.mxu0 0.0
    %2481 = vmatprep.subr.mxu0 0.0
    %2482 = vmatpush2.msra.mxu0 0.0
    %2483 = vmatprep.subr.mxu0 %v264
    %2484 = vmatpush2.msra.mxu0 %v263
    %2485 = vmatprep.subr.mxu0 %v262
    %2486 = vmatpush2.msra.mxu0 %v261
    %2487 = vmatprep.subr.mxu0 %v260
    %2488 = vmatpush2.msra.mxu0 %v259
    %2489 = vmatprep.subr.mxu0 %v258
    %2490 = vmatpush2.msra.mxu0 %v257
    %2491 = vmatprep.subr.mxu0 %v256
    %2492 = vmatpush2.msra.mxu0 %v255
    %2493 = vmatprep.subr.mxu0 %v254
    %2494 = vmatpush2.msra.mxu0 %v253
    %2495 = vmatprep.subr.mxu0 %v252
    %2496 = vmatpush2.msra.mxu0 %v251
    %2497 = vmatprep.subr.mxu0 %v250
    %2498 = vmatpush2.msra.mxu0 %v249
    %2499 = vmatprep.mubr.f32.mxu0 %v2362
    %2500 = vmatmul.mubr.f32.gmra.mxu0 %v2361
    %v2501 = vpop.f32.mrf.mxu0
    %v2502 = vadd.f32 %v2431, %v2501
    %v2503 = vpop.f32.mrf.mxu0
    %v2504 = vadd.f32 %v2433, %v2503
    %2505 = vdwg.mxu0
    %v2506 = vmax.f32 %v2502, 0.0
    %v2507 = vmax.f32 %v2504, 0.0
    %v2508 = vld [vmem:[#allocation11 + $0x2a0] sm:$0xff]
    %v2509 = vld [vmem:[#allocation11 + $0x2a8] sm:$0xff]
    %v2510 = vld [vmem:[#allocation11 + $0x2b0] sm:$0xff]
    %v2511 = vld [vmem:[#allocation11 + $0x2b8] sm:$0xff]
    %v2512 = vld [vmem:[#allocation11 + $0x2c0] sm:$0xff]
    %v2513 = vld [vmem:[#allocation11 + $0x2c8] sm:$0xff]
    %v2514 = vld [vmem:[#allocation11 + $0x2d0] sm:$0xff]
    %v2515 = vld [vmem:[#allocation11 + $0x2d8] sm:$0xff]
    %v2516 = vld [vmem:[#allocation11 + $0x2e0] sm:$0xff]
    %v2517 = vld [vmem:[#allocation11 + $0x2e8] sm:$0xff]
    %v2518 = vld [vmem:[#allocation11 + $0x2f0] sm:$0xff]
    %v2519 = vld [vmem:[#allocation11 + $0x2f8] sm:$0xff]
    %v2520 = vld [vmem:[#allocation11 + $0x300] sm:$0xff]
    %v2521 = vld [vmem:[#allocation11 + $0x308] sm:$0xff]
    %v2522 = vld [vmem:[#allocation11 + $0x310] sm:$0xff]
    %v2523 = vld [vmem:[#allocation11 + $0x318] sm:$0xff]
    %v2524 = vld [vmem:[#allocation11 + $0x320] sm:$0xff]
    %v2525 = vld [vmem:[#allocation11 + $0x328] sm:$0xff]
    %v2526 = vld [vmem:[#allocation11 + $0x330] sm:$0xff]
    %v2527 = vld [vmem:[#allocation11 + $0x338] sm:$0xff]
    %v2528 = vld [vmem:[#allocation11 + $0x340] sm:$0xff]
    %v2529 = vld [vmem:[#allocation11 + $0x348] sm:$0xff]
    %v2530 = vld [vmem:[#allocation11 + $0x350] sm:$0xff]
    %v2531 = vld [vmem:[#allocation11 + $0x358] sm:$0xff]
    %v2532 = vld [vmem:[#allocation11 + $0x360] sm:$0xff]
    %v2533 = vld [vmem:[#allocation11 + $0x368] sm:$0xff]
    %v2534 = vld [vmem:[#allocation11 + $0x370] sm:$0xff]
    %v2535 = vld [vmem:[#allocation11 + $0x378] sm:$0xff]
    %v2537 = vsel %vm1565, %v2507, 0
    %2539 = vmatprep.subr.mxu0 0.0
    %2540 = vmatpush1.msra.mxu0 %v2523
    %2541 = vmatprep.subr.mxu0 0.0
    %2542 = vmatpush1.msra.mxu0 %v2522
    %2543 = vmatprep.subr.mxu0 0.0
    %2544 = vmatpush1.msra.mxu0 %v2521
    %2545 = vmatprep.subr.mxu0 0.0
    %2546 = vmatpush1.msra.mxu0 %v2520
    %2547 = vmatprep.subr.mxu0 0.0
    %2548 = vmatpush1.msra.mxu0 %v2519
    %2549 = vmatprep.subr.mxu0 0.0
    %2550 = vmatpush1.msra.mxu0 %v2518
    %2551 = vmatprep.subr.mxu0 0.0
    %2552 = vmatpush1.msra.mxu0 %v2517
    %2553 = vmatprep.subr.mxu0 0.0
    %2554 = vmatpush1.msra.mxu0 %v2516
    %2555 = vmatprep.subr.mxu0 0.0
    %2556 = vmatpush1.msra.mxu0 %v2515
    %2557 = vmatprep.subr.mxu0 0.0
    %2558 = vmatpush1.msra.mxu0 %v2514
    %2559 = vmatprep.subr.mxu0 0.0
    %2560 = vmatpush1.msra.mxu0 %v2513
    %2561 = vmatprep.subr.mxu0 0.0
    %2562 = vmatpush1.msra.mxu0 %v2512
    %2563 = vmatprep.subr.mxu0 0.0
    %2564 = vmatpush1.msra.mxu0 %v2511
    %2565 = vmatprep.subr.mxu0 0.0
    %2566 = vmatpush1.msra.mxu0 %v2510
    %2567 = vmatprep.subr.mxu0 0.0
    %2568 = vmatpush1.msra.mxu0 %v2509
    %2569 = vmatprep.subr.mxu0 0.0
    %2570 = vmatpush1.msra.mxu0 %v2508
    %2571 = vmatprep.subr.mxu0 0.0
    %2572 = vmatpush2.msra.mxu0 0.0
    %2573 = vmatprep.subr.mxu0 0.0
    %2574 = vmatpush2.msra.mxu0 0.0
    %2575 = vmatprep.subr.mxu0 0.0
    %2576 = vmatpush2.msra.mxu0 0.0
    %2577 = vmatprep.subr.mxu0 0.0
    %2578 = vmatpush2.msra.mxu0 0.0
    %2579 = vmatprep.subr.mxu0 0.0
    %2580 = vmatpush2.msra.mxu0 %v2535
    %2581 = vmatprep.subr.mxu0 0.0
    %2582 = vmatpush2.msra.mxu0 %v2534
    %2583 = vmatprep.subr.mxu0 0.0
    %2584 = vmatpush2.msra.mxu0 %v2533
    %2585 = vmatprep.subr.mxu0 0.0
    %2586 = vmatpush2.msra.mxu0 %v2532
    %2587 = vmatprep.subr.mxu0 0.0
    %2588 = vmatpush2.msra.mxu0 %v2531
    %2589 = vmatprep.subr.mxu0 0.0
    %2590 = vmatpush2.msra.mxu0 %v2530
    %2591 = vmatprep.subr.mxu0 0.0
    %2592 = vmatpush2.msra.mxu0 %v2529
    %2593 = vmatprep.subr.mxu0 0.0
    %2594 = vmatpush2.msra.mxu0 %v2528
    %2595 = vmatprep.subr.mxu0 0.0
    %2596 = vmatpush2.msra.mxu0 %v2527
    %2597 = vmatprep.subr.mxu0 0.0
    %2598 = vmatpush2.msra.mxu0 %v2526
    %2599 = vmatprep.subr.mxu0 0.0
    %2600 = vmatpush2.msra.mxu0 %v2525
    %2601 = vmatprep.subr.mxu0 0.0
    %2602 = vmatpush2.msra.mxu0 %v2524
    %2603 = vmatprep.mubr.f32.mxu0 %v2537
    %2604 = vmatmul.mubr.f32.gmra.mxu0 %v2506
    %v2605 = vpop.f32.mrf.mxu0
    %v2606 = vadd.f32 0.0, %v2605
    %v2607 = vpop.f32.mrf.mxu0
    %2608 = vdwg.mxu0
    %v2609 = vadd.f32 %v2348, %v2606
    %2610 = vrot.lane.b32.xlu0 %v702, 104
    %v2611 = vpop.permute.xlu0 %2610
    %2614 = vrot.lane.b32.xlu0 %v789, 96
    %v2615 = vpop.permute.xlu0 %2614
    %2617 = vrot.lane.b32.xlu0 %v789, 72
    %v2618 = vpop.permute.xlu0 %2617
    %v2620 = vsel %vm285, %v702, %v2611
    %v2621 = vsel %vm1565, %v2611, %v2615
    %v2622 = vsel %vm1567, %v2615, %v2618
    %v2623 = vsel %vm1580, %v2618, 0
    %2625 = vmatprep.subr.mxu0 %v184
    %2626 = vmatpush1.msra.mxu0 %v183
    %2627 = vmatprep.subr.mxu0 %v182
    %2628 = vmatpush1.msra.mxu0 %v181
    %2629 = vmatprep.subr.mxu0 %v180
    %2630 = vmatpush1.msra.mxu0 %v179
    %2631 = vmatprep.subr.mxu0 %v178
    %2632 = vmatpush1.msra.mxu0 %v177
    %2633 = vmatprep.subr.mxu0 %v176
    %2634 = vmatpush1.msra.mxu0 %v175
    %2635 = vmatprep.subr.mxu0 %v174
    %2636 = vmatpush1.msra.mxu0 %v173
    %2637 = vmatprep.subr.mxu0 %v172
    %2638 = vmatpush1.msra.mxu0 %v171
    %2639 = vmatprep.subr.mxu0 %v170
    %2640 = vmatpush1.msra.mxu0 %v169
    %2641 = vmatprep.subr.mxu0 %v168
    %2642 = vmatpush1.msra.mxu0 %v167
    %2643 = vmatprep.subr.mxu0 %v166
    %2644 = vmatpush1.msra.mxu0 %v165
    %2645 = vmatprep.subr.mxu0 %v164
    %2646 = vmatpush1.msra.mxu0 %v163
    %2647 = vmatprep.subr.mxu0 %v162
    %2648 = vmatpush1.msra.mxu0 %v161
    %2649 = vmatprep.subr.mxu0 %v160
    %2650 = vmatpush1.msra.mxu0 %v159
    %2651 = vmatprep.subr.mxu0 %v158
    %2652 = vmatpush1.msra.mxu0 %v157
    %2653 = vmatprep.subr.mxu0 %v156
    %2654 = vmatpush1.msra.mxu0 %v155
    %2655 = vmatprep.subr.mxu0 %v154
    %2656 = vmatpush1.msra.mxu0 %v153
    %2657 = vmatprep.subr.mxu0 %v216
    %2658 = vmatpush2.msra.mxu0 %v215
    %2659 = vmatprep.subr.mxu0 %v214
    %2660 = vmatpush2.msra.mxu0 %v213
    %2661 = vmatprep.subr.mxu0 %v212
    %2662 = vmatpush2.msra.mxu0 %v211
    %2663 = vmatprep.subr.mxu0 %v210
    %2664 = vmatpush2.msra.mxu0 %v209
    %2665 = vmatprep.subr.mxu0 %v208
    %2666 = vmatpush2.msra.mxu0 %v207
    %2667 = vmatprep.subr.mxu0 %v206
    %2668 = vmatpush2.msra.mxu0 %v205
    %2669 = vmatprep.subr.mxu0 %v204
    %2670 = vmatpush2.msra.mxu0 %v203
    %2671 = vmatprep.subr.mxu0 %v202
    %2672 = vmatpush2.msra.mxu0 %v201
    %2673 = vmatprep.subr.mxu0 %v200
    %2674 = vmatpush2.msra.mxu0 %v199
    %2675 = vmatprep.subr.mxu0 %v198
    %2676 = vmatpush2.msra.mxu0 %v197
    %2677 = vmatprep.subr.mxu0 %v196
    %2678 = vmatpush2.msra.mxu0 %v195
    %2679 = vmatprep.subr.mxu0 %v194
    %2680 = vmatpush2.msra.mxu0 %v193
    %2681 = vmatprep.subr.mxu0 %v192
    %2682 = vmatpush2.msra.mxu0 %v191
    %2683 = vmatprep.subr.mxu0 %v190
    %2684 = vmatpush2.msra.mxu0 %v189
    %2685 = vmatprep.subr.mxu0 %v188
    %2686 = vmatpush2.msra.mxu0 %v187
    %2687 = vmatprep.subr.mxu0 %v186
    %2688 = vmatpush2.msra.mxu0 %v185
    %2689 = vmatprep.mubr.f32.mxu0 %v2621
    %2690 = vmatmul.mubr.f32.gmra.mxu0 %v2620
    %v2691 = vpop.f32.mrf.mxu0
    %v2692 = vadd.f32 %v1573, %v2691
    %v2693 = vpop.f32.mrf.mxu0
    %v2694 = vadd.f32 %v1577, %v2693
    %2695 = vdwg.mxu0
    %2696 = vmatprep.subr.mxu0 %v248
    %2697 = vmatpush1.msra.mxu0 %v247
    %2698 = vmatprep.subr.mxu0 %v246
    %2699 = vmatpush1.msra.mxu0 %v245
    %2700 = vmatprep.subr.mxu0 %v244
    %2701 = vmatpush1.msra.mxu0 %v243
    %2702 = vmatprep.subr.mxu0 %v242
    %2703 = vmatpush1.msra.mxu0 %v241
    %2704 = vmatprep.subr.mxu0 %v240
    %2705 = vmatpush1.msra.mxu0 %v239
    %2706 = vmatprep.subr.mxu0 %v238
    %2707 = vmatpush1.msra.mxu0 %v237
    %2708 = vmatprep.subr.mxu0 %v236
    %2709 = vmatpush1.msra.mxu0 %v235
    %2710 = vmatprep.subr.mxu0 %v234
    %2711 = vmatpush1.msra.mxu0 %v233
    %2712 = vmatprep.subr.mxu0 %v232
    %2713 = vmatpush1.msra.mxu0 %v231
    %2714 = vmatprep.subr.mxu0 %v230
    %2715 = vmatpush1.msra.mxu0 %v229
    %2716 = vmatprep.subr.mxu0 %v228
    %2717 = vmatpush1.msra.mxu0 %v227
    %2718 = vmatprep.subr.mxu0 %v226
    %2719 = vmatpush1.msra.mxu0 %v225
    %2720 = vmatprep.subr.mxu0 %v224
    %2721 = vmatpush1.msra.mxu0 %v223
    %2722 = vmatprep.subr.mxu0 %v222
    %2723 = vmatpush1.msra.mxu0 %v221
    %2724 = vmatprep.subr.mxu0 %v220
    %2725 = vmatpush1.msra.mxu0 %v219
    %2726 = vmatprep.subr.mxu0 %v218
    %2727 = vmatpush1.msra.mxu0 %v217
    %2728 = vmatprep.subr.mxu0 0.0
    %2729 = vmatpush2.msra.mxu0 0.0
    %2730 = vmatprep.subr.mxu0 0.0
    %2731 = vmatpush2.msra.mxu0 0.0
    %2732 = vmatprep.subr.mxu0 0.0
    %2733 = vmatpush2.msra.mxu0 0.0
    %2734 = vmatprep.subr.mxu0 0.0
    %2735 = vmatpush2.msra.mxu0 0.0
    %2736 = vmatprep.subr.mxu0 0.0
    %2737 = vmatpush2.msra.mxu0 0.0
    %2738 = vmatprep.subr.mxu0 0.0
    %2739 = vmatpush2.msra.mxu0 0.0
    %2740 = vmatprep.subr.mxu0 0.0
    %2741 = vmatpush2.msra.mxu0 0.0
    %2742 = vmatprep.subr.mxu0 0.0
    %2743 = vmatpush2.msra.mxu0 0.0
    %2744 = vmatprep.subr.mxu0 %v264
    %2745 = vmatpush2.msra.mxu0 %v263
    %2746 = vmatprep.subr.mxu0 %v262
    %2747 = vmatpush2.msra.mxu0 %v261
    %2748 = vmatprep.subr.mxu0 %v260
    %2749 = vmatpush2.msra.mxu0 %v259
    %2750 = vmatprep.subr.mxu0 %v258
    %2751 = vmatpush2.msra.mxu0 %v257
    %2752 = vmatprep.subr.mxu0 %v256
    %2753 = vmatpush2.msra.mxu0 %v255
    %2754 = vmatprep.subr.mxu0 %v254
    %2755 = vmatpush2.msra.mxu0 %v253
    %2756 = vmatprep.subr.mxu0 %v252
    %2757 = vmatpush2.msra.mxu0 %v251
    %2758 = vmatprep.subr.mxu0 %v250
    %2759 = vmatpush2.msra.mxu0 %v249
    %2760 = vmatprep.mubr.f32.mxu0 %v2623
    %2761 = vmatmul.mubr.f32.gmra.mxu0 %v2622
    %v2762 = vpop.f32.mrf.mxu0
    %v2763 = vadd.f32 %v2692, %v2762
    %v2764 = vpop.f32.mrf.mxu0
    %v2765 = vadd.f32 %v2694, %v2764
    %2766 = vdwg.mxu0
    %v2767 = vmax.f32 %v2763, 0.0
    %v2768 = vmax.f32 %v2765, 0.0
    %v2769 = vld [vmem:[#allocation11 + $0x380] sm:$0xff]
    %v2770 = vld [vmem:[#allocation11 + $0x388] sm:$0xff]
    %v2771 = vld [vmem:[#allocation11 + $0x390] sm:$0xff]
    %v2772 = vld [vmem:[#allocation11 + $0x398] sm:$0xff]
    %v2773 = vld [vmem:[#allocation11 + $0x3a0] sm:$0xff]
    %v2774 = vld [vmem:[#allocation11 + $0x3a8] sm:$0xff]
    %v2775 = vld [vmem:[#allocation11 + $0x3b0] sm:$0xff]
    %v2776 = vld [vmem:[#allocation11 + $0x3b8] sm:$0xff]
    %v2777 = vld [vmem:[#allocation11 + $0x3c0] sm:$0xff]
    %v2778 = vld [vmem:[#allocation11 + $0x3c8] sm:$0xff]
    %v2779 = vld [vmem:[#allocation11 + $0x3d0] sm:$0xff]
    %v2780 = vld [vmem:[#allocation11 + $0x3d8] sm:$0xff]
    %v2781 = vld [vmem:[#allocation11 + $0x3e0] sm:$0xff]
    %v2782 = vld [vmem:[#allocation11 + $0x3e8] sm:$0xff]
    %v2783 = vld [vmem:[#allocation11 + $0x3f0] sm:$0xff]
    %v2784 = vld [vmem:[#allocation11 + $0x3f8] sm:$0xff]
    %v2785 = vld [vmem:[#allocation11 + $0x400] sm:$0xff]
    %v2786 = vld [vmem:[#allocation11 + $0x408] sm:$0xff]
    %v2787 = vld [vmem:[#allocation11 + $0x410] sm:$0xff]
    %v2788 = vld [vmem:[#allocation11 + $0x418] sm:$0xff]
    %v2789 = vld [vmem:[#allocation11 + $0x420] sm:$0xff]
    %v2790 = vld [vmem:[#allocation11 + $0x428] sm:$0xff]
    %v2791 = vld [vmem:[#allocation11 + $0x430] sm:$0xff]
    %v2792 = vld [vmem:[#allocation11 + $0x438] sm:$0xff]
    %v2793 = vld [vmem:[#allocation11 + $0x440] sm:$0xff]
    %v2794 = vld [vmem:[#allocation11 + $0x448] sm:$0xff]
    %v2795 = vld [vmem:[#allocation11 + $0x450] sm:$0xff]
    %v2796 = vld [vmem:[#allocation11 + $0x458] sm:$0xff]
    %v2798 = vsel %vm1565, %v2768, 0
    %2800 = vmatprep.subr.mxu0 0.0
    %2801 = vmatpush1.msra.mxu0 %v2784
    %2802 = vmatprep.subr.mxu0 0.0
    %2803 = vmatpush1.msra.mxu0 %v2783
    %2804 = vmatprep.subr.mxu0 0.0
    %2805 = vmatpush1.msra.mxu0 %v2782
    %2806 = vmatprep.subr.mxu0 0.0
    %2807 = vmatpush1.msra.mxu0 %v2781
    %2808 = vmatprep.subr.mxu0 0.0
    %2809 = vmatpush1.msra.mxu0 %v2780
    %2810 = vmatprep.subr.mxu0 0.0
    %2811 = vmatpush1.msra.mxu0 %v2779
    %2812 = vmatprep.subr.mxu0 0.0
    %2813 = vmatpush1.msra.mxu0 %v2778
    %2814 = vmatprep.subr.mxu0 0.0
    %2815 = vmatpush1.msra.mxu0 %v2777
    %2816 = vmatprep.subr.mxu0 0.0
    %2817 = vmatpush1.msra.mxu0 %v2776
    %2818 = vmatprep.subr.mxu0 0.0
    %2819 = vmatpush1.msra.mxu0 %v2775
    %2820 = vmatprep.subr.mxu0 0.0
    %2821 = vmatpush1.msra.mxu0 %v2774
    %2822 = vmatprep.subr.mxu0 0.0
    %2823 = vmatpush1.msra.mxu0 %v2773
    %2824 = vmatprep.subr.mxu0 0.0
    %2825 = vmatpush1.msra.mxu0 %v2772
    %2826 = vmatprep.subr.mxu0 0.0
    %2827 = vmatpush1.msra.mxu0 %v2771
    %2828 = vmatprep.subr.mxu0 0.0
    %2829 = vmatpush1.msra.mxu0 %v2770
    %2830 = vmatprep.subr.mxu0 0.0
    %2831 = vmatpush1.msra.mxu0 %v2769
    %2832 = vmatprep.subr.mxu0 0.0
    %2833 = vmatpush2.msra.mxu0 0.0
    %2834 = vmatprep.subr.mxu0 0.0
    %2835 = vmatpush2.msra.mxu0 0.0
    %2836 = vmatprep.subr.mxu0 0.0
    %2837 = vmatpush2.msra.mxu0 0.0
    %2838 = vmatprep.subr.mxu0 0.0
    %2839 = vmatpush2.msra.mxu0 0.0
    %2840 = vmatprep.subr.mxu0 0.0
    %2841 = vmatpush2.msra.mxu0 %v2796
    %2842 = vmatprep.subr.mxu0 0.0
    %2843 = vmatpush2.msra.mxu0 %v2795
    %2844 = vmatprep.subr.mxu0 0.0
    %2845 = vmatpush2.msra.mxu0 %v2794
    %2846 = vmatprep.subr.mxu0 0.0
    %2847 = vmatpush2.msra.mxu0 %v2793
    %2848 = vmatprep.subr.mxu0 0.0
    %2849 = vmatpush2.msra.mxu0 %v2792
    %2850 = vmatprep.subr.mxu0 0.0
    %2851 = vmatpush2.msra.mxu0 %v2791
    %2852 = vmatprep.subr.mxu0 0.0
    %2853 = vmatpush2.msra.mxu0 %v2790
    %2854 = vmatprep.subr.mxu0 0.0
    %2855 = vmatpush2.msra.mxu0 %v2789
    %2856 = vmatprep.subr.mxu0 0.0
    %2857 = vmatpush2.msra.mxu0 %v2788
    %2858 = vmatprep.subr.mxu0 0.0
    %2859 = vmatpush2.msra.mxu0 %v2787
    %2860 = vmatprep.subr.mxu0 0.0
    %2861 = vmatpush2.msra.mxu0 %v2786
    %2862 = vmatprep.subr.mxu0 0.0
    %2863 = vmatpush2.msra.mxu0 %v2785
    %2864 = vmatprep.mubr.f32.mxu0 %v2798
    %2865 = vmatmul.mubr.f32.gmra.mxu0 %v2767
    %v2866 = vpop.f32.mrf.mxu0
    %v2867 = vadd.f32 0.0, %v2866
    %v2868 = vpop.f32.mrf.mxu0
    %2869 = vdwg.mxu0
    %v2870 = vadd.f32 %v2609, %v2867
    %2871 = vrot.lane.b32.xlu0 %v789, 104
    %v2872 = vpop.permute.xlu0 %2871
    %2875 = vrot.lane.b32.xlu0 %v872, 96
    %v2876 = vpop.permute.xlu0 %2875
    %2878 = vrot.lane.b32.xlu0 %v872, 72
    %v2879 = vpop.permute.xlu0 %2878
    %v2881 = vsel %vm285, %v789, %v2872
    %v2882 = vsel %vm1565, %v2872, %v2876
    %v2883 = vsel %vm1567, %v2876, %v2879
    %v2884 = vsel %vm1580, %v2879, 0
    %2886 = vmatprep.subr.mxu0 %v184
    %2887 = vmatpush1.msra.mxu0 %v183
    %2888 = vmatprep.subr.mxu0 %v182
    %2889 = vmatpush1.msra.mxu0 %v181
    %2890 = vmatprep.subr.mxu0 %v180
    %2891 = vmatpush1.msra.mxu0 %v179
    %2892 = vmatprep.subr.mxu0 %v178
    %2893 = vmatpush1.msra.mxu0 %v177
    %2894 = vmatprep.subr.mxu0 %v176
    %2895 = vmatpush1.msra.mxu0 %v175
    %2896 = vmatprep.subr.mxu0 %v174
    %2897 = vmatpush1.msra.mxu0 %v173
    %2898 = vmatprep.subr.mxu0 %v172
    %2899 = vmatpush1.msra.mxu0 %v171
    %2900 = vmatprep.subr.mxu0 %v170
    %2901 = vmatpush1.msra.mxu0 %v169
    %2902 = vmatprep.subr.mxu0 %v168
    %2903 = vmatpush1.msra.mxu0 %v167
    %2904 = vmatprep.subr.mxu0 %v166
    %2905 = vmatpush1.msra.mxu0 %v165
    %2906 = vmatprep.subr.mxu0 %v164
    %2907 = vmatpush1.msra.mxu0 %v163
    %2908 = vmatprep.subr.mxu0 %v162
    %2909 = vmatpush1.msra.mxu0 %v161
    %2910 = vmatprep.subr.mxu0 %v160
    %2911 = vmatpush1.msra.mxu0 %v159
    %2912 = vmatprep.subr.mxu0 %v158
    %2913 = vmatpush1.msra.mxu0 %v157
    %2914 = vmatprep.subr.mxu0 %v156
    %2915 = vmatpush1.msra.mxu0 %v155
    %2916 = vmatprep.subr.mxu0 %v154
    %2917 = vmatpush1.msra.mxu0 %v153
    %2918 = vmatprep.subr.mxu0 %v216
    %2919 = vmatpush2.msra.mxu0 %v215
    %2920 = vmatprep.subr.mxu0 %v214
    %2921 = vmatpush2.msra.mxu0 %v213
    %2922 = vmatprep.subr.mxu0 %v212
    %2923 = vmatpush2.msra.mxu0 %v211
    %2924 = vmatprep.subr.mxu0 %v210
    %2925 = vmatpush2.msra.mxu0 %v209
    %2926 = vmatprep.subr.mxu0 %v208
    %2927 = vmatpush2.msra.mxu0 %v207
    %2928 = vmatprep.subr.mxu0 %v206
    %2929 = vmatpush2.msra.mxu0 %v205
    %2930 = vmatprep.subr.mxu0 %v204
    %2931 = vmatpush2.msra.mxu0 %v203
    %2932 = vmatprep.subr.mxu0 %v202
    %2933 = vmatpush2.msra.mxu0 %v201
    %2934 = vmatprep.subr.mxu0 %v200
    %2935 = vmatpush2.msra.mxu0 %v199
    %2936 = vmatprep.subr.mxu0 %v198
    %2937 = vmatpush2.msra.mxu0 %v197
    %2938 = vmatprep.subr.mxu0 %v196
    %2939 = vmatpush2.msra.mxu0 %v195
    %2940 = vmatprep.subr.mxu0 %v194
    %2941 = vmatpush2.msra.mxu0 %v193
    %2942 = vmatprep.subr.mxu0 %v192
    %2943 = vmatpush2.msra.mxu0 %v191
    %2944 = vmatprep.subr.mxu0 %v190
    %2945 = vmatpush2.msra.mxu0 %v189
    %2946 = vmatprep.subr.mxu0 %v188
    %2947 = vmatpush2.msra.mxu0 %v187
    %2948 = vmatprep.subr.mxu0 %v186
    %2949 = vmatpush2.msra.mxu0 %v185
    %2950 = vmatprep.mubr.f32.mxu0 %v2882
    %2951 = vmatmul.mubr.f32.gmra.mxu0 %v2881
    %v2952 = vpop.f32.mrf.mxu0
    %v2953 = vadd.f32 %v1573, %v2952
    %v2954 = vpop.f32.mrf.mxu0
    %v2955 = vadd.f32 %v1577, %v2954
    %2956 = vdwg.mxu0
    %2957 = vmatprep.subr.mxu0 %v248
    %2958 = vmatpush1.msra.mxu0 %v247
    %2959 = vmatprep.subr.mxu0 %v246
    %2960 = vmatpush1.msra.mxu0 %v245
    %2961 = vmatprep.subr.mxu0 %v244
    %2962 = vmatpush1.msra.mxu0 %v243
    %2963 = vmatprep.subr.mxu0 %v242
    %2964 = vmatpush1.msra.mxu0 %v241
    %2965 = vmatprep.subr.mxu0 %v240
    %2966 = vmatpush1.msra.mxu0 %v239
    %2967 = vmatprep.subr.mxu0 %v238
    %2968 = vmatpush1.msra.mxu0 %v237
    %2969 = vmatprep.subr.mxu0 %v236
    %2970 = vmatpush1.msra.mxu0 %v235
    %2971 = vmatprep.subr.mxu0 %v234
    %2972 = vmatpush1.msra.mxu0 %v233
    %2973 = vmatprep.subr.mxu0 %v232
    %2974 = vmatpush1.msra.mxu0 %v231
    %2975 = vmatprep.subr.mxu0 %v230
    %2976 = vmatpush1.msra.mxu0 %v229
    %2977 = vmatprep.subr.mxu0 %v228
    %2978 = vmatpush1.msra.mxu0 %v227
    %2979 = vmatprep.subr.mxu0 %v226
    %2980 = vmatpush1.msra.mxu0 %v225
    %2981 = vmatprep.subr.mxu0 %v224
    %2982 = vmatpush1.msra.mxu0 %v223
    %2983 = vmatprep.subr.mxu0 %v222
    %2984 = vmatpush1.msra.mxu0 %v221
    %2985 = vmatprep.subr.mxu0 %v220
    %2986 = vmatpush1.msra.mxu0 %v219
    %2987 = vmatprep.subr.mxu0 %v218
    %2988 = vmatpush1.msra.mxu0 %v217
    %2989 = vmatprep.subr.mxu0 0.0
    %2990 = vmatpush2.msra.mxu0 0.0
    %2991 = vmatprep.subr.mxu0 0.0
    %2992 = vmatpush2.msra.mxu0 0.0
    %2993 = vmatprep.subr.mxu0 0.0
    %2994 = vmatpush2.msra.mxu0 0.0
    %2995 = vmatprep.subr.mxu0 0.0
    %2996 = vmatpush2.msra.mxu0 0.0
    %2997 = vmatprep.subr.mxu0 0.0
    %2998 = vmatpush2.msra.mxu0 0.0
    %2999 = vmatprep.subr.mxu0 0.0
    %3000 = vmatpush2.msra.mxu0 0.0
    %3001 = vmatprep.subr.mxu0 0.0
    %3002 = vmatpush2.msra.mxu0 0.0
    %3003 = vmatprep.subr.mxu0 0.0
    %3004 = vmatpush2.msra.mxu0 0.0
    %3005 = vmatprep.subr.mxu0 %v264
    %3006 = vmatpush2.msra.mxu0 %v263
    %3007 = vmatprep.subr.mxu0 %v262
    %3008 = vmatpush2.msra.mxu0 %v261
    %3009 = vmatprep.subr.mxu0 %v260
    %3010 = vmatpush2.msra.mxu0 %v259
    %3011 = vmatprep.subr.mxu0 %v258
    %3012 = vmatpush2.msra.mxu0 %v257
    %3013 = vmatprep.subr.mxu0 %v256
    %3014 = vmatpush2.msra.mxu0 %v255
    %3015 = vmatprep.subr.mxu0 %v254
    %3016 = vmatpush2.msra.mxu0 %v253
    %3017 = vmatprep.subr.mxu0 %v252
    %3018 = vmatpush2.msra.mxu0 %v251
    %3019 = vmatprep.subr.mxu0 %v250
    %3020 = vmatpush2.msra.mxu0 %v249
    %3021 = vmatprep.mubr.f32.mxu0 %v2884
    %3022 = vmatmul.mubr.f32.gmra.mxu0 %v2883
    %v3023 = vpop.f32.mrf.mxu0
    %v3024 = vadd.f32 %v2953, %v3023
    %v3025 = vpop.f32.mrf.mxu0
    %v3026 = vadd.f32 %v2955, %v3025
    %3027 = vdwg.mxu0
    %v3028 = vmax.f32 %v3024, 0.0
    %v3029 = vmax.f32 %v3026, 0.0
    %v3030 = vld [vmem:[#allocation11 + $0x460] sm:$0xff]
    %v3031 = vld [vmem:[#allocation11 + $0x468] sm:$0xff]
    %v3032 = vld [vmem:[#allocation11 + $0x470] sm:$0xff]
    %v3033 = vld [vmem:[#allocation11 + $0x478] sm:$0xff]
    %v3034 = vld [vmem:[#allocation11 + $0x480] sm:$0xff]
    %v3035 = vld [vmem:[#allocation11 + $0x488] sm:$0xff]
    %v3036 = vld [vmem:[#allocation11 + $0x490] sm:$0xff]
    %v3037 = vld [vmem:[#allocation11 + $0x498] sm:$0xff]
    %v3038 = vld [vmem:[#allocation11 + $0x4a0] sm:$0xff]
    %v3039 = vld [vmem:[#allocation11 + $0x4a8] sm:$0xff]
    %v3040 = vld [vmem:[#allocation11 + $0x4b0] sm:$0xff]
    %v3041 = vld [vmem:[#allocation11 + $0x4b8] sm:$0xff]
    %v3042 = vld [vmem:[#allocation11 + $0x4c0] sm:$0xff]
    %v3043 = vld [vmem:[#allocation11 + $0x4c8] sm:$0xff]
    %v3044 = vld [vmem:[#allocation11 + $0x4d0] sm:$0xff]
    %v3045 = vld [vmem:[#allocation11 + $0x4d8] sm:$0xff]
    %v3046 = vld [vmem:[#allocation11 + $0x4e0] sm:$0xff]
    %v3047 = vld [vmem:[#allocation11 + $0x4e8] sm:$0xff]
    %v3048 = vld [vmem:[#allocation11 + $0x4f0] sm:$0xff]
    %v3049 = vld [vmem:[#allocation11 + $0x4f8] sm:$0xff]
    %v3050 = vld [vmem:[#allocation11 + $0x500] sm:$0xff]
    %v3051 = vld [vmem:[#allocation11 + $0x508] sm:$0xff]
    %v3052 = vld [vmem:[#allocation11 + $0x510] sm:$0xff]
    %v3053 = vld [vmem:[#allocation11 + $0x518] sm:$0xff]
    %v3054 = vld [vmem:[#allocation11 + $0x520] sm:$0xff]
    %v3055 = vld [vmem:[#allocation11 + $0x528] sm:$0xff]
    %v3056 = vld [vmem:[#allocation11 + $0x530] sm:$0xff]
    %v3057 = vld [vmem:[#allocation11 + $0x538] sm:$0xff]
    %v3059 = vsel %vm1565, %v3029, 0
    %3061 = vmatprep.subr.mxu0 0.0
    %3062 = vmatpush1.msra.mxu0 %v3045
    %3063 = vmatprep.subr.mxu0 0.0
    %3064 = vmatpush1.msra.mxu0 %v3044
    %3065 = vmatprep.subr.mxu0 0.0
    %3066 = vmatpush1.msra.mxu0 %v3043
    %3067 = vmatprep.subr.mxu0 0.0
    %3068 = vmatpush1.msra.mxu0 %v3042
    %3069 = vmatprep.subr.mxu0 0.0
    %3070 = vmatpush1.msra.mxu0 %v3041
    %3071 = vmatprep.subr.mxu0 0.0
    %3072 = vmatpush1.msra.mxu0 %v3040
    %3073 = vmatprep.subr.mxu0 0.0
    %3074 = vmatpush1.msra.mxu0 %v3039
    %3075 = vmatprep.subr.mxu0 0.0
    %3076 = vmatpush1.msra.mxu0 %v3038
    %3077 = vmatprep.subr.mxu0 0.0
    %3078 = vmatpush1.msra.mxu0 %v3037
    %3079 = vmatprep.subr.mxu0 0.0
    %3080 = vmatpush1.msra.mxu0 %v3036
    %3081 = vmatprep.subr.mxu0 0.0
    %3082 = vmatpush1.msra.mxu0 %v3035
    %3083 = vmatprep.subr.mxu0 0.0
    %3084 = vmatpush1.msra.mxu0 %v3034
    %3085 = vmatprep.subr.mxu0 0.0
    %3086 = vmatpush1.msra.mxu0 %v3033
    %3087 = vmatprep.subr.mxu0 0.0
    %3088 = vmatpush1.msra.mxu0 %v3032
    %3089 = vmatprep.subr.mxu0 0.0
    %3090 = vmatpush1.msra.mxu0 %v3031
    %3091 = vmatprep.subr.mxu0 0.0
    %3092 = vmatpush1.msra.mxu0 %v3030
    %3093 = vmatprep.subr.mxu0 0.0
    %3094 = vmatpush2.msra.mxu0 0.0
    %3095 = vmatprep.subr.mxu0 0.0
    %3096 = vmatpush2.msra.mxu0 0.0
    %3097 = vmatprep.subr.mxu0 0.0
    %3098 = vmatpush2.msra.mxu0 0.0
    %3099 = vmatprep.subr.mxu0 0.0
    %3100 = vmatpush2.msra.mxu0 0.0
    %3101 = vmatprep.subr.mxu0 0.0
    %3102 = vmatpush2.msra.mxu0 %v3057
    %3103 = vmatprep.subr.mxu0 0.0
    %3104 = vmatpush2.msra.mxu0 %v3056
    %3105 = vmatprep.subr.mxu0 0.0
    %3106 = vmatpush2.msra.mxu0 %v3055
    %3107 = vmatprep.subr.mxu0 0.0
    %3108 = vmatpush2.msra.mxu0 %v3054
    %3109 = vmatprep.subr.mxu0 0.0
    %3110 = vmatpush2.msra.mxu0 %v3053
    %3111 = vmatprep.subr.mxu0 0.0
    %3112 = vmatpush2.msra.mxu0 %v3052
    %3113 = vmatprep.subr.mxu0 0.0
    %3114 = vmatpush2.msra.mxu0 %v3051
    %3115 = vmatprep.subr.mxu0 0.0
    %3116 = vmatpush2.msra.mxu0 %v3050
    %3117 = vmatprep.subr.mxu0 0.0
    %3118 = vmatpush2.msra.mxu0 %v3049
    %3119 = vmatprep.subr.mxu0 0.0
    %3120 = vmatpush2.msra.mxu0 %v3048
    %3121 = vmatprep.subr.mxu0 0.0
    %3122 = vmatpush2.msra.mxu0 %v3047
    %3123 = vmatprep.subr.mxu0 0.0
    %3124 = vmatpush2.msra.mxu0 %v3046
    %3125 = vmatprep.mubr.f32.mxu0 %v3059
    %3126 = vmatmul.mubr.f32.gmra.mxu0 %v3028
    %v3127 = vpop.f32.mrf.mxu0
    %v3128 = vadd.f32 0.0, %v3127
    %v3129 = vpop.f32.mrf.mxu0
    %3130 = vdwg.mxu0
    %v3131 = vadd.f32 %v2870, %v3128
    %3132 = vrot.lane.b32.xlu0 %v872, 104
    %v3133 = vpop.permute.xlu0 %3132
    %3136 = vrot.lane.b32.xlu0 %v959, 96
    %v3137 = vpop.permute.xlu0 %3136
    %3139 = vrot.lane.b32.xlu0 %v959, 72
    %v3140 = vpop.permute.xlu0 %3139
    %v3142 = vsel %vm285, %v872, %v3133
    %v3143 = vsel %vm1565, %v3133, %v3137
    %v3144 = vsel %vm1567, %v3137, %v3140
    %v3145 = vsel %vm1580, %v3140, 0
    %3147 = vmatprep.subr.mxu0 %v184
    %3148 = vmatpush1.msra.mxu0 %v183
    %3149 = vmatprep.subr.mxu0 %v182
    %3150 = vmatpush1.msra.mxu0 %v181
    %3151 = vmatprep.subr.mxu0 %v180
    %3152 = vmatpush1.msra.mxu0 %v179
    %3153 = vmatprep.subr.mxu0 %v178
    %3154 = vmatpush1.msra.mxu0 %v177
    %3155 = vmatprep.subr.mxu0 %v176
    %3156 = vmatpush1.msra.mxu0 %v175
    %3157 = vmatprep.subr.mxu0 %v174
    %3158 = vmatpush1.msra.mxu0 %v173
    %3159 = vmatprep.subr.mxu0 %v172
    %3160 = vmatpush1.msra.mxu0 %v171
    %3161 = vmatprep.subr.mxu0 %v170
    %3162 = vmatpush1.msra.mxu0 %v169
    %3163 = vmatprep.subr.mxu0 %v168
    %3164 = vmatpush1.msra.mxu0 %v167
    %3165 = vmatprep.subr.mxu0 %v166
    %3166 = vmatpush1.msra.mxu0 %v165
    %3167 = vmatprep.subr.mxu0 %v164
    %3168 = vmatpush1.msra.mxu0 %v163
    %3169 = vmatprep.subr.mxu0 %v162
    %3170 = vmatpush1.msra.mxu0 %v161
    %3171 = vmatprep.subr.mxu0 %v160
    %3172 = vmatpush1.msra.mxu0 %v159
    %3173 = vmatprep.subr.mxu0 %v158
    %3174 = vmatpush1.msra.mxu0 %v157
    %3175 = vmatprep.subr.mxu0 %v156
    %3176 = vmatpush1.msra.mxu0 %v155
    %3177 = vmatprep.subr.mxu0 %v154
    %3178 = vmatpush1.msra.mxu0 %v153
    %3179 = vmatprep.subr.mxu0 %v216
    %3180 = vmatpush2.msra.mxu0 %v215
    %3181 = vmatprep.subr.mxu0 %v214
    %3182 = vmatpush2.msra.mxu0 %v213
    %3183 = vmatprep.subr.mxu0 %v212
    %3184 = vmatpush2.msra.mxu0 %v211
    %3185 = vmatprep.subr.mxu0 %v210
    %3186 = vmatpush2.msra.mxu0 %v209
    %3187 = vmatprep.subr.mxu0 %v208
    %3188 = vmatpush2.msra.mxu0 %v207
    %3189 = vmatprep.subr.mxu0 %v206
    %3190 = vmatpush2.msra.mxu0 %v205
    %3191 = vmatprep.subr.mxu0 %v204
    %3192 = vmatpush2.msra.mxu0 %v203
    %3193 = vmatprep.subr.mxu0 %v202
    %3194 = vmatpush2.msra.mxu0 %v201
    %3195 = vmatprep.subr.mxu0 %v200
    %3196 = vmatpush2.msra.mxu0 %v199
    %3197 = vmatprep.subr.mxu0 %v198
    %3198 = vmatpush2.msra.mxu0 %v197
    %3199 = vmatprep.subr.mxu0 %v196
    %3200 = vmatpush2.msra.mxu0 %v195
    %3201 = vmatprep.subr.mxu0 %v194
    %3202 = vmatpush2.msra.mxu0 %v193
    %3203 = vmatprep.subr.mxu0 %v192
    %3204 = vmatpush2.msra.mxu0 %v191
    %3205 = vmatprep.subr.mxu0 %v190
    %3206 = vmatpush2.msra.mxu0 %v189
    %3207 = vmatprep.subr.mxu0 %v188
    %3208 = vmatpush2.msra.mxu0 %v187
    %3209 = vmatprep.subr.mxu0 %v186
    %3210 = vmatpush2.msra.mxu0 %v185
    %3211 = vmatprep.mubr.f32.mxu0 %v3143
    %3212 = vmatmul.mubr.f32.gmra.mxu0 %v3142
    %v3213 = vpop.f32.mrf.mxu0
    %v3214 = vadd.f32 %v1573, %v3213
    %v3215 = vpop.f32.mrf.mxu0
    %v3216 = vadd.f32 %v1577, %v3215
    %3217 = vdwg.mxu0
    %3218 = vmatprep.subr.mxu0 %v248
    %3219 = vmatpush1.msra.mxu0 %v247
    %3220 = vmatprep.subr.mxu0 %v246
    %3221 = vmatpush1.msra.mxu0 %v245
    %3222 = vmatprep.subr.mxu0 %v244
    %3223 = vmatpush1.msra.mxu0 %v243
    %3224 = vmatprep.subr.mxu0 %v242
    %3225 = vmatpush1.msra.mxu0 %v241
    %3226 = vmatprep.subr.mxu0 %v240
    %3227 = vmatpush1.msra.mxu0 %v239
    %3228 = vmatprep.subr.mxu0 %v238
    %3229 = vmatpush1.msra.mxu0 %v237
    %3230 = vmatprep.subr.mxu0 %v236
    %3231 = vmatpush1.msra.mxu0 %v235
    %3232 = vmatprep.subr.mxu0 %v234
    %3233 = vmatpush1.msra.mxu0 %v233
    %3234 = vmatprep.subr.mxu0 %v232
    %3235 = vmatpush1.msra.mxu0 %v231
    %3236 = vmatprep.subr.mxu0 %v230
    %3237 = vmatpush1.msra.mxu0 %v229
    %3238 = vmatprep.subr.mxu0 %v228
    %3239 = vmatpush1.msra.mxu0 %v227
    %3240 = vmatprep.subr.mxu0 %v226
    %3241 = vmatpush1.msra.mxu0 %v225
    %3242 = vmatprep.subr.mxu0 %v224
    %3243 = vmatpush1.msra.mxu0 %v223
    %3244 = vmatprep.subr.mxu0 %v222
    %3245 = vmatpush1.msra.mxu0 %v221
    %3246 = vmatprep.subr.mxu0 %v220
    %3247 = vmatpush1.msra.mxu0 %v219
    %3248 = vmatprep.subr.mxu0 %v218
    %3249 = vmatpush1.msra.mxu0 %v217
    %3250 = vmatprep.subr.mxu0 0.0
    %3251 = vmatpush2.msra.mxu0 0.0
    %3252 = vmatprep.subr.mxu0 0.0
    %3253 = vmatpush2.msra.mxu0 0.0
    %3254 = vmatprep.subr.mxu0 0.0
    %3255 = vmatpush2.msra.mxu0 0.0
    %3256 = vmatprep.subr.mxu0 0.0
    %3257 = vmatpush2.msra.mxu0 0.0
    %3258 = vmatprep.subr.mxu0 0.0
    %3259 = vmatpush2.msra.mxu0 0.0
    %3260 = vmatprep.subr.mxu0 0.0
    %3261 = vmatpush2.msra.mxu0 0.0
    %3262 = vmatprep.subr.mxu0 0.0
    %3263 = vmatpush2.msra.mxu0 0.0
    %3264 = vmatprep.subr.mxu0 0.0
    %3265 = vmatpush2.msra.mxu0 0.0
    %3266 = vmatprep.subr.mxu0 %v264
    %3267 = vmatpush2.msra.mxu0 %v263
    %3268 = vmatprep.subr.mxu0 %v262
    %3269 = vmatpush2.msra.mxu0 %v261
    %3270 = vmatprep.subr.mxu0 %v260
    %3271 = vmatpush2.msra.mxu0 %v259
    %3272 = vmatprep.subr.mxu0 %v258
    %3273 = vmatpush2.msra.mxu0 %v257
    %3274 = vmatprep.subr.mxu0 %v256
    %3275 = vmatpush2.msra.mxu0 %v255
    %3276 = vmatprep.subr.mxu0 %v254
    %3277 = vmatpush2.msra.mxu0 %v253
    %3278 = vmatprep.subr.mxu0 %v252
    %3279 = vmatpush2.msra.mxu0 %v251
    %3280 = vmatprep.subr.mxu0 %v250
    %3281 = vmatpush2.msra.mxu0 %v249
    %3282 = vmatprep.mubr.f32.mxu0 %v3145
    %3283 = vmatmul.mubr.f32.gmra.mxu0 %v3144
    %v3284 = vpop.f32.mrf.mxu0
    %v3285 = vadd.f32 %v3214, %v3284
    %v3286 = vpop.f32.mrf.mxu0
    %v3287 = vadd.f32 %v3216, %v3286
    %3288 = vdwg.mxu0
    %v3289 = vmax.f32 %v3285, 0.0
    %v3290 = vmax.f32 %v3287, 0.0
    %v3291 = vld [vmem:[#allocation11 + $0x540] sm:$0xff]
    %v3292 = vld [vmem:[#allocation11 + $0x548] sm:$0xff]
    %v3293 = vld [vmem:[#allocation11 + $0x550] sm:$0xff]
    %v3294 = vld [vmem:[#allocation11 + $0x558] sm:$0xff]
    %v3295 = vld [vmem:[#allocation11 + $0x560] sm:$0xff]
    %v3296 = vld [vmem:[#allocation11 + $0x568] sm:$0xff]
    %v3297 = vld [vmem:[#allocation11 + $0x570] sm:$0xff]
    %v3298 = vld [vmem:[#allocation11 + $0x578] sm:$0xff]
    %v3299 = vld [vmem:[#allocation11 + $0x580] sm:$0xff]
    %v3300 = vld [vmem:[#allocation11 + $0x588] sm:$0xff]
    %v3301 = vld [vmem:[#allocation11 + $0x590] sm:$0xff]
    %v3302 = vld [vmem:[#allocation11 + $0x598] sm:$0xff]
    %v3303 = vld [vmem:[#allocation11 + $0x5a0] sm:$0xff]
    %v3304 = vld [vmem:[#allocation11 + $0x5a8] sm:$0xff]
    %v3305 = vld [vmem:[#allocation11 + $0x5b0] sm:$0xff]
    %v3306 = vld [vmem:[#allocation11 + $0x5b8] sm:$0xff]
    %v3307 = vld [vmem:[#allocation11 + $0x5c0] sm:$0xff]
    %v3308 = vld [vmem:[#allocation11 + $0x5c8] sm:$0xff]
    %v3309 = vld [vmem:[#allocation11 + $0x5d0] sm:$0xff]
    %v3310 = vld [vmem:[#allocation11 + $0x5d8] sm:$0xff]
    %v3311 = vld [vmem:[#allocation11 + $0x5e0] sm:$0xff]
    %v3312 = vld [vmem:[#allocation11 + $0x5e8] sm:$0xff]
    %v3313 = vld [vmem:[#allocation11 + $0x5f0] sm:$0xff]
    %v3314 = vld [vmem:[#allocation11 + $0x5f8] sm:$0xff]
    %v3315 = vld [vmem:[#allocation11 + $0x600] sm:$0xff]
    %v3316 = vld [vmem:[#allocation11 + $0x608] sm:$0xff]
    %v3317 = vld [vmem:[#allocation11 + $0x610] sm:$0xff]
    %v3318 = vld [vmem:[#allocation11 + $0x618] sm:$0xff]
    %v3320 = vsel %vm1565, %v3290, 0
    %3322 = vmatprep.subr.mxu0 0.0
    %3323 = vmatpush1.msra.mxu0 %v3306
    %3324 = vmatprep.subr.mxu0 0.0
    %3325 = vmatpush1.msra.mxu0 %v3305
    %3326 = vmatprep.subr.mxu0 0.0
    %3327 = vmatpush1.msra.mxu0 %v3304
    %3328 = vmatprep.subr.mxu0 0.0
    %3329 = vmatpush1.msra.mxu0 %v3303
    %3330 = vmatprep.subr.mxu0 0.0
    %3331 = vmatpush1.msra.mxu0 %v3302
    %3332 = vmatprep.subr.mxu0 0.0
    %3333 = vmatpush1.msra.mxu0 %v3301
    %3334 = vmatprep.subr.mxu0 0.0
    %3335 = vmatpush1.msra.mxu0 %v3300
    %3336 = vmatprep.subr.mxu0 0.0
    %3337 = vmatpush1.msra.mxu0 %v3299
    %3338 = vmatprep.subr.mxu0 0.0
    %3339 = vmatpush1.msra.mxu0 %v3298
    %3340 = vmatprep.subr.mxu0 0.0
    %3341 = vmatpush1.msra.mxu0 %v3297
    %3342 = vmatprep.subr.mxu0 0.0
    %3343 = vmatpush1.msra.mxu0 %v3296
    %3344 = vmatprep.subr.mxu0 0.0
    %3345 = vmatpush1.msra.mxu0 %v3295
    %3346 = vmatprep.subr.mxu0 0.0
    %3347 = vmatpush1.msra.mxu0 %v3294
    %3348 = vmatprep.subr.mxu0 0.0
    %3349 = vmatpush1.msra.mxu0 %v3293
    %3350 = vmatprep.subr.mxu0 0.0
    %3351 = vmatpush1.msra.mxu0 %v3292
    %3352 = vmatprep.subr.mxu0 0.0
    %3353 = vmatpush1.msra.mxu0 %v3291
    %3354 = vmatprep.subr.mxu0 0.0
    %3355 = vmatpush2.msra.mxu0 0.0
    %3356 = vmatprep.subr.mxu0 0.0
    %3357 = vmatpush2.msra.mxu0 0.0
    %3358 = vmatprep.subr.mxu0 0.0
    %3359 = vmatpush2.msra.mxu0 0.0
    %3360 = vmatprep.subr.mxu0 0.0
    %3361 = vmatpush2.msra.mxu0 0.0
    %3362 = vmatprep.subr.mxu0 0.0
    %3363 = vmatpush2.msra.mxu0 %v3318
    %3364 = vmatprep.subr.mxu0 0.0
    %3365 = vmatpush2.msra.mxu0 %v3317
    %3366 = vmatprep.subr.mxu0 0.0
    %3367 = vmatpush2.msra.mxu0 %v3316
    %3368 = vmatprep.subr.mxu0 0.0
    %3369 = vmatpush2.msra.mxu0 %v3315
    %3370 = vmatprep.subr.mxu0 0.0
    %3371 = vmatpush2.msra.mxu0 %v3314
    %3372 = vmatprep.subr.mxu0 0.0
    %3373 = vmatpush2.msra.mxu0 %v3313
    %3374 = vmatprep.subr.mxu0 0.0
    %3375 = vmatpush2.msra.mxu0 %v3312
    %3376 = vmatprep.subr.mxu0 0.0
    %3377 = vmatpush2.msra.mxu0 %v3311
    %3378 = vmatprep.subr.mxu0 0.0
    %3379 = vmatpush2.msra.mxu0 %v3310
    %3380 = vmatprep.subr.mxu0 0.0
    %3381 = vmatpush2.msra.mxu0 %v3309
    %3382 = vmatprep.subr.mxu0 0.0
    %3383 = vmatpush2.msra.mxu0 %v3308
    %3384 = vmatprep.subr.mxu0 0.0
    %3385 = vmatpush2.msra.mxu0 %v3307
    %3386 = vmatprep.mubr.f32.mxu0 %v3320
    %3387 = vmatmul.mubr.f32.gmra.mxu0 %v3289
    %v3388 = vpop.f32.mrf.mxu0
    %v3389 = vadd.f32 0.0, %v3388
    %v3390 = vpop.f32.mrf.mxu0
    %3391 = vdwg.mxu0
    %v3392 = vadd.f32 %v3131, %v3389
    %3393 = vrot.lane.b32.xlu0 %v959, 104
    %v3394 = vpop.permute.xlu0 %3393
    %3397 = vrot.lane.b32.xlu0 %v1042, 96
    %v3398 = vpop.permute.xlu0 %3397
    %3400 = vrot.lane.b32.xlu0 %v1042, 72
    %v3401 = vpop.permute.xlu0 %3400
    %v3403 = vsel %vm285, %v959, %v3394
    %v3404 = vsel %vm1565, %v3394, %v3398
    %v3405 = vsel %vm1567, %v3398, %v3401
    %v3406 = vsel %vm1580, %v3401, 0
    %3408 = vmatprep.subr.mxu0 %v184
    %3409 = vmatpush1.msra.mxu0 %v183
    %3410 = vmatprep.subr.mxu0 %v182
    %3411 = vmatpush1.msra.mxu0 %v181
    %3412 = vmatprep.subr.mxu0 %v180
    %3413 = vmatpush1.msra.mxu0 %v179
    %3414 = vmatprep.subr.mxu0 %v178
    %3415 = vmatpush1.msra.mxu0 %v177
    %3416 = vmatprep.subr.mxu0 %v176
    %3417 = vmatpush1.msra.mxu0 %v175
    %3418 = vmatprep.subr.mxu0 %v174
    %3419 = vmatpush1.msra.mxu0 %v173
    %3420 = vmatprep.subr.mxu0 %v172
    %3421 = vmatpush1.msra.mxu0 %v171
    %3422 = vmatprep.subr.mxu0 %v170
    %3423 = vmatpush1.msra.mxu0 %v169
    %3424 = vmatprep.subr.mxu0 %v168
    %3425 = vmatpush1.msra.mxu0 %v167
    %3426 = vmatprep.subr.mxu0 %v166
    %3427 = vmatpush1.msra.mxu0 %v165
    %3428 = vmatprep.subr.mxu0 %v164
    %3429 = vmatpush1.msra.mxu0 %v163
    %3430 = vmatprep.subr.mxu0 %v162
    %3431 = vmatpush1.msra.mxu0 %v161
    %3432 = vmatprep.subr.mxu0 %v160
    %3433 = vmatpush1.msra.mxu0 %v159
    %3434 = vmatprep.subr.mxu0 %v158
    %3435 = vmatpush1.msra.mxu0 %v157
    %3436 = vmatprep.subr.mxu0 %v156
    %3437 = vmatpush1.msra.mxu0 %v155
    %3438 = vmatprep.subr.mxu0 %v154
    %3439 = vmatpush1.msra.mxu0 %v153
    %3440 = vmatprep.subr.mxu0 %v216
    %3441 = vmatpush2.msra.mxu0 %v215
    %3442 = vmatprep.subr.mxu0 %v214
    %3443 = vmatpush2.msra.mxu0 %v213
    %3444 = vmatprep.subr.mxu0 %v212
    %3445 = vmatpush2.msra.mxu0 %v211
    %3446 = vmatprep.subr.mxu0 %v210
    %3447 = vmatpush2.msra.mxu0 %v209
    %3448 = vmatprep.subr.mxu0 %v208
    %3449 = vmatpush2.msra.mxu0 %v207
    %3450 = vmatprep.subr.mxu0 %v206
    %3451 = vmatpush2.msra.mxu0 %v205
    %3452 = vmatprep.subr.mxu0 %v204
    %3453 = vmatpush2.msra.mxu0 %v203
    %3454 = vmatprep.subr.mxu0 %v202
    %3455 = vmatpush2.msra.mxu0 %v201
    %3456 = vmatprep.subr.mxu0 %v200
    %3457 = vmatpush2.msra.mxu0 %v199
    %3458 = vmatprep.subr.mxu0 %v198
    %3459 = vmatpush2.msra.mxu0 %v197
    %3460 = vmatprep.subr.mxu0 %v196
    %3461 = vmatpush2.msra.mxu0 %v195
    %3462 = vmatprep.subr.mxu0 %v194
    %3463 = vmatpush2.msra.mxu0 %v193
    %3464 = vmatprep.subr.mxu0 %v192
    %3465 = vmatpush2.msra.mxu0 %v191
    %3466 = vmatprep.subr.mxu0 %v190
    %3467 = vmatpush2.msra.mxu0 %v189
    %3468 = vmatprep.subr.mxu0 %v188
    %3469 = vmatpush2.msra.mxu0 %v187
    %3470 = vmatprep.subr.mxu0 %v186
    %3471 = vmatpush2.msra.mxu0 %v185
    %3472 = vmatprep.mubr.f32.mxu0 %v3404
    %3473 = vmatmul.mubr.f32.gmra.mxu0 %v3403
    %v3474 = vpop.f32.mrf.mxu0
    %v3475 = vadd.f32 %v1573, %v3474
    %v3476 = vpop.f32.mrf.mxu0
    %v3477 = vadd.f32 %v1577, %v3476
    %3478 = vdwg.mxu0
    %3479 = vmatprep.subr.mxu0 %v248
    %3480 = vmatpush1.msra.mxu0 %v247
    %3481 = vmatprep.subr.mxu0 %v246
    %3482 = vmatpush1.msra.mxu0 %v245
    %3483 = vmatprep.subr.mxu0 %v244
    %3484 = vmatpush1.msra.mxu0 %v243
    %3485 = vmatprep.subr.mxu0 %v242
    %3486 = vmatpush1.msra.mxu0 %v241
    %3487 = vmatprep.subr.mxu0 %v240
    %3488 = vmatpush1.msra.mxu0 %v239
    %3489 = vmatprep.subr.mxu0 %v238
    %3490 = vmatpush1.msra.mxu0 %v237
    %3491 = vmatprep.subr.mxu0 %v236
    %3492 = vmatpush1.msra.mxu0 %v235
    %3493 = vmatprep.subr.mxu0 %v234
    %3494 = vmatpush1.msra.mxu0 %v233
    %3495 = vmatprep.subr.mxu0 %v232
    %3496 = vmatpush1.msra.mxu0 %v231
    %3497 = vmatprep.subr.mxu0 %v230
    %3498 = vmatpush1.msra.mxu0 %v229
    %3499 = vmatprep.subr.mxu0 %v228
    %3500 = vmatpush1.msra.mxu0 %v227
    %3501 = vmatprep.subr.mxu0 %v226
    %3502 = vmatpush1.msra.mxu0 %v225
    %3503 = vmatprep.subr.mxu0 %v224
    %3504 = vmatpush1.msra.mxu0 %v223
    %3505 = vmatprep.subr.mxu0 %v222
    %3506 = vmatpush1.msra.mxu0 %v221
    %3507 = vmatprep.subr.mxu0 %v220
    %3508 = vmatpush1.msra.mxu0 %v219
    %3509 = vmatprep.subr.mxu0 %v218
    %3510 = vmatpush1.msra.mxu0 %v217
    %3511 = vmatprep.subr.mxu0 0.0
    %3512 = vmatpush2.msra.mxu0 0.0
    %3513 = vmatprep.subr.mxu0 0.0
    %3514 = vmatpush2.msra.mxu0 0.0
    %3515 = vmatprep.subr.mxu0 0.0
    %3516 = vmatpush2.msra.mxu0 0.0
    %3517 = vmatprep.subr.mxu0 0.0
    %3518 = vmatpush2.msra.mxu0 0.0
    %3519 = vmatprep.subr.mxu0 0.0
    %3520 = vmatpush2.msra.mxu0 0.0
    %3521 = vmatprep.subr.mxu0 0.0
    %3522 = vmatpush2.msra.mxu0 0.0
    %3523 = vmatprep.subr.mxu0 0.0
    %3524 = vmatpush2.msra.mxu0 0.0
    %3525 = vmatprep.subr.mxu0 0.0
    %3526 = vmatpush2.msra.mxu0 0.0
    %3527 = vmatprep.subr.mxu0 %v264
    %3528 = vmatpush2.msra.mxu0 %v263
    %3529 = vmatprep.subr.mxu0 %v262
    %3530 = vmatpush2.msra.mxu0 %v261
    %3531 = vmatprep.subr.mxu0 %v260
    %3532 = vmatpush2.msra.mxu0 %v259
    %3533 = vmatprep.subr.mxu0 %v258
    %3534 = vmatpush2.msra.mxu0 %v257
    %3535 = vmatprep.subr.mxu0 %v256
    %3536 = vmatpush2.msra.mxu0 %v255
    %3537 = vmatprep.subr.mxu0 %v254
    %3538 = vmatpush2.msra.mxu0 %v253
    %3539 = vmatprep.subr.mxu0 %v252
    %3540 = vmatpush2.msra.mxu0 %v251
    %3541 = vmatprep.subr.mxu0 %v250
    %3542 = vmatpush2.msra.mxu0 %v249
    %3543 = vmatprep.mubr.f32.mxu0 %v3406
    %3544 = vmatmul.mubr.f32.gmra.mxu0 %v3405
    %v3545 = vpop.f32.mrf.mxu0
    %v3546 = vadd.f32 %v3475, %v3545
    %v3547 = vpop.f32.mrf.mxu0
    %v3548 = vadd.f32 %v3477, %v3547
    %3549 = vdwg.mxu0
    %v3550 = vmax.f32 %v3546, 0.0
    %v3551 = vmax.f32 %v3548, 0.0
    %v3552 = vld [vmem:[#allocation11 + $0x620] sm:$0xff]
    %v3553 = vld [vmem:[#allocation11 + $0x628] sm:$0xff]
    %v3554 = vld [vmem:[#allocation11 + $0x630] sm:$0xff]
    %v3555 = vld [vmem:[#allocation11 + $0x638] sm:$0xff]
    %v3556 = vld [vmem:[#allocation11 + $0x640] sm:$0xff]
    %v3557 = vld [vmem:[#allocation11 + $0x648] sm:$0xff]
    %v3558 = vld [vmem:[#allocation11 + $0x650] sm:$0xff]
    %v3559 = vld [vmem:[#allocation11 + $0x658] sm:$0xff]
    %v3560 = vld [vmem:[#allocation11 + $0x660] sm:$0xff]
    %v3561 = vld [vmem:[#allocation11 + $0x668] sm:$0xff]
    %v3562 = vld [vmem:[#allocation11 + $0x670] sm:$0xff]
    %v3563 = vld [vmem:[#allocation11 + $0x678] sm:$0xff]
    %v3564 = vld [vmem:[#allocation11 + $0x680] sm:$0xff]
    %v3565 = vld [vmem:[#allocation11 + $0x688] sm:$0xff]
    %v3566 = vld [vmem:[#allocation11 + $0x690] sm:$0xff]
    %v3567 = vld [vmem:[#allocation11 + $0x698] sm:$0xff]
    %v3568 = vld [vmem:[#allocation11 + $0x6a0] sm:$0xff]
    %v3569 = vld [vmem:[#allocation11 + $0x6a8] sm:$0xff]
    %v3570 = vld [vmem:[#allocation11 + $0x6b0] sm:$0xff]
    %v3571 = vld [vmem:[#allocation11 + $0x6b8] sm:$0xff]
    %v3572 = vld [vmem:[#allocation11 + $0x6c0] sm:$0xff]
    %v3573 = vld [vmem:[#allocation11 + $0x6c8] sm:$0xff]
    %v3574 = vld [vmem:[#allocation11 + $0x6d0] sm:$0xff]
    %v3575 = vld [vmem:[#allocation11 + $0x6d8] sm:$0xff]
    %v3576 = vld [vmem:[#allocation11 + $0x6e0] sm:$0xff]
    %v3577 = vld [vmem:[#allocation11 + $0x6e8] sm:$0xff]
    %v3578 = vld [vmem:[#allocation11 + $0x6f0] sm:$0xff]
    %v3579 = vld [vmem:[#allocation11 + $0x6f8] sm:$0xff]
    %v3581 = vsel %vm1565, %v3551, 0
    %3583 = vmatprep.subr.mxu0 0.0
    %3584 = vmatpush1.msra.mxu0 %v3567
    %3585 = vmatprep.subr.mxu0 0.0
    %3586 = vmatpush1.msra.mxu0 %v3566
    %3587 = vmatprep.subr.mxu0 0.0
    %3588 = vmatpush1.msra.mxu0 %v3565
    %3589 = vmatprep.subr.mxu0 0.0
    %3590 = vmatpush1.msra.mxu0 %v3564
    %3591 = vmatprep.subr.mxu0 0.0
    %3592 = vmatpush1.msra.mxu0 %v3563
    %3593 = vmatprep.subr.mxu0 0.0
    %3594 = vmatpush1.msra.mxu0 %v3562
    %3595 = vmatprep.subr.mxu0 0.0
    %3596 = vmatpush1.msra.mxu0 %v3561
    %3597 = vmatprep.subr.mxu0 0.0
    %3598 = vmatpush1.msra.mxu0 %v3560
    %3599 = vmatprep.subr.mxu0 0.0
    %3600 = vmatpush1.msra.mxu0 %v3559
    %3601 = vmatprep.subr.mxu0 0.0
    %3602 = vmatpush1.msra.mxu0 %v3558
    %3603 = vmatprep.subr.mxu0 0.0
    %3604 = vmatpush1.msra.mxu0 %v3557
    %3605 = vmatprep.subr.mxu0 0.0
    %3606 = vmatpush1.msra.mxu0 %v3556
    %3607 = vmatprep.subr.mxu0 0.0
    %3608 = vmatpush1.msra.mxu0 %v3555
    %3609 = vmatprep.subr.mxu0 0.0
    %3610 = vmatpush1.msra.mxu0 %v3554
    %3611 = vmatprep.subr.mxu0 0.0
    %3612 = vmatpush1.msra.mxu0 %v3553
    %3613 = vmatprep.subr.mxu0 0.0
    %3614 = vmatpush1.msra.mxu0 %v3552
    %3615 = vmatprep.subr.mxu0 0.0
    %3616 = vmatpush2.msra.mxu0 0.0
    %3617 = vmatprep.subr.mxu0 0.0
    %3618 = vmatpush2.msra.mxu0 0.0
    %3619 = vmatprep.subr.mxu0 0.0
    %3620 = vmatpush2.msra.mxu0 0.0
    %3621 = vmatprep.subr.mxu0 0.0
    %3622 = vmatpush2.msra.mxu0 0.0
    %3623 = vmatprep.subr.mxu0 0.0
    %3624 = vmatpush2.msra.mxu0 %v3579
    %3625 = vmatprep.subr.mxu0 0.0
    %3626 = vmatpush2.msra.mxu0 %v3578
    %3627 = vmatprep.subr.mxu0 0.0
    %3628 = vmatpush2.msra.mxu0 %v3577
    %3629 = vmatprep.subr.mxu0 0.0
    %3630 = vmatpush2.msra.mxu0 %v3576
    %3631 = vmatprep.subr.mxu0 0.0
    %3632 = vmatpush2.msra.mxu0 %v3575
    %3633 = vmatprep.subr.mxu0 0.0
    %3634 = vmatpush2.msra.mxu0 %v3574
    %3635 = vmatprep.subr.mxu0 0.0
    %3636 = vmatpush2.msra.mxu0 %v3573
    %3637 = vmatprep.subr.mxu0 0.0
    %3638 = vmatpush2.msra.mxu0 %v3572
    %3639 = vmatprep.subr.mxu0 0.0
    %3640 = vmatpush2.msra.mxu0 %v3571
    %3641 = vmatprep.subr.mxu0 0.0
    %3642 = vmatpush2.msra.mxu0 %v3570
    %3643 = vmatprep.subr.mxu0 0.0
    %3644 = vmatpush2.msra.mxu0 %v3569
    %3645 = vmatprep.subr.mxu0 0.0
    %3646 = vmatpush2.msra.mxu0 %v3568
    %3647 = vmatprep.mubr.f32.mxu0 %v3581
    %3648 = vmatmul.mubr.f32.gmra.mxu0 %v3550
    %v3649 = vpop.f32.mrf.mxu0
    %v3650 = vadd.f32 0.0, %v3649
    %v3651 = vpop.f32.mrf.mxu0
    %3652 = vdwg.mxu0
    %v3653 = vadd.f32 %v3392, %v3650
    %3654 = vrot.lane.b32.xlu0 %v1042, 104
    %v3655 = vpop.permute.xlu0 %3654
    %3658 = vrot.lane.b32.xlu0 %v1129, 96
    %v3659 = vpop.permute.xlu0 %3658
    %3661 = vrot.lane.b32.xlu0 %v1129, 72
    %v3662 = vpop.permute.xlu0 %3661
    %v3664 = vsel %vm285, %v1042, %v3655
    %v3665 = vsel %vm1565, %v3655, %v3659
    %v3666 = vsel %vm1567, %v3659, %v3662
    %v3667 = vsel %vm1580, %v3662, 0
    %3669 = vmatprep.subr.mxu0 %v184
    %3670 = vmatpush1.msra.mxu0 %v183
    %3671 = vmatprep.subr.mxu0 %v182
    %3672 = vmatpush1.msra.mxu0 %v181
    %3673 = vmatprep.subr.mxu0 %v180
    %3674 = vmatpush1.msra.mxu0 %v179
    %3675 = vmatprep.subr.mxu0 %v178
    %3676 = vmatpush1.msra.mxu0 %v177
    %3677 = vmatprep.subr.mxu0 %v176
    %3678 = vmatpush1.msra.mxu0 %v175
    %3679 = vmatprep.subr.mxu0 %v174
    %3680 = vmatpush1.msra.mxu0 %v173
    %3681 = vmatprep.subr.mxu0 %v172
    %3682 = vmatpush1.msra.mxu0 %v171
    %3683 = vmatprep.subr.mxu0 %v170
    %3684 = vmatpush1.msra.mxu0 %v169
    %3685 = vmatprep.subr.mxu0 %v168
    %3686 = vmatpush1.msra.mxu0 %v167
    %3687 = vmatprep.subr.mxu0 %v166
    %3688 = vmatpush1.msra.mxu0 %v165
    %3689 = vmatprep.subr.mxu0 %v164
    %3690 = vmatpush1.msra.mxu0 %v163
    %3691 = vmatprep.subr.mxu0 %v162
    %3692 = vmatpush1.msra.mxu0 %v161
    %3693 = vmatprep.subr.mxu0 %v160
    %3694 = vmatpush1.msra.mxu0 %v159
    %3695 = vmatprep.subr.mxu0 %v158
    %3696 = vmatpush1.msra.mxu0 %v157
    %3697 = vmatprep.subr.mxu0 %v156
    %3698 = vmatpush1.msra.mxu0 %v155
    %3699 = vmatprep.subr.mxu0 %v154
    %3700 = vmatpush1.msra.mxu0 %v153
    %3701 = vmatprep.subr.mxu0 %v216
    %3702 = vmatpush2.msra.mxu0 %v215
    %3703 = vmatprep.subr.mxu0 %v214
    %3704 = vmatpush2.msra.mxu0 %v213
    %3705 = vmatprep.subr.mxu0 %v212
    %3706 = vmatpush2.msra.mxu0 %v211
    %3707 = vmatprep.subr.mxu0 %v210
    %3708 = vmatpush2.msra.mxu0 %v209
    %3709 = vmatprep.subr.mxu0 %v208
    %3710 = vmatpush2.msra.mxu0 %v207
    %3711 = vmatprep.subr.mxu0 %v206
    %3712 = vmatpush2.msra.mxu0 %v205
    %3713 = vmatprep.subr.mxu0 %v204
    %3714 = vmatpush2.msra.mxu0 %v203
    %3715 = vmatprep.subr.mxu0 %v202
    %3716 = vmatpush2.msra.mxu0 %v201
    %3717 = vmatprep.subr.mxu0 %v200
    %3718 = vmatpush2.msra.mxu0 %v199
    %3719 = vmatprep.subr.mxu0 %v198
    %3720 = vmatpush2.msra.mxu0 %v197
    %3721 = vmatprep.subr.mxu0 %v196
    %3722 = vmatpush2.msra.mxu0 %v195
    %3723 = vmatprep.subr.mxu0 %v194
    %3724 = vmatpush2.msra.mxu0 %v193
    %3725 = vmatprep.subr.mxu0 %v192
    %3726 = vmatpush2.msra.mxu0 %v191
    %3727 = vmatprep.subr.mxu0 %v190
    %3728 = vmatpush2.msra.mxu0 %v189
    %3729 = vmatprep.subr.mxu0 %v188
    %3730 = vmatpush2.msra.mxu0 %v187
    %3731 = vmatprep.subr.mxu0 %v186
    %3732 = vmatpush2.msra.mxu0 %v185
    %3733 = vmatprep.mubr.f32.mxu0 %v3665
    %3734 = vmatmul.mubr.f32.gmra.mxu0 %v3664
    %v3735 = vpop.f32.mrf.mxu0
    %v3736 = vadd.f32 %v1573, %v3735
    %v3737 = vpop.f32.mrf.mxu0
    %v3738 = vadd.f32 %v1577, %v3737
    %3739 = vdwg.mxu0
    %3740 = vmatprep.subr.mxu0 %v248
    %3741 = vmatpush1.msra.mxu0 %v247
    %3742 = vmatprep.subr.mxu0 %v246
    %3743 = vmatpush1.msra.mxu0 %v245
    %3744 = vmatprep.subr.mxu0 %v244
    %3745 = vmatpush1.msra.mxu0 %v243
    %3746 = vmatprep.subr.mxu0 %v242
    %3747 = vmatpush1.msra.mxu0 %v241
    %3748 = vmatprep.subr.mxu0 %v240
    %3749 = vmatpush1.msra.mxu0 %v239
    %3750 = vmatprep.subr.mxu0 %v238
    %3751 = vmatpush1.msra.mxu0 %v237
    %3752 = vmatprep.subr.mxu0 %v236
    %3753 = vmatpush1.msra.mxu0 %v235
    %3754 = vmatprep.subr.mxu0 %v234
    %3755 = vmatpush1.msra.mxu0 %v233
    %3756 = vmatprep.subr.mxu0 %v232
    %3757 = vmatpush1.msra.mxu0 %v231
    %3758 = vmatprep.subr.mxu0 %v230
    %3759 = vmatpush1.msra.mxu0 %v229
    %3760 = vmatprep.subr.mxu0 %v228
    %3761 = vmatpush1.msra.mxu0 %v227
    %3762 = vmatprep.subr.mxu0 %v226
    %3763 = vmatpush1.msra.mxu0 %v225
    %3764 = vmatprep.subr.mxu0 %v224
    %3765 = vmatpush1.msra.mxu0 %v223
    %3766 = vmatprep.subr.mxu0 %v222
    %3767 = vmatpush1.msra.mxu0 %v221
    %3768 = vmatprep.subr.mxu0 %v220
    %3769 = vmatpush1.msra.mxu0 %v219
    %3770 = vmatprep.subr.mxu0 %v218
    %3771 = vmatpush1.msra.mxu0 %v217
    %3772 = vmatprep.subr.mxu0 0.0
    %3773 = vmatpush2.msra.mxu0 0.0
    %3774 = vmatprep.subr.mxu0 0.0
    %3775 = vmatpush2.msra.mxu0 0.0
    %3776 = vmatprep.subr.mxu0 0.0
    %3777 = vmatpush2.msra.mxu0 0.0
    %3778 = vmatprep.subr.mxu0 0.0
    %3779 = vmatpush2.msra.mxu0 0.0
    %3780 = vmatprep.subr.mxu0 0.0
    %3781 = vmatpush2.msra.mxu0 0.0
    %3782 = vmatprep.subr.mxu0 0.0
    %3783 = vmatpush2.msra.mxu0 0.0
    %3784 = vmatprep.subr.mxu0 0.0
    %3785 = vmatpush2.msra.mxu0 0.0
    %3786 = vmatprep.subr.mxu0 0.0
    %3787 = vmatpush2.msra.mxu0 0.0
    %3788 = vmatprep.subr.mxu0 %v264
    %3789 = vmatpush2.msra.mxu0 %v263
    %3790 = vmatprep.subr.mxu0 %v262
    %3791 = vmatpush2.msra.mxu0 %v261
    %3792 = vmatprep.subr.mxu0 %v260
    %3793 = vmatpush2.msra.mxu0 %v259
    %3794 = vmatprep.subr.mxu0 %v258
    %3795 = vmatpush2.msra.mxu0 %v257
    %3796 = vmatprep.subr.mxu0 %v256
    %3797 = vmatpush2.msra.mxu0 %v255
    %3798 = vmatprep.subr.mxu0 %v254
    %3799 = vmatpush2.msra.mxu0 %v253
    %3800 = vmatprep.subr.mxu0 %v252
    %3801 = vmatpush2.msra.mxu0 %v251
    %3802 = vmatprep.subr.mxu0 %v250
    %3803 = vmatpush2.msra.mxu0 %v249
    %3804 = vmatprep.mubr.f32.mxu0 %v3667
    %3805 = vmatmul.mubr.f32.gmra.mxu0 %v3666
    %v3806 = vpop.f32.mrf.mxu0
    %v3807 = vadd.f32 %v3736, %v3806
    %v3808 = vpop.f32.mrf.mxu0
    %v3809 = vadd.f32 %v3738, %v3808
    %3810 = vdwg.mxu0
    %v3811 = vmax.f32 %v3807, 0.0
    %v3812 = vmax.f32 %v3809, 0.0
    %v3813 = vld [vmem:[#allocation11 + $0x700] sm:$0xff]
    %v3814 = vld [vmem:[#allocation11 + $0x708] sm:$0xff]
    %v3815 = vld [vmem:[#allocation11 + $0x710] sm:$0xff]
    %v3816 = vld [vmem:[#allocation11 + $0x718] sm:$0xff]
    %v3817 = vld [vmem:[#allocation11 + $0x720] sm:$0xff]
    %v3818 = vld [vmem:[#allocation11 + $0x728] sm:$0xff]
    %v3819 = vld [vmem:[#allocation11 + $0x730] sm:$0xff]
    %v3820 = vld [vmem:[#allocation11 + $0x738] sm:$0xff]
    %v3821 = vld [vmem:[#allocation11 + $0x740] sm:$0xff]
    %v3822 = vld [vmem:[#allocation11 + $0x748] sm:$0xff]
    %v3823 = vld [vmem:[#allocation11 + $0x750] sm:$0xff]
    %v3824 = vld [vmem:[#allocation11 + $0x758] sm:$0xff]
    %v3825 = vld [vmem:[#allocation11 + $0x760] sm:$0xff]
    %v3826 = vld [vmem:[#allocation11 + $0x768] sm:$0xff]
    %v3827 = vld [vmem:[#allocation11 + $0x770] sm:$0xff]
    %v3828 = vld [vmem:[#allocation11 + $0x778] sm:$0xff]
    %v3829 = vld [vmem:[#allocation11 + $0x780] sm:$0xff]
    %v3830 = vld [vmem:[#allocation11 + $0x788] sm:$0xff]
    %v3831 = vld [vmem:[#allocation11 + $0x790] sm:$0xff]
    %v3832 = vld [vmem:[#allocation11 + $0x798] sm:$0xff]
    %v3833 = vld [vmem:[#allocation11 + $0x7a0] sm:$0xff]
    %v3834 = vld [vmem:[#allocation11 + $0x7a8] sm:$0xff]
    %v3835 = vld [vmem:[#allocation11 + $0x7b0] sm:$0xff]
    %v3836 = vld [vmem:[#allocation11 + $0x7b8] sm:$0xff]
    %v3837 = vld [vmem:[#allocation11 + $0x7c0] sm:$0xff]
    %v3838 = vld [vmem:[#allocation11 + $0x7c8] sm:$0xff]
    %v3839 = vld [vmem:[#allocation11 + $0x7d0] sm:$0xff]
    %v3840 = vld [vmem:[#allocation11 + $0x7d8] sm:$0xff]
    %v3842 = vsel %vm1565, %v3812, 0
    %3844 = vmatprep.subr.mxu0 0.0
    %3845 = vmatpush1.msra.mxu0 %v3828
    %3846 = vmatprep.subr.mxu0 0.0
    %3847 = vmatpush1.msra.mxu0 %v3827
    %3848 = vmatprep.subr.mxu0 0.0
    %3849 = vmatpush1.msra.mxu0 %v3826
    %3850 = vmatprep.subr.mxu0 0.0
    %3851 = vmatpush1.msra.mxu0 %v3825
    %3852 = vmatprep.subr.mxu0 0.0
    %3853 = vmatpush1.msra.mxu0 %v3824
    %3854 = vmatprep.subr.mxu0 0.0
    %3855 = vmatpush1.msra.mxu0 %v3823
    %3856 = vmatprep.subr.mxu0 0.0
    %3857 = vmatpush1.msra.mxu0 %v3822
    %3858 = vmatprep.subr.mxu0 0.0
    %3859 = vmatpush1.msra.mxu0 %v3821
    %3860 = vmatprep.subr.mxu0 0.0
    %3861 = vmatpush1.msra.mxu0 %v3820
    %3862 = vmatprep.subr.mxu0 0.0
    %3863 = vmatpush1.msra.mxu0 %v3819
    %3864 = vmatprep.subr.mxu0 0.0
    %3865 = vmatpush1.msra.mxu0 %v3818
    %3866 = vmatprep.subr.mxu0 0.0
    %3867 = vmatpush1.msra.mxu0 %v3817
    %3868 = vmatprep.subr.mxu0 0.0
    %3869 = vmatpush1.msra.mxu0 %v3816
    %3870 = vmatprep.subr.mxu0 0.0
    %3871 = vmatpush1.msra.mxu0 %v3815
    %3872 = vmatprep.subr.mxu0 0.0
    %3873 = vmatpush1.msra.mxu0 %v3814
    %3874 = vmatprep.subr.mxu0 0.0
    %3875 = vmatpush1.msra.mxu0 %v3813
    %3876 = vmatprep.subr.mxu0 0.0
    %3877 = vmatpush2.msra.mxu0 0.0
    %3878 = vmatprep.subr.mxu0 0.0
    %3879 = vmatpush2.msra.mxu0 0.0
    %3880 = vmatprep.subr.mxu0 0.0
    %3881 = vmatpush2.msra.mxu0 0.0
    %3882 = vmatprep.subr.mxu0 0.0
    %3883 = vmatpush2.msra.mxu0 0.0
    %3884 = vmatprep.subr.mxu0 0.0
    %3885 = vmatpush2.msra.mxu0 %v3840
    %3886 = vmatprep.subr.mxu0 0.0
    %3887 = vmatpush2.msra.mxu0 %v3839
    %3888 = vmatprep.subr.mxu0 0.0
    %3889 = vmatpush2.msra.mxu0 %v3838
    %3890 = vmatprep.subr.mxu0 0.0
    %3891 = vmatpush2.msra.mxu0 %v3837
    %3892 = vmatprep.subr.mxu0 0.0
    %3893 = vmatpush2.msra.mxu0 %v3836
    %3894 = vmatprep.subr.mxu0 0.0
    %3895 = vmatpush2.msra.mxu0 %v3835
    %3896 = vmatprep.subr.mxu0 0.0
    %3897 = vmatpush2.msra.mxu0 %v3834
    %3898 = vmatprep.subr.mxu0 0.0
    %3899 = vmatpush2.msra.mxu0 %v3833
    %3900 = vmatprep.subr.mxu0 0.0
    %3901 = vmatpush2.msra.mxu0 %v3832
    %3902 = vmatprep.subr.mxu0 0.0
    %3903 = vmatpush2.msra.mxu0 %v3831
    %3904 = vmatprep.subr.mxu0 0.0
    %3905 = vmatpush2.msra.mxu0 %v3830
    %3906 = vmatprep.subr.mxu0 0.0
    %3907 = vmatpush2.msra.mxu0 %v3829
    %3908 = vmatprep.mubr.f32.mxu0 %v3842
    %3909 = vmatmul.mubr.f32.gmra.mxu0 %v3811
    %v3910 = vpop.f32.mrf.mxu0
    %v3911 = vadd.f32 0.0, %v3910
    %v3912 = vpop.f32.mrf.mxu0
    %3913 = vdwg.mxu0
    %v3914 = vadd.f32 %v3653, %v3911
    %3915 = vrot.lane.b32.xlu0 %v1129, 104
    %v3916 = vpop.permute.xlu0 %3915
    %3919 = vrot.lane.b32.xlu0 %v1212, 96
    %v3920 = vpop.permute.xlu0 %3919
    %3922 = vrot.lane.b32.xlu0 %v1212, 72
    %v3923 = vpop.permute.xlu0 %3922
    %v3925 = vsel %vm285, %v1129, %v3916
    %v3926 = vsel %vm1565, %v3916, %v3920
    %v3927 = vsel %vm1567, %v3920, %v3923
    %v3928 = vsel %vm1580, %v3923, 0
    %3930 = vmatprep.subr.mxu0 %v184
    %3931 = vmatpush1.msra.mxu0 %v183
    %3932 = vmatprep.subr.mxu0 %v182
    %3933 = vmatpush1.msra.mxu0 %v181
    %3934 = vmatprep.subr.mxu0 %v180
    %3935 = vmatpush1.msra.mxu0 %v179
    %3936 = vmatprep.subr.mxu0 %v178
    %3937 = vmatpush1.msra.mxu0 %v177
    %3938 = vmatprep.subr.mxu0 %v176
    %3939 = vmatpush1.msra.mxu0 %v175
    %3940 = vmatprep.subr.mxu0 %v174
    %3941 = vmatpush1.msra.mxu0 %v173
    %3942 = vmatprep.subr.mxu0 %v172
    %3943 = vmatpush1.msra.mxu0 %v171
    %3944 = vmatprep.subr.mxu0 %v170
    %3945 = vmatpush1.msra.mxu0 %v169
    %3946 = vmatprep.subr.mxu0 %v168
    %3947 = vmatpush1.msra.mxu0 %v167
    %3948 = vmatprep.subr.mxu0 %v166
    %3949 = vmatpush1.msra.mxu0 %v165
    %3950 = vmatprep.subr.mxu0 %v164
    %3951 = vmatpush1.msra.mxu0 %v163
    %3952 = vmatprep.subr.mxu0 %v162
    %3953 = vmatpush1.msra.mxu0 %v161
    %3954 = vmatprep.subr.mxu0 %v160
    %3955 = vmatpush1.msra.mxu0 %v159
    %3956 = vmatprep.subr.mxu0 %v158
    %3957 = vmatpush1.msra.mxu0 %v157
    %3958 = vmatprep.subr.mxu0 %v156
    %3959 = vmatpush1.msra.mxu0 %v155
    %3960 = vmatprep.subr.mxu0 %v154
    %3961 = vmatpush1.msra.mxu0 %v153
    %3962 = vmatprep.subr.mxu0 %v216
    %3963 = vmatpush2.msra.mxu0 %v215
    %3964 = vmatprep.subr.mxu0 %v214
    %3965 = vmatpush2.msra.mxu0 %v213
    %3966 = vmatprep.subr.mxu0 %v212
    %3967 = vmatpush2.msra.mxu0 %v211
    %3968 = vmatprep.subr.mxu0 %v210
    %3969 = vmatpush2.msra.mxu0 %v209
    %3970 = vmatprep.subr.mxu0 %v208
    %3971 = vmatpush2.msra.mxu0 %v207
    %3972 = vmatprep.subr.mxu0 %v206
    %3973 = vmatpush2.msra.mxu0 %v205
    %3974 = vmatprep.subr.mxu0 %v204
    %3975 = vmatpush2.msra.mxu0 %v203
    %3976 = vmatprep.subr.mxu0 %v202
    %3977 = vmatpush2.msra.mxu0 %v201
    %3978 = vmatprep.subr.mxu0 %v200
    %3979 = vmatpush2.msra.mxu0 %v199
    %3980 = vmatprep.subr.mxu0 %v198
    %3981 = vmatpush2.msra.mxu0 %v197
    %3982 = vmatprep.subr.mxu0 %v196
    %3983 = vmatpush2.msra.mxu0 %v195
    %3984 = vmatprep.subr.mxu0 %v194
    %3985 = vmatpush2.msra.mxu0 %v193
    %3986 = vmatprep.subr.mxu0 %v192
    %3987 = vmatpush2.msra.mxu0 %v191
    %3988 = vmatprep.subr.mxu0 %v190
    %3989 = vmatpush2.msra.mxu0 %v189
    %3990 = vmatprep.subr.mxu0 %v188
    %3991 = vmatpush2.msra.mxu0 %v187
    %3992 = vmatprep.subr.mxu0 %v186
    %3993 = vmatpush2.msra.mxu0 %v185
    %3994 = vmatprep.mubr.f32.mxu0 %v3926
    %3995 = vmatmul.mubr.f32.gmra.mxu0 %v3925
    %v3996 = vpop.f32.mrf.mxu0
    %v3997 = vadd.f32 %v1573, %v3996
    %v3998 = vpop.f32.mrf.mxu0
    %v3999 = vadd.f32 %v1577, %v3998
    %4000 = vdwg.mxu0
    %4001 = vmatprep.subr.mxu0 %v248
    %4002 = vmatpush1.msra.mxu0 %v247
    %4003 = vmatprep.subr.mxu0 %v246
    %4004 = vmatpush1.msra.mxu0 %v245
    %4005 = vmatprep.subr.mxu0 %v244
    %4006 = vmatpush1.msra.mxu0 %v243
    %4007 = vmatprep.subr.mxu0 %v242
    %4008 = vmatpush1.msra.mxu0 %v241
    %4009 = vmatprep.subr.mxu0 %v240
    %4010 = vmatpush1.msra.mxu0 %v239
    %4011 = vmatprep.subr.mxu0 %v238
    %4012 = vmatpush1.msra.mxu0 %v237
    %4013 = vmatprep.subr.mxu0 %v236
    %4014 = vmatpush1.msra.mxu0 %v235
    %4015 = vmatprep.subr.mxu0 %v234
    %4016 = vmatpush1.msra.mxu0 %v233
    %4017 = vmatprep.subr.mxu0 %v232
    %4018 = vmatpush1.msra.mxu0 %v231
    %4019 = vmatprep.subr.mxu0 %v230
    %4020 = vmatpush1.msra.mxu0 %v229
    %4021 = vmatprep.subr.mxu0 %v228
    %4022 = vmatpush1.msra.mxu0 %v227
    %4023 = vmatprep.subr.mxu0 %v226
    %4024 = vmatpush1.msra.mxu0 %v225
    %4025 = vmatprep.subr.mxu0 %v224
    %4026 = vmatpush1.msra.mxu0 %v223
    %4027 = vmatprep.subr.mxu0 %v222
    %4028 = vmatpush1.msra.mxu0 %v221
    %4029 = vmatprep.subr.mxu0 %v220
    %4030 = vmatpush1.msra.mxu0 %v219
    %4031 = vmatprep.subr.mxu0 %v218
    %4032 = vmatpush1.msra.mxu0 %v217
    %4033 = vmatprep.subr.mxu0 0.0
    %4034 = vmatpush2.msra.mxu0 0.0
    %4035 = vmatprep.subr.mxu0 0.0
    %4036 = vmatpush2.msra.mxu0 0.0
    %4037 = vmatprep.subr.mxu0 0.0
    %4038 = vmatpush2.msra.mxu0 0.0
    %4039 = vmatprep.subr.mxu0 0.0
    %4040 = vmatpush2.msra.mxu0 0.0
    %4041 = vmatprep.subr.mxu0 0.0
    %4042 = vmatpush2.msra.mxu0 0.0
    %4043 = vmatprep.subr.mxu0 0.0
    %4044 = vmatpush2.msra.mxu0 0.0
    %4045 = vmatprep.subr.mxu0 0.0
    %4046 = vmatpush2.msra.mxu0 0.0
    %4047 = vmatprep.subr.mxu0 0.0
    %4048 = vmatpush2.msra.mxu0 0.0
    %4049 = vmatprep.subr.mxu0 %v264
    %4050 = vmatpush2.msra.mxu0 %v263
    %4051 = vmatprep.subr.mxu0 %v262
    %4052 = vmatpush2.msra.mxu0 %v261
    %4053 = vmatprep.subr.mxu0 %v260
    %4054 = vmatpush2.msra.mxu0 %v259
    %4055 = vmatprep.subr.mxu0 %v258
    %4056 = vmatpush2.msra.mxu0 %v257
    %4057 = vmatprep.subr.mxu0 %v256
    %4058 = vmatpush2.msra.mxu0 %v255
    %4059 = vmatprep.subr.mxu0 %v254
    %4060 = vmatpush2.msra.mxu0 %v253
    %4061 = vmatprep.subr.mxu0 %v252
    %4062 = vmatpush2.msra.mxu0 %v251
    %4063 = vmatprep.subr.mxu0 %v250
    %4064 = vmatpush2.msra.mxu0 %v249
    %4065 = vmatprep.mubr.f32.mxu0 %v3928
    %4066 = vmatmul.mubr.f32.gmra.mxu0 %v3927
    %v4067 = vpop.f32.mrf.mxu0
    %v4068 = vadd.f32 %v3997, %v4067
    %v4069 = vpop.f32.mrf.mxu0
    %v4070 = vadd.f32 %v3999, %v4069
    %4071 = vdwg.mxu0
    %v4072 = vmax.f32 %v4068, 0.0
    %v4073 = vmax.f32 %v4070, 0.0
    %v4074 = vld [vmem:[#allocation11 + $0x7e0] sm:$0xff]
    %v4075 = vld [vmem:[#allocation11 + $0x7e8] sm:$0xff]
    %v4076 = vld [vmem:[#allocation11 + $0x7f0] sm:$0xff]
    %v4077 = vld [vmem:[#allocation11 + $0x7f8] sm:$0xff]
    %v4078 = vld [vmem:[#allocation11 + $0x800] sm:$0xff]
    %v4079 = vld [vmem:[#allocation11 + $0x808] sm:$0xff]
    %v4080 = vld [vmem:[#allocation11 + $0x810] sm:$0xff]
    %v4081 = vld [vmem:[#allocation11 + $0x818] sm:$0xff]
    %v4082 = vld [vmem:[#allocation11 + $0x820] sm:$0xff]
    %v4083 = vld [vmem:[#allocation11 + $0x828] sm:$0xff]
    %v4084 = vld [vmem:[#allocation11 + $0x830] sm:$0xff]
    %v4085 = vld [vmem:[#allocation11 + $0x838] sm:$0xff]
    %v4086 = vld [vmem:[#allocation11 + $0x840] sm:$0xff]
    %v4087 = vld [vmem:[#allocation11 + $0x848] sm:$0xff]
    %v4088 = vld [vmem:[#allocation11 + $0x850] sm:$0xff]
    %v4089 = vld [vmem:[#allocation11 + $0x858] sm:$0xff]
    %v4090 = vld [vmem:[#allocation11 + $0x860] sm:$0xff]
    %v4091 = vld [vmem:[#allocation11 + $0x868] sm:$0xff]
    %v4092 = vld [vmem:[#allocation11 + $0x870] sm:$0xff]
    %v4093 = vld [vmem:[#allocation11 + $0x878] sm:$0xff]
    %v4094 = vld [vmem:[#allocation11 + $0x880] sm:$0xff]
    %v4095 = vld [vmem:[#allocation11 + $0x888] sm:$0xff]
    %v4096 = vld [vmem:[#allocation11 + $0x890] sm:$0xff]
    %v4097 = vld [vmem:[#allocation11 + $0x898] sm:$0xff]
    %v4098 = vld [vmem:[#allocation11 + $0x8a0] sm:$0xff]
    %v4099 = vld [vmem:[#allocation11 + $0x8a8] sm:$0xff]
    %v4100 = vld [vmem:[#allocation11 + $0x8b0] sm:$0xff]
    %v4101 = vld [vmem:[#allocation11 + $0x8b8] sm:$0xff]
    %v4103 = vsel %vm1565, %v4073, 0
    %4105 = vmatprep.subr.mxu0 0.0
    %4106 = vmatpush1.msra.mxu0 %v4089
    %4107 = vmatprep.subr.mxu0 0.0
    %4108 = vmatpush1.msra.mxu0 %v4088
    %4109 = vmatprep.subr.mxu0 0.0
    %4110 = vmatpush1.msra.mxu0 %v4087
    %4111 = vmatprep.subr.mxu0 0.0
    %4112 = vmatpush1.msra.mxu0 %v4086
    %4113 = vmatprep.subr.mxu0 0.0
    %4114 = vmatpush1.msra.mxu0 %v4085
    %4115 = vmatprep.subr.mxu0 0.0
    %4116 = vmatpush1.msra.mxu0 %v4084
    %4117 = vmatprep.subr.mxu0 0.0
    %4118 = vmatpush1.msra.mxu0 %v4083
    %4119 = vmatprep.subr.mxu0 0.0
    %4120 = vmatpush1.msra.mxu0 %v4082
    %4121 = vmatprep.subr.mxu0 0.0
    %4122 = vmatpush1.msra.mxu0 %v4081
    %4123 = vmatprep.subr.mxu0 0.0
    %4124 = vmatpush1.msra.mxu0 %v4080
    %4125 = vmatprep.subr.mxu0 0.0
    %4126 = vmatpush1.msra.mxu0 %v4079
    %4127 = vmatprep.subr.mxu0 0.0
    %4128 = vmatpush1.msra.mxu0 %v4078
    %4129 = vmatprep.subr.mxu0 0.0
    %4130 = vmatpush1.msra.mxu0 %v4077
    %4131 = vmatprep.subr.mxu0 0.0
    %4132 = vmatpush1.msra.mxu0 %v4076
    %4133 = vmatprep.subr.mxu0 0.0
    %4134 = vmatpush1.msra.mxu0 %v4075
    %4135 = vmatprep.subr.mxu0 0.0
    %4136 = vmatpush1.msra.mxu0 %v4074
    %4137 = vmatprep.subr.mxu0 0.0
    %4138 = vmatpush2.msra.mxu0 0.0
    %4139 = vmatprep.subr.mxu0 0.0
    %4140 = vmatpush2.msra.mxu0 0.0
    %4141 = vmatprep.subr.mxu0 0.0
    %4142 = vmatpush2.msra.mxu0 0.0
    %4143 = vmatprep.subr.mxu0 0.0
    %4144 = vmatpush2.msra.mxu0 0.0
    %4145 = vmatprep.subr.mxu0 0.0
    %4146 = vmatpush2.msra.mxu0 %v4101
    %4147 = vmatprep.subr.mxu0 0.0
    %4148 = vmatpush2.msra.mxu0 %v4100
    %4149 = vmatprep.subr.mxu0 0.0
    %4150 = vmatpush2.msra.mxu0 %v4099
    %4151 = vmatprep.subr.mxu0 0.0
    %4152 = vmatpush2.msra.mxu0 %v4098
    %4153 = vmatprep.subr.mxu0 0.0
    %4154 = vmatpush2.msra.mxu0 %v4097
    %4155 = vmatprep.subr.mxu0 0.0
    %4156 = vmatpush2.msra.mxu0 %v4096
    %4157 = vmatprep.subr.mxu0 0.0
    %4158 = vmatpush2.msra.mxu0 %v4095
    %4159 = vmatprep.subr.mxu0 0.0
    %4160 = vmatpush2.msra.mxu0 %v4094
    %4161 = vmatprep.subr.mxu0 0.0
    %4162 = vmatpush2.msra.mxu0 %v4093
    %4163 = vmatprep.subr.mxu0 0.0
    %4164 = vmatpush2.msra.mxu0 %v4092
    %4165 = vmatprep.subr.mxu0 0.0
    %4166 = vmatpush2.msra.mxu0 %v4091
    %4167 = vmatprep.subr.mxu0 0.0
    %4168 = vmatpush2.msra.mxu0 %v4090
    %4169 = vmatprep.mubr.f32.mxu0 %v4103
    %4170 = vmatmul.mubr.f32.gmra.mxu0 %v4072
    %v4171 = vpop.f32.mrf.mxu0
    %v4172 = vadd.f32 0.0, %v4171
    %v4173 = vpop.f32.mrf.mxu0
    %4174 = vdwg.mxu0
    %v4175 = vadd.f32 %v3914, %v4172
    %4176 = vrot.lane.b32.xlu0 %v1212, 104
    %v4177 = vpop.permute.xlu0 %4176
    %4180 = vrot.lane.b32.xlu0 %v1299, 96
    %v4181 = vpop.permute.xlu0 %4180
    %4183 = vrot.lane.b32.xlu0 %v1299, 72
    %v4184 = vpop.permute.xlu0 %4183
    %v4186 = vsel %vm285, %v1212, %v4177
    %v4187 = vsel %vm1565, %v4177, %v4181
    %v4188 = vsel %vm1567, %v4181, %v4184
    %v4189 = vsel %vm1580, %v4184, 0
    %4191 = vmatprep.subr.mxu0 %v184
    %4192 = vmatpush1.msra.mxu0 %v183
    %4193 = vmatprep.subr.mxu0 %v182
    %4194 = vmatpush1.msra.mxu0 %v181
    %4195 = vmatprep.subr.mxu0 %v180
    %4196 = vmatpush1.msra.mxu0 %v179
    %4197 = vmatprep.subr.mxu0 %v178
    %4198 = vmatpush1.msra.mxu0 %v177
    %4199 = vmatprep.subr.mxu0 %v176
    %4200 = vmatpush1.msra.mxu0 %v175
    %4201 = vmatprep.subr.mxu0 %v174
    %4202 = vmatpush1.msra.mxu0 %v173
    %4203 = vmatprep.subr.mxu0 %v172
    %4204 = vmatpush1.msra.mxu0 %v171
    %4205 = vmatprep.subr.mxu0 %v170
    %4206 = vmatpush1.msra.mxu0 %v169
    %4207 = vmatprep.subr.mxu0 %v168
    %4208 = vmatpush1.msra.mxu0 %v167
    %4209 = vmatprep.subr.mxu0 %v166
    %4210 = vmatpush1.msra.mxu0 %v165
    %4211 = vmatprep.subr.mxu0 %v164
    %4212 = vmatpush1.msra.mxu0 %v163
    %4213 = vmatprep.subr.mxu0 %v162
    %4214 = vmatpush1.msra.mxu0 %v161
    %4215 = vmatprep.subr.mxu0 %v160
    %4216 = vmatpush1.msra.mxu0 %v159
    %4217 = vmatprep.subr.mxu0 %v158
    %4218 = vmatpush1.msra.mxu0 %v157
    %4219 = vmatprep.subr.mxu0 %v156
    %4220 = vmatpush1.msra.mxu0 %v155
    %4221 = vmatprep.subr.mxu0 %v154
    %4222 = vmatpush1.msra.mxu0 %v153
    %4223 = vmatprep.subr.mxu0 %v216
    %4224 = vmatpush2.msra.mxu0 %v215
    %4225 = vmatprep.subr.mxu0 %v214
    %4226 = vmatpush2.msra.mxu0 %v213
    %4227 = vmatprep.subr.mxu0 %v212
    %4228 = vmatpush2.msra.mxu0 %v211
    %4229 = vmatprep.subr.mxu0 %v210
    %4230 = vmatpush2.msra.mxu0 %v209
    %4231 = vmatprep.subr.mxu0 %v208
    %4232 = vmatpush2.msra.mxu0 %v207
    %4233 = vmatprep.subr.mxu0 %v206
    %4234 = vmatpush2.msra.mxu0 %v205
    %4235 = vmatprep.subr.mxu0 %v204
    %4236 = vmatpush2.msra.mxu0 %v203
    %4237 = vmatprep.subr.mxu0 %v202
    %4238 = vmatpush2.msra.mxu0 %v201
    %4239 = vmatprep.subr.mxu0 %v200
    %4240 = vmatpush2.msra.mxu0 %v199
    %4241 = vmatprep.subr.mxu0 %v198
    %4242 = vmatpush2.msra.mxu0 %v197
    %4243 = vmatprep.subr.mxu0 %v196
    %4244 = vmatpush2.msra.mxu0 %v195
    %4245 = vmatprep.subr.mxu0 %v194
    %4246 = vmatpush2.msra.mxu0 %v193
    %4247 = vmatprep.subr.mxu0 %v192
    %4248 = vmatpush2.msra.mxu0 %v191
    %4249 = vmatprep.subr.mxu0 %v190
    %4250 = vmatpush2.msra.mxu0 %v189
    %4251 = vmatprep.subr.mxu0 %v188
    %4252 = vmatpush2.msra.mxu0 %v187
    %4253 = vmatprep.subr.mxu0 %v186
    %4254 = vmatpush2.msra.mxu0 %v185
    %4255 = vmatprep.mubr.f32.mxu0 %v4187
    %4256 = vmatmul.mubr.f32.gmra.mxu0 %v4186
    %v4257 = vpop.f32.mrf.mxu0
    %v4258 = vadd.f32 %v1573, %v4257
    %v4259 = vpop.f32.mrf.mxu0
    %v4260 = vadd.f32 %v1577, %v4259
    %4261 = vdwg.mxu0
    %4262 = vmatprep.subr.mxu0 %v248
    %4263 = vmatpush1.msra.mxu0 %v247
    %4264 = vmatprep.subr.mxu0 %v246
    %4265 = vmatpush1.msra.mxu0 %v245
    %4266 = vmatprep.subr.mxu0 %v244
    %4267 = vmatpush1.msra.mxu0 %v243
    %4268 = vmatprep.subr.mxu0 %v242
    %4269 = vmatpush1.msra.mxu0 %v241
    %4270 = vmatprep.subr.mxu0 %v240
    %4271 = vmatpush1.msra.mxu0 %v239
    %4272 = vmatprep.subr.mxu0 %v238
    %4273 = vmatpush1.msra.mxu0 %v237
    %4274 = vmatprep.subr.mxu0 %v236
    %4275 = vmatpush1.msra.mxu0 %v235
    %4276 = vmatprep.subr.mxu0 %v234
    %4277 = vmatpush1.msra.mxu0 %v233
    %4278 = vmatprep.subr.mxu0 %v232
    %4279 = vmatpush1.msra.mxu0 %v231
    %4280 = vmatprep.subr.mxu0 %v230
    %4281 = vmatpush1.msra.mxu0 %v229
    %4282 = vmatprep.subr.mxu0 %v228
    %4283 = vmatpush1.msra.mxu0 %v227
    %4284 = vmatprep.subr.mxu0 %v226
    %4285 = vmatpush1.msra.mxu0 %v225
    %4286 = vmatprep.subr.mxu0 %v224
    %4287 = vmatpush1.msra.mxu0 %v223
    %4288 = vmatprep.subr.mxu0 %v222
    %4289 = vmatpush1.msra.mxu0 %v221
    %4290 = vmatprep.subr.mxu0 %v220
    %4291 = vmatpush1.msra.mxu0 %v219
    %4292 = vmatprep.subr.mxu0 %v218
    %4293 = vmatpush1.msra.mxu0 %v217
    %4294 = vmatprep.subr.mxu0 0.0
    %4295 = vmatpush2.msra.mxu0 0.0
    %4296 = vmatprep.subr.mxu0 0.0
    %4297 = vmatpush2.msra.mxu0 0.0
    %4298 = vmatprep.subr.mxu0 0.0
    %4299 = vmatpush2.msra.mxu0 0.0
    %4300 = vmatprep.subr.mxu0 0.0
    %4301 = vmatpush2.msra.mxu0 0.0
    %4302 = vmatprep.subr.mxu0 0.0
    %4303 = vmatpush2.msra.mxu0 0.0
    %4304 = vmatprep.subr.mxu0 0.0
    %4305 = vmatpush2.msra.mxu0 0.0
    %4306 = vmatprep.subr.mxu0 0.0
    %4307 = vmatpush2.msra.mxu0 0.0
    %4308 = vmatprep.subr.mxu0 0.0
    %4309 = vmatpush2.msra.mxu0 0.0
    %4310 = vmatprep.subr.mxu0 %v264
    %4311 = vmatpush2.msra.mxu0 %v263
    %4312 = vmatprep.subr.mxu0 %v262
    %4313 = vmatpush2.msra.mxu0 %v261
    %4314 = vmatprep.subr.mxu0 %v260
    %4315 = vmatpush2.msra.mxu0 %v259
    %4316 = vmatprep.subr.mxu0 %v258
    %4317 = vmatpush2.msra.mxu0 %v257
    %4318 = vmatprep.subr.mxu0 %v256
    %4319 = vmatpush2.msra.mxu0 %v255
    %4320 = vmatprep.subr.mxu0 %v254
    %4321 = vmatpush2.msra.mxu0 %v253
    %4322 = vmatprep.subr.mxu0 %v252
    %4323 = vmatpush2.msra.mxu0 %v251
    %4324 = vmatprep.subr.mxu0 %v250
    %4325 = vmatpush2.msra.mxu0 %v249
    %4326 = vmatprep.mubr.f32.mxu0 %v4189
    %4327 = vmatmul.mubr.f32.gmra.mxu0 %v4188
    %v4328 = vpop.f32.mrf.mxu0
    %v4329 = vadd.f32 %v4258, %v4328
    %v4330 = vpop.f32.mrf.mxu0
    %v4331 = vadd.f32 %v4260, %v4330
    %4332 = vdwg.mxu0
    %v4333 = vmax.f32 %v4329, 0.0
    %v4334 = vmax.f32 %v4331, 0.0
    %v4335 = vld [vmem:[#allocation11 + $0x8c0] sm:$0xff]
    %v4336 = vld [vmem:[#allocation11 + $0x8c8] sm:$0xff]
    %v4337 = vld [vmem:[#allocation11 + $0x8d0] sm:$0xff]
    %v4338 = vld [vmem:[#allocation11 + $0x8d8] sm:$0xff]
    %v4339 = vld [vmem:[#allocation11 + $0x8e0] sm:$0xff]
    %v4340 = vld [vmem:[#allocation11 + $0x8e8] sm:$0xff]
    %v4341 = vld [vmem:[#allocation11 + $0x8f0] sm:$0xff]
    %v4342 = vld [vmem:[#allocation11 + $0x8f8] sm:$0xff]
    %v4343 = vld [vmem:[#allocation11 + $0x900] sm:$0xff]
    %v4344 = vld [vmem:[#allocation11 + $0x908] sm:$0xff]
    %v4345 = vld [vmem:[#allocation11 + $0x910] sm:$0xff]
    %v4346 = vld [vmem:[#allocation11 + $0x918] sm:$0xff]
    %v4347 = vld [vmem:[#allocation11 + $0x920] sm:$0xff]
    %v4348 = vld [vmem:[#allocation11 + $0x928] sm:$0xff]
    %v4349 = vld [vmem:[#allocation11 + $0x930] sm:$0xff]
    %v4350 = vld [vmem:[#allocation11 + $0x938] sm:$0xff]
    %v4351 = vld [vmem:[#allocation11 + $0x940] sm:$0xff]
    %v4352 = vld [vmem:[#allocation11 + $0x948] sm:$0xff]
    %v4353 = vld [vmem:[#allocation11 + $0x950] sm:$0xff]
    %v4354 = vld [vmem:[#allocation11 + $0x958] sm:$0xff]
    %v4355 = vld [vmem:[#allocation11 + $0x960] sm:$0xff]
    %v4356 = vld [vmem:[#allocation11 + $0x968] sm:$0xff]
    %v4357 = vld [vmem:[#allocation11 + $0x970] sm:$0xff]
    %v4358 = vld [vmem:[#allocation11 + $0x978] sm:$0xff]
    %v4359 = vld [vmem:[#allocation11 + $0x980] sm:$0xff]
    %v4360 = vld [vmem:[#allocation11 + $0x988] sm:$0xff]
    %v4361 = vld [vmem:[#allocation11 + $0x990] sm:$0xff]
    %v4362 = vld [vmem:[#allocation11 + $0x998] sm:$0xff]
    %v4364 = vsel %vm1565, %v4334, 0
    %4366 = vmatprep.subr.mxu0 0.0
    %4367 = vmatpush1.msra.mxu0 %v4350
    %4368 = vmatprep.subr.mxu0 0.0
    %4369 = vmatpush1.msra.mxu0 %v4349
    %4370 = vmatprep.subr.mxu0 0.0
    %4371 = vmatpush1.msra.mxu0 %v4348
    %4372 = vmatprep.subr.mxu0 0.0
    %4373 = vmatpush1.msra.mxu0 %v4347
    %4374 = vmatprep.subr.mxu0 0.0
    %4375 = vmatpush1.msra.mxu0 %v4346
    %4376 = vmatprep.subr.mxu0 0.0
    %4377 = vmatpush1.msra.mxu0 %v4345
    %4378 = vmatprep.subr.mxu0 0.0
    %4379 = vmatpush1.msra.mxu0 %v4344
    %4380 = vmatprep.subr.mxu0 0.0
    %4381 = vmatpush1.msra.mxu0 %v4343
    %4382 = vmatprep.subr.mxu0 0.0
    %4383 = vmatpush1.msra.mxu0 %v4342
    %4384 = vmatprep.subr.mxu0 0.0
    %4385 = vmatpush1.msra.mxu0 %v4341
    %4386 = vmatprep.subr.mxu0 0.0
    %4387 = vmatpush1.msra.mxu0 %v4340
    %4388 = vmatprep.subr.mxu0 0.0
    %4389 = vmatpush1.msra.mxu0 %v4339
    %4390 = vmatprep.subr.mxu0 0.0
    %4391 = vmatpush1.msra.mxu0 %v4338
    %4392 = vmatprep.subr.mxu0 0.0
    %4393 = vmatpush1.msra.mxu0 %v4337
    %4394 = vmatprep.subr.mxu0 0.0
    %4395 = vmatpush1.msra.mxu0 %v4336
    %4396 = vmatprep.subr.mxu0 0.0
    %4397 = vmatpush1.msra.mxu0 %v4335
    %4398 = vmatprep.subr.mxu0 0.0
    %4399 = vmatpush2.msra.mxu0 0.0
    %4400 = vmatprep.subr.mxu0 0.0
    %4401 = vmatpush2.msra.mxu0 0.0
    %4402 = vmatprep.subr.mxu0 0.0
    %4403 = vmatpush2.msra.mxu0 0.0
    %4404 = vmatprep.subr.mxu0 0.0
    %4405 = vmatpush2.msra.mxu0 0.0
    %4406 = vmatprep.subr.mxu0 0.0
    %4407 = vmatpush2.msra.mxu0 %v4362
    %4408 = vmatprep.subr.mxu0 0.0
    %4409 = vmatpush2.msra.mxu0 %v4361
    %4410 = vmatprep.subr.mxu0 0.0
    %4411 = vmatpush2.msra.mxu0 %v4360
    %4412 = vmatprep.subr.mxu0 0.0
    %4413 = vmatpush2.msra.mxu0 %v4359
    %4414 = vmatprep.subr.mxu0 0.0
    %4415 = vmatpush2.msra.mxu0 %v4358
    %4416 = vmatprep.subr.mxu0 0.0
    %4417 = vmatpush2.msra.mxu0 %v4357
    %4418 = vmatprep.subr.mxu0 0.0
    %4419 = vmatpush2.msra.mxu0 %v4356
    %4420 = vmatprep.subr.mxu0 0.0
    %4421 = vmatpush2.msra.mxu0 %v4355
    %4422 = vmatprep.subr.mxu0 0.0
    %4423 = vmatpush2.msra.mxu0 %v4354
    %4424 = vmatprep.subr.mxu0 0.0
    %4425 = vmatpush2.msra.mxu0 %v4353
    %4426 = vmatprep.subr.mxu0 0.0
    %4427 = vmatpush2.msra.mxu0 %v4352
    %4428 = vmatprep.subr.mxu0 0.0
    %4429 = vmatpush2.msra.mxu0 %v4351
    %4430 = vmatprep.mubr.f32.mxu0 %v4364
    %4431 = vmatmul.mubr.f32.gmra.mxu0 %v4333
    %v4432 = vpop.f32.mrf.mxu0
    %v4433 = vadd.f32 0.0, %v4432
    %v4434 = vpop.f32.mrf.mxu0
    %4435 = vdwg.mxu0
    %v4436 = vadd.f32 %v4175, %v4433
    %4437 = vrot.lane.b32.xlu0 %v1299, 104
    %v4438 = vpop.permute.xlu0 %4437
    %4441 = vrot.lane.b32.xlu0 %v1382, 96
    %v4442 = vpop.permute.xlu0 %4441
    %4444 = vrot.lane.b32.xlu0 %v1382, 72
    %v4445 = vpop.permute.xlu0 %4444
    %v4447 = vsel %vm285, %v1299, %v4438
    %v4448 = vsel %vm1565, %v4438, %v4442
    %v4449 = vsel %vm1567, %v4442, %v4445
    %v4450 = vsel %vm1580, %v4445, 0
    %4452 = vmatprep.subr.mxu0 %v184
    %4453 = vmatpush1.msra.mxu0 %v183
    %4454 = vmatprep.subr.mxu0 %v182
    %4455 = vmatpush1.msra.mxu0 %v181
    %4456 = vmatprep.subr.mxu0 %v180
    %4457 = vmatpush1.msra.mxu0 %v179
    %4458 = vmatprep.subr.mxu0 %v178
    %4459 = vmatpush1.msra.mxu0 %v177
    %4460 = vmatprep.subr.mxu0 %v176
    %4461 = vmatpush1.msra.mxu0 %v175
    %4462 = vmatprep.subr.mxu0 %v174
    %4463 = vmatpush1.msra.mxu0 %v173
    %4464 = vmatprep.subr.mxu0 %v172
    %4465 = vmatpush1.msra.mxu0 %v171
    %4466 = vmatprep.subr.mxu0 %v170
    %4467 = vmatpush1.msra.mxu0 %v169
    %4468 = vmatprep.subr.mxu0 %v168
    %4469 = vmatpush1.msra.mxu0 %v167
    %4470 = vmatprep.subr.mxu0 %v166
    %4471 = vmatpush1.msra.mxu0 %v165
    %4472 = vmatprep.subr.mxu0 %v164
    %4473 = vmatpush1.msra.mxu0 %v163
    %4474 = vmatprep.subr.mxu0 %v162
    %4475 = vmatpush1.msra.mxu0 %v161
    %4476 = vmatprep.subr.mxu0 %v160
    %4477 = vmatpush1.msra.mxu0 %v159
    %4478 = vmatprep.subr.mxu0 %v158
    %4479 = vmatpush1.msra.mxu0 %v157
    %4480 = vmatprep.subr.mxu0 %v156
    %4481 = vmatpush1.msra.mxu0 %v155
    %4482 = vmatprep.subr.mxu0 %v154
    %4483 = vmatpush1.msra.mxu0 %v153
    %4484 = vmatprep.subr.mxu0 %v216
    %4485 = vmatpush2.msra.mxu0 %v215
    %4486 = vmatprep.subr.mxu0 %v214
    %4487 = vmatpush2.msra.mxu0 %v213
    %4488 = vmatprep.subr.mxu0 %v212
    %4489 = vmatpush2.msra.mxu0 %v211
    %4490 = vmatprep.subr.mxu0 %v210
    %4491 = vmatpush2.msra.mxu0 %v209
    %4492 = vmatprep.subr.mxu0 %v208
    %4493 = vmatpush2.msra.mxu0 %v207
    %4494 = vmatprep.subr.mxu0 %v206
    %4495 = vmatpush2.msra.mxu0 %v205
    %4496 = vmatprep.subr.mxu0 %v204
    %4497 = vmatpush2.msra.mxu0 %v203
    %4498 = vmatprep.subr.mxu0 %v202
    %4499 = vmatpush2.msra.mxu0 %v201
    %4500 = vmatprep.subr.mxu0 %v200
    %4501 = vmatpush2.msra.mxu0 %v199
    %4502 = vmatprep.subr.mxu0 %v198
    %4503 = vmatpush2.msra.mxu0 %v197
    %4504 = vmatprep.subr.mxu0 %v196
    %4505 = vmatpush2.msra.mxu0 %v195
    %4506 = vmatprep.subr.mxu0 %v194
    %4507 = vmatpush2.msra.mxu0 %v193
    %4508 = vmatprep.subr.mxu0 %v192
    %4509 = vmatpush2.msra.mxu0 %v191
    %4510 = vmatprep.subr.mxu0 %v190
    %4511 = vmatpush2.msra.mxu0 %v189
    %4512 = vmatprep.subr.mxu0 %v188
    %4513 = vmatpush2.msra.mxu0 %v187
    %4514 = vmatprep.subr.mxu0 %v186
    %4515 = vmatpush2.msra.mxu0 %v185
    %4516 = vmatprep.mubr.f32.mxu0 %v4448
    %4517 = vmatmul.mubr.f32.gmra.mxu0 %v4447
    %v4518 = vpop.f32.mrf.mxu0
    %v4519 = vadd.f32 %v1573, %v4518
    %v4520 = vpop.f32.mrf.mxu0
    %v4521 = vadd.f32 %v1577, %v4520
    %4522 = vdwg.mxu0
    %4523 = vmatprep.subr.mxu0 %v248
    %4524 = vmatpush1.msra.mxu0 %v247
    %4525 = vmatprep.subr.mxu0 %v246
    %4526 = vmatpush1.msra.mxu0 %v245
    %4527 = vmatprep.subr.mxu0 %v244
    %4528 = vmatpush1.msra.mxu0 %v243
    %4529 = vmatprep.subr.mxu0 %v242
    %4530 = vmatpush1.msra.mxu0 %v241
    %4531 = vmatprep.subr.mxu0 %v240
    %4532 = vmatpush1.msra.mxu0 %v239
    %4533 = vmatprep.subr.mxu0 %v238
    %4534 = vmatpush1.msra.mxu0 %v237
    %4535 = vmatprep.subr.mxu0 %v236
    %4536 = vmatpush1.msra.mxu0 %v235
    %4537 = vmatprep.subr.mxu0 %v234
    %4538 = vmatpush1.msra.mxu0 %v233
    %4539 = vmatprep.subr.mxu0 %v232
    %4540 = vmatpush1.msra.mxu0 %v231
    %4541 = vmatprep.subr.mxu0 %v230
    %4542 = vmatpush1.msra.mxu0 %v229
    %4543 = vmatprep.subr.mxu0 %v228
    %4544 = vmatpush1.msra.mxu0 %v227
    %4545 = vmatprep.subr.mxu0 %v226
    %4546 = vmatpush1.msra.mxu0 %v225
    %4547 = vmatprep.subr.mxu0 %v224
    %4548 = vmatpush1.msra.mxu0 %v223
    %4549 = vmatprep.subr.mxu0 %v222
    %4550 = vmatpush1.msra.mxu0 %v221
    %4551 = vmatprep.subr.mxu0 %v220
    %4552 = vmatpush1.msra.mxu0 %v219
    %4553 = vmatprep.subr.mxu0 %v218
    %4554 = vmatpush1.msra.mxu0 %v217
    %4555 = vmatprep.subr.mxu0 0.0
    %4556 = vmatpush2.msra.mxu0 0.0
    %4557 = vmatprep.subr.mxu0 0.0
    %4558 = vmatpush2.msra.mxu0 0.0
    %4559 = vmatprep.subr.mxu0 0.0
    %4560 = vmatpush2.msra.mxu0 0.0
    %4561 = vmatprep.subr.mxu0 0.0
    %4562 = vmatpush2.msra.mxu0 0.0
    %4563 = vmatprep.subr.mxu0 0.0
    %4564 = vmatpush2.msra.mxu0 0.0
    %4565 = vmatprep.subr.mxu0 0.0
    %4566 = vmatpush2.msra.mxu0 0.0
    %4567 = vmatprep.subr.mxu0 0.0
    %4568 = vmatpush2.msra.mxu0 0.0
    %4569 = vmatprep.subr.mxu0 0.0
    %4570 = vmatpush2.msra.mxu0 0.0
    %4571 = vmatprep.subr.mxu0 %v264
    %4572 = vmatpush2.msra.mxu0 %v263
    %4573 = vmatprep.subr.mxu0 %v262
    %4574 = vmatpush2.msra.mxu0 %v261
    %4575 = vmatprep.subr.mxu0 %v260
    %4576 = vmatpush2.msra.mxu0 %v259
    %4577 = vmatprep.subr.mxu0 %v258
    %4578 = vmatpush2.msra.mxu0 %v257
    %4579 = vmatprep.subr.mxu0 %v256
    %4580 = vmatpush2.msra.mxu0 %v255
    %4581 = vmatprep.subr.mxu0 %v254
    %4582 = vmatpush2.msra.mxu0 %v253
    %4583 = vmatprep.subr.mxu0 %v252
    %4584 = vmatpush2.msra.mxu0 %v251
    %4585 = vmatprep.subr.mxu0 %v250
    %4586 = vmatpush2.msra.mxu0 %v249
    %4587 = vmatprep.mubr.f32.mxu0 %v4450
    %4588 = vmatmul.mubr.f32.gmra.mxu0 %v4449
    %v4589 = vpop.f32.mrf.mxu0
    %v4590 = vadd.f32 %v4519, %v4589
    %v4591 = vpop.f32.mrf.mxu0
    %v4592 = vadd.f32 %v4521, %v4591
    %4593 = vdwg.mxu0
    %v4594 = vmax.f32 %v4590, 0.0
    %v4595 = vmax.f32 %v4592, 0.0
    %v4596 = vld [vmem:[#allocation11 + $0x9a0] sm:$0xff]
    %v4597 = vld [vmem:[#allocation11 + $0x9a8] sm:$0xff]
    %v4598 = vld [vmem:[#allocation11 + $0x9b0] sm:$0xff]
    %v4599 = vld [vmem:[#allocation11 + $0x9b8] sm:$0xff]
    %v4600 = vld [vmem:[#allocation11 + $0x9c0] sm:$0xff]
    %v4601 = vld [vmem:[#allocation11 + $0x9c8] sm:$0xff]
    %v4602 = vld [vmem:[#allocation11 + $0x9d0] sm:$0xff]
    %v4603 = vld [vmem:[#allocation11 + $0x9d8] sm:$0xff]
    %v4604 = vld [vmem:[#allocation11 + $0x9e0] sm:$0xff]
    %v4605 = vld [vmem:[#allocation11 + $0x9e8] sm:$0xff]
    %v4606 = vld [vmem:[#allocation11 + $0x9f0] sm:$0xff]
    %v4607 = vld [vmem:[#allocation11 + $0x9f8] sm:$0xff]
    %v4608 = vld [vmem:[#allocation11 + $0xa00] sm:$0xff]
    %v4609 = vld [vmem:[#allocation11 + $0xa08] sm:$0xff]
    %v4610 = vld [vmem:[#allocation11 + $0xa10] sm:$0xff]
    %v4611 = vld [vmem:[#allocation11 + $0xa18] sm:$0xff]
    %v4612 = vld [vmem:[#allocation11 + $0xa20] sm:$0xff]
    %v4613 = vld [vmem:[#allocation11 + $0xa28] sm:$0xff]
    %v4614 = vld [vmem:[#allocation11 + $0xa30] sm:$0xff]
    %v4615 = vld [vmem:[#allocation11 + $0xa38] sm:$0xff]
    %v4616 = vld [vmem:[#allocation11 + $0xa40] sm:$0xff]
    %v4617 = vld [vmem:[#allocation11 + $0xa48] sm:$0xff]
    %v4618 = vld [vmem:[#allocation11 + $0xa50] sm:$0xff]
    %v4619 = vld [vmem:[#allocation11 + $0xa58] sm:$0xff]
    %v4620 = vld [vmem:[#allocation11 + $0xa60] sm:$0xff]
    %v4621 = vld [vmem:[#allocation11 + $0xa68] sm:$0xff]
    %v4622 = vld [vmem:[#allocation11 + $0xa70] sm:$0xff]
    %v4623 = vld [vmem:[#allocation11 + $0xa78] sm:$0xff]
    %v4625 = vsel %vm1565, %v4595, 0
    %4627 = vmatprep.subr.mxu0 0.0
    %4628 = vmatpush1.msra.mxu0 %v4611
    %4629 = vmatprep.subr.mxu0 0.0
    %4630 = vmatpush1.msra.mxu0 %v4610
    %4631 = vmatprep.subr.mxu0 0.0
    %4632 = vmatpush1.msra.mxu0 %v4609
    %4633 = vmatprep.subr.mxu0 0.0
    %4634 = vmatpush1.msra.mxu0 %v4608
    %4635 = vmatprep.subr.mxu0 0.0
    %4636 = vmatpush1.msra.mxu0 %v4607
    %4637 = vmatprep.subr.mxu0 0.0
    %4638 = vmatpush1.msra.mxu0 %v4606
    %4639 = vmatprep.subr.mxu0 0.0
    %4640 = vmatpush1.msra.mxu0 %v4605
    %4641 = vmatprep.subr.mxu0 0.0
    %4642 = vmatpush1.msra.mxu0 %v4604
    %4643 = vmatprep.subr.mxu0 0.0
    %4644 = vmatpush1.msra.mxu0 %v4603
    %4645 = vmatprep.subr.mxu0 0.0
    %4646 = vmatpush1.msra.mxu0 %v4602
    %4647 = vmatprep.subr.mxu0 0.0
    %4648 = vmatpush1.msra.mxu0 %v4601
    %4649 = vmatprep.subr.mxu0 0.0
    %4650 = vmatpush1.msra.mxu0 %v4600
    %4651 = vmatprep.subr.mxu0 0.0
    %4652 = vmatpush1.msra.mxu0 %v4599
    %4653 = vmatprep.subr.mxu0 0.0
    %4654 = vmatpush1.msra.mxu0 %v4598
    %4655 = vmatprep.subr.mxu0 0.0
    %4656 = vmatpush1.msra.mxu0 %v4597
    %4657 = vmatprep.subr.mxu0 0.0
    %4658 = vmatpush1.msra.mxu0 %v4596
    %4659 = vmatprep.subr.mxu0 0.0
    %4660 = vmatpush2.msra.mxu0 0.0
    %4661 = vmatprep.subr.mxu0 0.0
    %4662 = vmatpush2.msra.mxu0 0.0
    %4663 = vmatprep.subr.mxu0 0.0
    %4664 = vmatpush2.msra.mxu0 0.0
    %4665 = vmatprep.subr.mxu0 0.0
    %4666 = vmatpush2.msra.mxu0 0.0
    %4667 = vmatprep.subr.mxu0 0.0
    %4668 = vmatpush2.msra.mxu0 %v4623
    %4669 = vmatprep.subr.mxu0 0.0
    %4670 = vmatpush2.msra.mxu0 %v4622
    %4671 = vmatprep.subr.mxu0 0.0
    %4672 = vmatpush2.msra.mxu0 %v4621
    %4673 = vmatprep.subr.mxu0 0.0
    %4674 = vmatpush2.msra.mxu0 %v4620
    %4675 = vmatprep.subr.mxu0 0.0
    %4676 = vmatpush2.msra.mxu0 %v4619
    %4677 = vmatprep.subr.mxu0 0.0
    %4678 = vmatpush2.msra.mxu0 %v4618
    %4679 = vmatprep.subr.mxu0 0.0
    %4680 = vmatpush2.msra.mxu0 %v4617
    %4681 = vmatprep.subr.mxu0 0.0
    %4682 = vmatpush2.msra.mxu0 %v4616
    %4683 = vmatprep.subr.mxu0 0.0
    %4684 = vmatpush2.msra.mxu0 %v4615
    %4685 = vmatprep.subr.mxu0 0.0
    %4686 = vmatpush2.msra.mxu0 %v4614
    %4687 = vmatprep.subr.mxu0 0.0
    %4688 = vmatpush2.msra.mxu0 %v4613
    %4689 = vmatprep.subr.mxu0 0.0
    %4690 = vmatpush2.msra.mxu0 %v4612
    %4691 = vmatprep.mubr.f32.mxu0 %v4625
    %4692 = vmatmul.mubr.f32.gmra.mxu0 %v4594
    %v4693 = vpop.f32.mrf.mxu0
    %v4694 = vadd.f32 0.0, %v4693
    %v4695 = vpop.f32.mrf.mxu0
    %4696 = vdwg.mxu0
    %v4697 = vadd.f32 %v4436, %v4694
    %4698 = vrot.lane.b32.xlu0 %v1382, 104
    %v4699 = vpop.permute.xlu0 %4698
    %4702 = vrot.lane.b32.xlu0 %v1469, 96
    %v4703 = vpop.permute.xlu0 %4702
    %4705 = vrot.lane.b32.xlu0 %v1469, 72
    %v4706 = vpop.permute.xlu0 %4705
    %v4708 = vsel %vm285, %v1382, %v4699
    %v4709 = vsel %vm1565, %v4699, %v4703
    %v4710 = vsel %vm1567, %v4703, %v4706
    %v4711 = vsel %vm1580, %v4706, 0
    %4713 = vmatprep.subr.mxu0 %v184
    %4714 = vmatpush1.msra.mxu0 %v183
    %4715 = vmatprep.subr.mxu0 %v182
    %4716 = vmatpush1.msra.mxu0 %v181
    %4717 = vmatprep.subr.mxu0 %v180
    %4718 = vmatpush1.msra.mxu0 %v179
    %4719 = vmatprep.subr.mxu0 %v178
    %4720 = vmatpush1.msra.mxu0 %v177
    %4721 = vmatprep.subr.mxu0 %v176
    %4722 = vmatpush1.msra.mxu0 %v175
    %4723 = vmatprep.subr.mxu0 %v174
    %4724 = vmatpush1.msra.mxu0 %v173
    %4725 = vmatprep.subr.mxu0 %v172
    %4726 = vmatpush1.msra.mxu0 %v171
    %4727 = vmatprep.subr.mxu0 %v170
    %4728 = vmatpush1.msra.mxu0 %v169
    %4729 = vmatprep.subr.mxu0 %v168
    %4730 = vmatpush1.msra.mxu0 %v167
    %4731 = vmatprep.subr.mxu0 %v166
    %4732 = vmatpush1.msra.mxu0 %v165
    %4733 = vmatprep.subr.mxu0 %v164
    %4734 = vmatpush1.msra.mxu0 %v163
    %4735 = vmatprep.subr.mxu0 %v162
    %4736 = vmatpush1.msra.mxu0 %v161
    %4737 = vmatprep.subr.mxu0 %v160
    %4738 = vmatpush1.msra.mxu0 %v159
    %4739 = vmatprep.subr.mxu0 %v158
    %4740 = vmatpush1.msra.mxu0 %v157
    %4741 = vmatprep.subr.mxu0 %v156
    %4742 = vmatpush1.msra.mxu0 %v155
    %4743 = vmatprep.subr.mxu0 %v154
    %4744 = vmatpush1.msra.mxu0 %v153
    %4745 = vmatprep.subr.mxu0 %v216
    %4746 = vmatpush2.msra.mxu0 %v215
    %4747 = vmatprep.subr.mxu0 %v214
    %4748 = vmatpush2.msra.mxu0 %v213
    %4749 = vmatprep.subr.mxu0 %v212
    %4750 = vmatpush2.msra.mxu0 %v211
    %4751 = vmatprep.subr.mxu0 %v210
    %4752 = vmatpush2.msra.mxu0 %v209
    %4753 = vmatprep.subr.mxu0 %v208
    %4754 = vmatpush2.msra.mxu0 %v207
    %4755 = vmatprep.subr.mxu0 %v206
    %4756 = vmatpush2.msra.mxu0 %v205
    %4757 = vmatprep.subr.mxu0 %v204
    %4758 = vmatpush2.msra.mxu0 %v203
    %4759 = vmatprep.subr.mxu0 %v202
    %4760 = vmatpush2.msra.mxu0 %v201
    %4761 = vmatprep.subr.mxu0 %v200
    %4762 = vmatpush2.msra.mxu0 %v199
    %4763 = vmatprep.subr.mxu0 %v198
    %4764 = vmatpush2.msra.mxu0 %v197
    %4765 = vmatprep.subr.mxu0 %v196
    %4766 = vmatpush2.msra.mxu0 %v195
    %4767 = vmatprep.subr.mxu0 %v194
    %4768 = vmatpush2.msra.mxu0 %v193
    %4769 = vmatprep.subr.mxu0 %v192
    %4770 = vmatpush2.msra.mxu0 %v191
    %4771 = vmatprep.subr.mxu0 %v190
    %4772 = vmatpush2.msra.mxu0 %v189
    %4773 = vmatprep.subr.mxu0 %v188
    %4774 = vmatpush2.msra.mxu0 %v187
    %4775 = vmatprep.subr.mxu0 %v186
    %4776 = vmatpush2.msra.mxu0 %v185
    %4777 = vmatprep.mubr.f32.mxu0 %v4709
    %4778 = vmatmul.mubr.f32.gmra.mxu0 %v4708
    %v4779 = vpop.f32.mrf.mxu0
    %v4780 = vadd.f32 %v1573, %v4779
    %v4781 = vpop.f32.mrf.mxu0
    %v4782 = vadd.f32 %v1577, %v4781
    %4783 = vdwg.mxu0
    %4784 = vmatprep.subr.mxu0 %v248
    %4785 = vmatpush1.msra.mxu0 %v247
    %4786 = vmatprep.subr.mxu0 %v246
    %4787 = vmatpush1.msra.mxu0 %v245
    %4788 = vmatprep.subr.mxu0 %v244
    %4789 = vmatpush1.msra.mxu0 %v243
    %4790 = vmatprep.subr.mxu0 %v242
    %4791 = vmatpush1.msra.mxu0 %v241
    %4792 = vmatprep.subr.mxu0 %v240
    %4793 = vmatpush1.msra.mxu0 %v239
    %4794 = vmatprep.subr.mxu0 %v238
    %4795 = vmatpush1.msra.mxu0 %v237
    %4796 = vmatprep.subr.mxu0 %v236
    %4797 = vmatpush1.msra.mxu0 %v235
    %4798 = vmatprep.subr.mxu0 %v234
    %4799 = vmatpush1.msra.mxu0 %v233
    %4800 = vmatprep.subr.mxu0 %v232
    %4801 = vmatpush1.msra.mxu0 %v231
    %4802 = vmatprep.subr.mxu0 %v230
    %4803 = vmatpush1.msra.mxu0 %v229
    %4804 = vmatprep.subr.mxu0 %v228
    %4805 = vmatpush1.msra.mxu0 %v227
    %4806 = vmatprep.subr.mxu0 %v226
    %4807 = vmatpush1.msra.mxu0 %v225
    %4808 = vmatprep.subr.mxu0 %v224
    %4809 = vmatpush1.msra.mxu0 %v223
    %4810 = vmatprep.subr.mxu0 %v222
    %4811 = vmatpush1.msra.mxu0 %v221
    %4812 = vmatprep.subr.mxu0 %v220
    %4813 = vmatpush1.msra.mxu0 %v219
    %4814 = vmatprep.subr.mxu0 %v218
    %4815 = vmatpush1.msra.mxu0 %v217
    %4816 = vmatprep.subr.mxu0 0.0
    %4817 = vmatpush2.msra.mxu0 0.0
    %4818 = vmatprep.subr.mxu0 0.0
    %4819 = vmatpush2.msra.mxu0 0.0
    %4820 = vmatprep.subr.mxu0 0.0
    %4821 = vmatpush2.msra.mxu0 0.0
    %4822 = vmatprep.subr.mxu0 0.0
    %4823 = vmatpush2.msra.mxu0 0.0
    %4824 = vmatprep.subr.mxu0 0.0
    %4825 = vmatpush2.msra.mxu0 0.0
    %4826 = vmatprep.subr.mxu0 0.0
    %4827 = vmatpush2.msra.mxu0 0.0
    %4828 = vmatprep.subr.mxu0 0.0
    %4829 = vmatpush2.msra.mxu0 0.0
    %4830 = vmatprep.subr.mxu0 0.0
    %4831 = vmatpush2.msra.mxu0 0.0
    %4832 = vmatprep.subr.mxu0 %v264
    %4833 = vmatpush2.msra.mxu0 %v263
    %4834 = vmatprep.subr.mxu0 %v262
    %4835 = vmatpush2.msra.mxu0 %v261
    %4836 = vmatprep.subr.mxu0 %v260
    %4837 = vmatpush2.msra.mxu0 %v259
    %4838 = vmatprep.subr.mxu0 %v258
    %4839 = vmatpush2.msra.mxu0 %v257
    %4840 = vmatprep.subr.mxu0 %v256
    %4841 = vmatpush2.msra.mxu0 %v255
    %4842 = vmatprep.subr.mxu0 %v254
    %4843 = vmatpush2.msra.mxu0 %v253
    %4844 = vmatprep.subr.mxu0 %v252
    %4845 = vmatpush2.msra.mxu0 %v251
    %4846 = vmatprep.subr.mxu0 %v250
    %4847 = vmatpush2.msra.mxu0 %v249
    %4848 = vmatprep.mubr.f32.mxu0 %v4711
    %4849 = vmatmul.mubr.f32.gmra.mxu0 %v4710
    %v4850 = vpop.f32.mrf.mxu0
    %v4851 = vadd.f32 %v4780, %v4850
    %v4852 = vpop.f32.mrf.mxu0
    %v4853 = vadd.f32 %v4782, %v4852
    %4854 = vdwg.mxu0
    %v4855 = vmax.f32 %v4851, 0.0
    %v4856 = vmax.f32 %v4853, 0.0
    %v4857 = vld [vmem:[#allocation11 + $0xa80] sm:$0xff]
    %v4858 = vld [vmem:[#allocation11 + $0xa88] sm:$0xff]
    %v4859 = vld [vmem:[#allocation11 + $0xa90] sm:$0xff]
    %v4860 = vld [vmem:[#allocation11 + $0xa98] sm:$0xff]
    %v4861 = vld [vmem:[#allocation11 + $0xaa0] sm:$0xff]
    %v4862 = vld [vmem:[#allocation11 + $0xaa8] sm:$0xff]
    %v4863 = vld [vmem:[#allocation11 + $0xab0] sm:$0xff]
    %v4864 = vld [vmem:[#allocation11 + $0xab8] sm:$0xff]
    %v4865 = vld [vmem:[#allocation11 + $0xac0] sm:$0xff]
    %v4866 = vld [vmem:[#allocation11 + $0xac8] sm:$0xff]
    %v4867 = vld [vmem:[#allocation11 + $0xad0] sm:$0xff]
    %v4868 = vld [vmem:[#allocation11 + $0xad8] sm:$0xff]
    %v4869 = vld [vmem:[#allocation11 + $0xae0] sm:$0xff]
    %v4870 = vld [vmem:[#allocation11 + $0xae8] sm:$0xff]
    %v4871 = vld [vmem:[#allocation11 + $0xaf0] sm:$0xff]
    %v4872 = vld [vmem:[#allocation11 + $0xaf8] sm:$0xff]
    %v4873 = vld [vmem:[#allocation11 + $0xb00] sm:$0xff]
    %v4874 = vld [vmem:[#allocation11 + $0xb08] sm:$0xff]
    %v4875 = vld [vmem:[#allocation11 + $0xb10] sm:$0xff]
    %v4876 = vld [vmem:[#allocation11 + $0xb18] sm:$0xff]
    %v4877 = vld [vmem:[#allocation11 + $0xb20] sm:$0xff]
    %v4878 = vld [vmem:[#allocation11 + $0xb28] sm:$0xff]
    %v4879 = vld [vmem:[#allocation11 + $0xb30] sm:$0xff]
    %v4880 = vld [vmem:[#allocation11 + $0xb38] sm:$0xff]
    %v4881 = vld [vmem:[#allocation11 + $0xb40] sm:$0xff]
    %v4882 = vld [vmem:[#allocation11 + $0xb48] sm:$0xff]
    %v4883 = vld [vmem:[#allocation11 + $0xb50] sm:$0xff]
    %v4884 = vld [vmem:[#allocation11 + $0xb58] sm:$0xff]
    %v4886 = vsel %vm1565, %v4856, 0
    %4888 = vmatprep.subr.mxu0 0.0
    %4889 = vmatpush1.msra.mxu0 %v4872
    %4890 = vmatprep.subr.mxu0 0.0
    %4891 = vmatpush1.msra.mxu0 %v4871
    %4892 = vmatprep.subr.mxu0 0.0
    %4893 = vmatpush1.msra.mxu0 %v4870
    %4894 = vmatprep.subr.mxu0 0.0
    %4895 = vmatpush1.msra.mxu0 %v4869
    %4896 = vmatprep.subr.mxu0 0.0
    %4897 = vmatpush1.msra.mxu0 %v4868
    %4898 = vmatprep.subr.mxu0 0.0
    %4899 = vmatpush1.msra.mxu0 %v4867
    %4900 = vmatprep.subr.mxu0 0.0
    %4901 = vmatpush1.msra.mxu0 %v4866
    %4902 = vmatprep.subr.mxu0 0.0
    %4903 = vmatpush1.msra.mxu0 %v4865
    %4904 = vmatprep.subr.mxu0 0.0
    %4905 = vmatpush1.msra.mxu0 %v4864
    %4906 = vmatprep.subr.mxu0 0.0
    %4907 = vmatpush1.msra.mxu0 %v4863
    %4908 = vmatprep.subr.mxu0 0.0
    %4909 = vmatpush1.msra.mxu0 %v4862
    %4910 = vmatprep.subr.mxu0 0.0
    %4911 = vmatpush1.msra.mxu0 %v4861
    %4912 = vmatprep.subr.mxu0 0.0
    %4913 = vmatpush1.msra.mxu0 %v4860
    %4914 = vmatprep.subr.mxu0 0.0
    %4915 = vmatpush1.msra.mxu0 %v4859
    %4916 = vmatprep.subr.mxu0 0.0
    %4917 = vmatpush1.msra.mxu0 %v4858
    %4918 = vmatprep.subr.mxu0 0.0
    %4919 = vmatpush1.msra.mxu0 %v4857
    %4920 = vmatprep.subr.mxu0 0.0
    %4921 = vmatpush2.msra.mxu0 0.0
    %4922 = vmatprep.subr.mxu0 0.0
    %4923 = vmatpush2.msra.mxu0 0.0
    %4924 = vmatprep.subr.mxu0 0.0
    %4925 = vmatpush2.msra.mxu0 0.0
    %4926 = vmatprep.subr.mxu0 0.0
    %4927 = vmatpush2.msra.mxu0 0.0
    %4928 = vmatprep.subr.mxu0 0.0
    %4929 = vmatpush2.msra.mxu0 %v4884
    %4930 = vmatprep.subr.mxu0 0.0
    %4931 = vmatpush2.msra.mxu0 %v4883
    %4932 = vmatprep.subr.mxu0 0.0
    %4933 = vmatpush2.msra.mxu0 %v4882
    %4934 = vmatprep.subr.mxu0 0.0
    %4935 = vmatpush2.msra.mxu0 %v4881
    %4936 = vmatprep.subr.mxu0 0.0
    %4937 = vmatpush2.msra.mxu0 %v4880
    %4938 = vmatprep.subr.mxu0 0.0
    %4939 = vmatpush2.msra.mxu0 %v4879
    %4940 = vmatprep.subr.mxu0 0.0
    %4941 = vmatpush2.msra.mxu0 %v4878
    %4942 = vmatprep.subr.mxu0 0.0
    %4943 = vmatpush2.msra.mxu0 %v4877
    %4944 = vmatprep.subr.mxu0 0.0
    %4945 = vmatpush2.msra.mxu0 %v4876
    %4946 = vmatprep.subr.mxu0 0.0
    %4947 = vmatpush2.msra.mxu0 %v4875
    %4948 = vmatprep.subr.mxu0 0.0
    %4949 = vmatpush2.msra.mxu0 %v4874
    %4950 = vmatprep.subr.mxu0 0.0
    %4951 = vmatpush2.msra.mxu0 %v4873
    %4952 = vmatprep.mubr.f32.mxu0 %v4886
    %4953 = vmatmul.mubr.f32.gmra.mxu0 %v4855
    %v4954 = vpop.f32.mrf.mxu0
    %v4955 = vadd.f32 0.0, %v4954
    %v4956 = vpop.f32.mrf.mxu0
    %4957 = vdwg.mxu0
    %v4958 = vadd.f32 %v4697, %v4955
    %4959 = vrot.lane.b32.xlu0 %v1469, 104
    %v4960 = vpop.permute.xlu0 %4959
    %4963 = vrot.lane.b32.xlu0 %v1552, 96
    %v4964 = vpop.permute.xlu0 %4963
    %4966 = vrot.lane.b32.xlu0 %v1552, 72
    %v4967 = vpop.permute.xlu0 %4966
    %v4969 = vsel %vm285, %v1469, %v4960
    %v4970 = vsel %vm1565, %v4960, %v4964
    %v4971 = vsel %vm1567, %v4964, %v4967
    %v4972 = vsel %vm1580, %v4967, 0
    %4974 = vmatprep.subr.mxu0 %v184
    %4975 = vmatpush1.msra.mxu0 %v183
    %4976 = vmatprep.subr.mxu0 %v182
    %4977 = vmatpush1.msra.mxu0 %v181
    %4978 = vmatprep.subr.mxu0 %v180
    %4979 = vmatpush1.msra.mxu0 %v179
    %4980 = vmatprep.subr.mxu0 %v178
    %4981 = vmatpush1.msra.mxu0 %v177
    %4982 = vmatprep.subr.mxu0 %v176
    %4983 = vmatpush1.msra.mxu0 %v175
    %4984 = vmatprep.subr.mxu0 %v174
    %4985 = vmatpush1.msra.mxu0 %v173
    %4986 = vmatprep.subr.mxu0 %v172
    %4987 = vmatpush1.msra.mxu0 %v171
    %4988 = vmatprep.subr.mxu0 %v170
    %4989 = vmatpush1.msra.mxu0 %v169
    %4990 = vmatprep.subr.mxu0 %v168
    %4991 = vmatpush1.msra.mxu0 %v167
    %4992 = vmatprep.subr.mxu0 %v166
    %4993 = vmatpush1.msra.mxu0 %v165
    %4994 = vmatprep.subr.mxu0 %v164
    %4995 = vmatpush1.msra.mxu0 %v163
    %4996 = vmatprep.subr.mxu0 %v162
    %4997 = vmatpush1.msra.mxu0 %v161
    %4998 = vmatprep.subr.mxu0 %v160
    %4999 = vmatpush1.msra.mxu0 %v159
    %5000 = vmatprep.subr.mxu0 %v158
    %5001 = vmatpush1.msra.mxu0 %v157
    %5002 = vmatprep.subr.mxu0 %v156
    %5003 = vmatpush1.msra.mxu0 %v155
    %5004 = vmatprep.subr.mxu0 %v154
    %5005 = vmatpush1.msra.mxu0 %v153
    %5006 = vmatprep.subr.mxu0 %v216
    %5007 = vmatpush2.msra.mxu0 %v215
    %5008 = vmatprep.subr.mxu0 %v214
    %5009 = vmatpush2.msra.mxu0 %v213
    %5010 = vmatprep.subr.mxu0 %v212
    %5011 = vmatpush2.msra.mxu0 %v211
    %5012 = vmatprep.subr.mxu0 %v210
    %5013 = vmatpush2.msra.mxu0 %v209
    %5014 = vmatprep.subr.mxu0 %v208
    %5015 = vmatpush2.msra.mxu0 %v207
    %5016 = vmatprep.subr.mxu0 %v206
    %5017 = vmatpush2.msra.mxu0 %v205
    %5018 = vmatprep.subr.mxu0 %v204
    %5019 = vmatpush2.msra.mxu0 %v203
    %5020 = vmatprep.subr.mxu0 %v202
    %5021 = vmatpush2.msra.mxu0 %v201
    %5022 = vmatprep.subr.mxu0 %v200
    %5023 = vmatpush2.msra.mxu0 %v199
    %5024 = vmatprep.subr.mxu0 %v198
    %5025 = vmatpush2.msra.mxu0 %v197
    %5026 = vmatprep.subr.mxu0 %v196
    %5027 = vmatpush2.msra.mxu0 %v195
    %5028 = vmatprep.subr.mxu0 %v194
    %5029 = vmatpush2.msra.mxu0 %v193
    %5030 = vmatprep.subr.mxu0 %v192
    %5031 = vmatpush2.msra.mxu0 %v191
    %5032 = vmatprep.subr.mxu0 %v190
    %5033 = vmatpush2.msra.mxu0 %v189
    %5034 = vmatprep.subr.mxu0 %v188
    %5035 = vmatpush2.msra.mxu0 %v187
    %5036 = vmatprep.subr.mxu0 %v186
    %5037 = vmatpush2.msra.mxu0 %v185
    %5038 = vmatprep.mubr.f32.mxu0 %v4970
    %5039 = vmatmul.mubr.f32.gmra.mxu0 %v4969
    %v5040 = vpop.f32.mrf.mxu0
    %v5041 = vadd.f32 %v1573, %v5040
    %v5042 = vpop.f32.mrf.mxu0
    %v5043 = vadd.f32 %v1577, %v5042
    %5044 = vdwg.mxu0
    %5045 = vmatprep.subr.mxu0 %v248
    %5046 = vmatpush1.msra.mxu0 %v247
    %5047 = vmatprep.subr.mxu0 %v246
    %5048 = vmatpush1.msra.mxu0 %v245
    %5049 = vmatprep.subr.mxu0 %v244
    %5050 = vmatpush1.msra.mxu0 %v243
    %5051 = vmatprep.subr.mxu0 %v242
    %5052 = vmatpush1.msra.mxu0 %v241
    %5053 = vmatprep.subr.mxu0 %v240
    %5054 = vmatpush1.msra.mxu0 %v239
    %5055 = vmatprep.subr.mxu0 %v238
    %5056 = vmatpush1.msra.mxu0 %v237
    %5057 = vmatprep.subr.mxu0 %v236
    %5058 = vmatpush1.msra.mxu0 %v235
    %5059 = vmatprep.subr.mxu0 %v234
    %5060 = vmatpush1.msra.mxu0 %v233
    %5061 = vmatprep.subr.mxu0 %v232
    %5062 = vmatpush1.msra.mxu0 %v231
    %5063 = vmatprep.subr.mxu0 %v230
    %5064 = vmatpush1.msra.mxu0 %v229
    %5065 = vmatprep.subr.mxu0 %v228
    %5066 = vmatpush1.msra.mxu0 %v227
    %5067 = vmatprep.subr.mxu0 %v226
    %5068 = vmatpush1.msra.mxu0 %v225
    %5069 = vmatprep.subr.mxu0 %v224
    %5070 = vmatpush1.msra.mxu0 %v223
    %5071 = vmatprep.subr.mxu0 %v222
    %5072 = vmatpush1.msra.mxu0 %v221
    %5073 = vmatprep.subr.mxu0 %v220
    %5074 = vmatpush1.msra.mxu0 %v219
    %5075 = vmatprep.subr.mxu0 %v218
    %5076 = vmatpush1.msra.mxu0 %v217
    %5077 = vmatprep.subr.mxu0 0.0
    %5078 = vmatpush2.msra.mxu0 0.0
    %5079 = vmatprep.subr.mxu0 0.0
    %5080 = vmatpush2.msra.mxu0 0.0
    %5081 = vmatprep.subr.mxu0 0.0
    %5082 = vmatpush2.msra.mxu0 0.0
    %5083 = vmatprep.subr.mxu0 0.0
    %5084 = vmatpush2.msra.mxu0 0.0
    %5085 = vmatprep.subr.mxu0 0.0
    %5086 = vmatpush2.msra.mxu0 0.0
    %5087 = vmatprep.subr.mxu0 0.0
    %5088 = vmatpush2.msra.mxu0 0.0
    %5089 = vmatprep.subr.mxu0 0.0
    %5090 = vmatpush2.msra.mxu0 0.0
    %5091 = vmatprep.subr.mxu0 0.0
    %5092 = vmatpush2.msra.mxu0 0.0
    %5093 = vmatprep.subr.mxu0 %v264
    %5094 = vmatpush2.msra.mxu0 %v263
    %5095 = vmatprep.subr.mxu0 %v262
    %5096 = vmatpush2.msra.mxu0 %v261
    %5097 = vmatprep.subr.mxu0 %v260
    %5098 = vmatpush2.msra.mxu0 %v259
    %5099 = vmatprep.subr.mxu0 %v258
    %5100 = vmatpush2.msra.mxu0 %v257
    %5101 = vmatprep.subr.mxu0 %v256
    %5102 = vmatpush2.msra.mxu0 %v255
    %5103 = vmatprep.subr.mxu0 %v254
    %5104 = vmatpush2.msra.mxu0 %v253
    %5105 = vmatprep.subr.mxu0 %v252
    %5106 = vmatpush2.msra.mxu0 %v251
    %5107 = vmatprep.subr.mxu0 %v250
    %5108 = vmatpush2.msra.mxu0 %v249
    %5109 = vmatprep.mubr.f32.mxu0 %v4972
    %5110 = vmatmul.mubr.f32.gmra.mxu0 %v4971
    %v5111 = vpop.f32.mrf.mxu0
    %v5112 = vadd.f32 %v5041, %v5111
    %v5113 = vpop.f32.mrf.mxu0
    %v5114 = vadd.f32 %v5043, %v5113
    %5115 = vdwg.mxu0
    %v5116 = vmax.f32 %v5112, 0.0
    %v5117 = vmax.f32 %v5114, 0.0
    %v5118 = vld [vmem:[#allocation11 + $0xb60] sm:$0xff]
    %v5119 = vld [vmem:[#allocation11 + $0xb68] sm:$0xff]
    %v5120 = vld [vmem:[#allocation11 + $0xb70] sm:$0xff]
    %v5121 = vld [vmem:[#allocation11 + $0xb78] sm:$0xff]
    %v5122 = vld [vmem:[#allocation11 + $0xb80] sm:$0xff]
    %v5123 = vld [vmem:[#allocation11 + $0xb88] sm:$0xff]
    %v5124 = vld [vmem:[#allocation11 + $0xb90] sm:$0xff]
    %v5125 = vld [vmem:[#allocation11 + $0xb98] sm:$0xff]
    %v5126 = vld [vmem:[#allocation11 + $0xba0] sm:$0xff]
    %v5127 = vld [vmem:[#allocation11 + $0xba8] sm:$0xff]
    %v5128 = vld [vmem:[#allocation11 + $0xbb0] sm:$0xff]
    %v5129 = vld [vmem:[#allocation11 + $0xbb8] sm:$0xff]
    %v5130 = vld [vmem:[#allocation11 + $0xbc0] sm:$0xff]
    %v5131 = vld [vmem:[#allocation11 + $0xbc8] sm:$0xff]
    %v5132 = vld [vmem:[#allocation11 + $0xbd0] sm:$0xff]
    %v5133 = vld [vmem:[#allocation11 + $0xbd8] sm:$0xff]
    %v5134 = vld [vmem:[#allocation11 + $0xbe0] sm:$0xff]
    %v5135 = vld [vmem:[#allocation11 + $0xbe8] sm:$0xff]
    %v5136 = vld [vmem:[#allocation11 + $0xbf0] sm:$0xff]
    %v5137 = vld [vmem:[#allocation11 + $0xbf8] sm:$0xff]
    %v5138 = vld [vmem:[#allocation11 + $0xc00] sm:$0xff]
    %v5139 = vld [vmem:[#allocation11 + $0xc08] sm:$0xff]
    %v5140 = vld [vmem:[#allocation11 + $0xc10] sm:$0xff]
    %v5141 = vld [vmem:[#allocation11 + $0xc18] sm:$0xff]
    %v5142 = vld [vmem:[#allocation11 + $0xc20] sm:$0xff]
    %v5143 = vld [vmem:[#allocation11 + $0xc28] sm:$0xff]
    %v5144 = vld [vmem:[#allocation11 + $0xc30] sm:$0xff]
    %v5145 = vld [vmem:[#allocation11 + $0xc38] sm:$0xff]
    %v5147 = vsel %vm1565, %v5117, 0
    %5149 = vmatprep.subr.mxu0 0.0
    %5150 = vmatpush1.msra.mxu0 %v5133
    %5151 = vmatprep.subr.mxu0 0.0
    %5152 = vmatpush1.msra.mxu0 %v5132
    %5153 = vmatprep.subr.mxu0 0.0
    %5154 = vmatpush1.msra.mxu0 %v5131
    %5155 = vmatprep.subr.mxu0 0.0
    %5156 = vmatpush1.msra.mxu0 %v5130
    %5157 = vmatprep.subr.mxu0 0.0
    %5158 = vmatpush1.msra.mxu0 %v5129
    %5159 = vmatprep.subr.mxu0 0.0
    %5160 = vmatpush1.msra.mxu0 %v5128
    %5161 = vmatprep.subr.mxu0 0.0
    %5162 = vmatpush1.msra.mxu0 %v5127
    %5163 = vmatprep.subr.mxu0 0.0
    %5164 = vmatpush1.msra.mxu0 %v5126
    %5165 = vmatprep.subr.mxu0 0.0
    %5166 = vmatpush1.msra.mxu0 %v5125
    %5167 = vmatprep.subr.mxu0 0.0
    %5168 = vmatpush1.msra.mxu0 %v5124
    %5169 = vmatprep.subr.mxu0 0.0
    %5170 = vmatpush1.msra.mxu0 %v5123
    %5171 = vmatprep.subr.mxu0 0.0
    %5172 = vmatpush1.msra.mxu0 %v5122
    %5173 = vmatprep.subr.mxu0 0.0
    %5174 = vmatpush1.msra.mxu0 %v5121
    %5175 = vmatprep.subr.mxu0 0.0
    %5176 = vmatpush1.msra.mxu0 %v5120
    %5177 = vmatprep.subr.mxu0 0.0
    %5178 = vmatpush1.msra.mxu0 %v5119
    %5179 = vmatprep.subr.mxu0 0.0
    %5180 = vmatpush1.msra.mxu0 %v5118
    %5181 = vmatprep.subr.mxu0 0.0
    %5182 = vmatpush2.msra.mxu0 0.0
    %5183 = vmatprep.subr.mxu0 0.0
    %5184 = vmatpush2.msra.mxu0 0.0
    %5185 = vmatprep.subr.mxu0 0.0
    %5186 = vmatpush2.msra.mxu0 0.0
    %5187 = vmatprep.subr.mxu0 0.0
    %5188 = vmatpush2.msra.mxu0 0.0
    %5189 = vmatprep.subr.mxu0 0.0
    %5190 = vmatpush2.msra.mxu0 %v5145
    %5191 = vmatprep.subr.mxu0 0.0
    %5192 = vmatpush2.msra.mxu0 %v5144
    %5193 = vmatprep.subr.mxu0 0.0
    %5194 = vmatpush2.msra.mxu0 %v5143
    %5195 = vmatprep.subr.mxu0 0.0
    %5196 = vmatpush2.msra.mxu0 %v5142
    %5197 = vmatprep.subr.mxu0 0.0
    %5198 = vmatpush2.msra.mxu0 %v5141
    %5199 = vmatprep.subr.mxu0 0.0
    %5200 = vmatpush2.msra.mxu0 %v5140
    %5201 = vmatprep.subr.mxu0 0.0
    %5202 = vmatpush2.msra.mxu0 %v5139
    %5203 = vmatprep.subr.mxu0 0.0
    %5204 = vmatpush2.msra.mxu0 %v5138
    %5205 = vmatprep.subr.mxu0 0.0
    %5206 = vmatpush2.msra.mxu0 %v5137
    %5207 = vmatprep.subr.mxu0 0.0
    %5208 = vmatpush2.msra.mxu0 %v5136
    %5209 = vmatprep.subr.mxu0 0.0
    %5210 = vmatpush2.msra.mxu0 %v5135
    %5211 = vmatprep.subr.mxu0 0.0
    %5212 = vmatpush2.msra.mxu0 %v5134
    %5213 = vmatprep.mubr.f32.mxu0 %v5147
    %5214 = vmatmul.mubr.f32.gmra.mxu0 %v5116
    %v5215 = vpop.f32.mrf.mxu0
    %v5216 = vadd.f32 0.0, %v5215
    %v5217 = vpop.f32.mrf.mxu0
    %5218 = vdwg.mxu0
    %v5219 = vadd.f32 %v4958, %v5216
    %v5220 = vld [vmem:[#allocation13] sm:$0x1]
    %v5222 = vlaneseq
    %v5223 = vshrl.u32 %v5222, 7
    %v5224 = vsub.s32 0, %v5223
    %v5225 = vrot.slane %v5220, %v5224
    %v5227 = vadd.f32 %v5219, %v5225
    %5228 = vst [vmem:[#allocation14] sm:$0xff] %v5227
    // Predicated region
    $region58: #{tpu_custom_call.1} parent=1 // pred_check
      _
    $region59: #{tpu_custom_call.1} parent=1 // pred_check_branch
      %5230 = sbr.rel (0) target = $region61
    $region60: #{tpu_custom_call.1} parent=1 // pred_region
      %s5232 = ssub.s32 128, 128
      %5233 = vsyncadd [#allocation4], %s5232
      %s5235 = sshll.u32 [#allocation14], 4
      %s5236 = int_to_ptr.vmem [resolvable:$true] %s5235
      %5238 = dma.vmem_to_hbm [thread:$0]  %s5236, 128, %s7, [#allocation4]
    $region61: #{tpu_custom_call.1} parent=1 // pred_fallthru
      _
    // Predicated region
    $region62: #{tpu_custom_call.1} parent=1 // pred_check
      _
    $region63: #{tpu_custom_call.1} parent=1 // pred_check_branch
      %5240 = sbr.rel (0) target = $region65
    $region64: #{tpu_custom_call.1} parent=1 // pred_region
      %5241 = dma.done [#allocation4], 128
    $region65: #{tpu_custom_call.1} parent=1 // pred_fallthru
      _
    %5242 = vsyncpa [#allocation3], 1
    %5243 = vsyncpa [#allocation6], 1
    %5244 = vsyncpa [#allocation9], 1
    %5245 = vsyncpa [#allocation12], 1
    %5246 = vsyncpa [#allocation4], 1

</llo_original>
